<compile_context>
chip_gen: v6e
topology: v6e:2x2x1
jax: 0.10.0
libtpu: 0.0.40
codegen_flags: <defaults>
</compile_context>

<pallas_src>
import functools

import jax
import jax.numpy as jnp
from jax.experimental import pallas as pl
from jax.experimental.pallas import tpu as pltpu


def speaker_kernel(x0_ref, d2e_wih_ref, whh_ref, bi_ref, bh_ref,
                   e2dw_ref, e2db_ref, u_ref,
                   utt_ref, lens_ref):
    B, E = x0_ref.shape
    V = d2e_wih_ref.shape[0]
    T = utt_ref.shape[1]

    # --- loop-invariant constants (hoisted) ---
    col_v = jax.lax.broadcasted_iota(jnp.int32, (B, V), 1)            # (B, V)
    # tri[i, j] = 1 if i <= j  ->  (ex @ tri)[:, j] = sum_{i<=j} ex[:, i]
    tri = (jax.lax.broadcasted_iota(jnp.int32, (V, V), 0)
           <= jax.lax.broadcasted_iota(jnp.int32, (V, V), 1)).astype(jnp.float32)

    d2e_wih = d2e_wih_ref[...]                                        # (V, 3E)
    whh = whh_ref[...]                                                # (E, 3E)
    bi = bi_ref[...]                                                  # (1, 3E)
    bh = bh_ref[...]                                                  # (1, 3E)
    e2dw = e2dw_ref[...]                                              # (E, V)
    e2db = e2db_ref[...]                                              # (1, V)

    # --- register-carried loop state ---
    state = x0_ref[...]                                               # (B, E)
    alive = jnp.ones((B, 1), jnp.bool_)
    last_tok = jnp.zeros((B, 1), jnp.int32)
    lens = jnp.full((B, 1), T, jnp.int32)

    # fully unrolled time loop (T is small and static)
    for t in range(T):
        # embedding lookup fused into the input-gate matmul:
        #   gi = onehot(last_tok) @ (d2e @ W_ih^T) + b_ih
        onehot = (col_v == last_tok).astype(jnp.float32)              # (B, V)
        gi = jnp.dot(onehot, d2e_wih,
                     preferred_element_type=jnp.float32) + bi         # (B, 3E)
        gh = jnp.dot(state, whh,
                     preferred_element_type=jnp.float32) + bh         # (B, 3E)

        # PyTorch nn.GRUCell gate equations (gate order r, z, n)
        r = jax.nn.sigmoid(gi[:, 0:E] + gh[:, 0:E])
        z = jax.nn.sigmoid(gi[:, E:2 * E] + gh[:, E:2 * E])
        n = jnp.tanh(gi[:, 2 * E:3 * E] + r * gh[:, 2 * E:3 * E])
        state = (1.0 - z) * n + z * state                             # (B, E)

        # e2d linear + (implicit) softmax + inverse-CDF categorical sample.
        # Unnormalized CDF comparison: cdf_j <= u  <=>  sum_{i<=j} ex_i <= u * sum(ex)
        logits = jnp.dot(state, e2dw,
                         preferred_element_type=jnp.float32) + e2db   # (B, V)
        m = jnp.max(logits, axis=-1, keepdims=True)
        ex = jnp.exp(logits - m)
        s_sum = jnp.sum(ex, axis=-1, keepdims=True)                   # (B, 1)
        cdf = jnp.dot(ex, tri, preferred_element_type=jnp.float32)    # (B, V)
        u = u_ref[:, t:t + 1] * s_sum                                 # (B, 1)
        token = jnp.sum((cdf <= u).astype(jnp.int32),
                        axis=-1, keepdims=True)                       # (B, 1)
        token = jnp.minimum(token, V - 1)

        # alive-sieve semantics via masking
        token = jnp.where(alive, token, 0)
        newly_dead = jnp.logical_and(alive, token == 0)
        lens = jnp.where(newly_dead, t + 1, lens)
        alive = jnp.logical_and(alive, token != 0)
        last_tok = token

        utt_ref[:, t:t + 1] = token                                   # column store

    lens_ref[...] = lens


def init_speaker_params(key, embedding_size, utterance_max, vocab_size, num_actions):
    ks = jax.random.split(key, 6)
    E, V = embedding_size, vocab_size
    scale = 0.1
    params = {
        "h1_w": scale * jax.random.normal(ks[0], (num_actions, E), jnp.float32),
        "d2e_w": scale * jax.random.normal(ks[1], (V, E), jnp.float32),
        # nn.GRUCell: weight_ih (3E, E), weight_hh (3E, E), biases (3E,) ordered [r, z, n]
        "gru_w_ih": scale * jax.random.normal(ks[2], (3 * E, E), jnp.float32),
        "gru_w_hh": scale * jax.random.normal(ks[3], (3 * E, E), jnp.float32),
        "gru_b_ih": scale * jax.random.normal(ks[4], (3 * E,), jnp.float32),
        "gru_b_hh": scale * jax.random.normal(ks[5], (3 * E,), jnp.float32),
        # nn.Linear(E, V): weight (V, E), bias (V,)
        "e2d_w": scale * jax.random.normal(jax.random.fold_in(key, 7), (V, E), jnp.float32),
        "e2d_b": scale * jax.random.normal(jax.random.fold_in(key, 8), (V,), jnp.float32),
    }
    return params


@functools.partial(jax.jit, static_argnames=("utterance_max",))
def speaker_forward(params, actions, uniforms, *, utterance_max):
    """actions: (B,) int32 in [0, num_actions); uniforms: (B, T) float32 in [0,1)."""
    E = params["h1_w"].shape[1]
    V = params["d2e_w"].shape[0]
    B = actions.shape[0]
    T = utterance_max

    # glue: h1 embedding lookup (static, index-only) + fused weight prep (done once by XLA)
    x0 = params["h1_w"][actions].astype(jnp.float32)                  # (B, E)

    w_ih_t = params["gru_w_ih"].T                                     # (E, 3E), cols [r|z|n]
    w_hh_t = params["gru_w_hh"].T                                     # (E, 3E)
    d2e_wih = jnp.dot(params["d2e_w"], w_ih_t)                        # (V, 3E): embedding folded in
    b_ih = params["gru_b_ih"].reshape(1, 3 * E)
    b_hh = params["gru_b_hh"].reshape(1, 3 * E)
    e2dw_t = params["e2d_w"].T                                        # (E, V)
    e2db = params["e2d_b"].reshape(1, V)

    # batch-parallel grid (shards across TensorCores when B is large)
    BT = 8 if B % 8 == 0 else B
    grid = (B // BT,)

    batch_spec = lambda cols: pl.BlockSpec((BT, cols), lambda i: (i, 0))
    const_spec = lambda rows, cols: pl.BlockSpec((rows, cols), lambda i: (0, 0))

    utt, lens2d = pl.pallas_call(
        speaker_kernel,
        out_shape=(jax.ShapeDtypeStruct((B, T), jnp.int32),
                   jax.ShapeDtypeStruct((B, 1), jnp.int32)),
        grid=grid,
        in_specs=[
            batch_spec(E),                 # x0
            const_spec(V, 3 * E),          # d2e @ W_ih^T
            const_spec(E, 3 * E),          # W_hh^T
            const_spec(1, 3 * E),          # b_ih
            const_spec(1, 3 * E),          # b_hh
            const_spec(E, V),              # e2d weight^T
            const_spec(1, V),              # e2d bias
            batch_spec(T),                 # uniforms
        ],
        out_specs=(batch_spec(T), batch_spec(1)),
        compiler_params=pltpu.CompilerParams(dimension_semantics=("parallel",)),
    )(x0, d2e_wih, w_hh_t, b_ih, b_hh, e2dw_t, e2db, uniforms)

    # TODO(synk): StochasticTrajectory (per-step log-prob bookkeeping for REINFORCE)
    # is RL plumbing, not tensor compute; only utterance / utterance_lens are returned.
    return {"utterance": utt, "utterance_lens": lens2d[:, 0]}


if __name__ == "__main__":
    embedding_size = 32
    utterance_max = 8
    vocab_size = 16
    num_actions = 10
    batch = 8

    key = jax.random.PRNGKey(0)
    pkey, akey, ukey = jax.random.split(key, 3)

    params = init_speaker_params(pkey, embedding_size, utterance_max,
                                 vocab_size, num_actions)
    actions = jax.random.randint(akey, (batch,), 0, num_actions, dtype=jnp.int32)
    uniforms = jax.random.uniform(ukey, (batch, utterance_max), dtype=jnp.float32)

    out = speaker_forward(params, actions, uniforms, utterance_max=utterance_max)
    out = jax.block_until_ready(out)

    utt = jax.device_get(out["utterance"])
    lens = jax.device_get(out["utterance_lens"])

    # sanity: shapes / dtypes / sieve semantics (tokens after termination are 0,
    # lengths in [1, utterance_max]).
    assert utt.shape == (batch, utterance_max) and lens.shape == (batch,)
    assert utt.dtype == jnp.int32 and lens.dtype == jnp.int32
    assert (utt >= 0).all() and (utt < vocab_size).all()
    assert (lens >= 1).all() and (lens <= utterance_max).all()
    for b in range(batch):
        L = int(lens[b])
        assert (utt[b, L:] == 0).all()
        if L < utterance_max:
            assert utt[b, L - 1] == 0

    print("KERNEL_OK")
</pallas_src>

<mosaic_0001>
module attributes {stable_mosaic.version = 11 : i64} {
  func.func @speaker_kernel(%arg0: i32, %arg1: memref<8x32xf32, #tpu.memory_space<vmem>>, %arg2: memref<16x96xf32, #tpu.memory_space<vmem>>, %arg3: memref<32x96xf32, #tpu.memory_space<vmem>>, %arg4: memref<1x96xf32, #tpu.memory_space<vmem>>, %arg5: memref<1x96xf32, #tpu.memory_space<vmem>>, %arg6: memref<32x16xf32, #tpu.memory_space<vmem>>, %arg7: memref<1x16xf32, #tpu.memory_space<vmem>>, %arg8: memref<8x8xf32, #tpu.memory_space<vmem>>, %arg9: memref<8x8xi32, #tpu.memory_space<vmem>>, %arg10: memref<8x1xi32, #tpu.memory_space<vmem>>) attributes {dimension_semantics = [#tpu.dimension_semantics<parallel>], iteration_bounds = array<i64: 1>, scalar_prefetch = 0 : i64, scratch_operands = 0 : i64, tpu.core_type = #tpu.core_type<tc>, window_params = [{transform_indices = @transform_0, window_bounds = array<i64: 8, 32>}, {pipeline_mode = #tpu.pipeline_mode<synchronous>, transform_indices = @transform_1, window_bounds = array<i64: 16, 96>}, {pipeline_mode = #tpu.pipeline_mode<synchronous>, transform_indices = @transform_2, window_bounds = array<i64: 32, 96>}, {pipeline_mode = #tpu.pipeline_mode<synchronous>, transform_indices = @transform_3, window_bounds = array<i64: 1, 96>}, {pipeline_mode = #tpu.pipeline_mode<synchronous>, transform_indices = @transform_4, window_bounds = array<i64: 1, 96>}, {pipeline_mode = #tpu.pipeline_mode<synchronous>, transform_indices = @transform_5, window_bounds = array<i64: 32, 16>}, {pipeline_mode = #tpu.pipeline_mode<synchronous>, transform_indices = @transform_6, window_bounds = array<i64: 1, 16>}, {transform_indices = @transform_7, window_bounds = array<i64: 8, 8>}, {transform_indices = @transform_8, window_bounds = array<i64: 8, 8>}, {transform_indices = @transform_9, window_bounds = array<i64: 8, 1>}]} {
    %0 = tpu.iota {dimensions = array<i32: 1>} : vector<8x16xi32>
    %1 = tpu.iota {dimensions = array<i32: 0>} : vector<16x16xi32>
    %2 = tpu.iota {dimensions = array<i32: 1>} : vector<16x16xi32>
    %3 = arith.cmpi sle, %1, %2 : vector<16x16xi32>
    %4 = arith.extui %3 : vector<16x16xi1> to vector<16x16xi32>
    %5 = arith.sitofp %4 : vector<16x16xi32> to vector<16x16xf32>
    %c0 = arith.constant 0 : index
    %c0_0 = arith.constant 0 : index
    %6 = vector.load %arg2[%c0, %c0_0] : memref<16x96xf32, #tpu.memory_space<vmem>>, vector<16x96xf32>
    %c0_1 = arith.constant 0 : index
    %c0_2 = arith.constant 0 : index
    %7 = vector.load %arg3[%c0_1, %c0_2] : memref<32x96xf32, #tpu.memory_space<vmem>>, vector<32x96xf32>
    %c0_3 = arith.constant 0 : index
    %c0_4 = arith.constant 0 : index
    %8 = vector.load %arg4[%c0_3, %c0_4] : memref<1x96xf32, #tpu.memory_space<vmem>>, vector<1x96xf32>
    %c0_5 = arith.constant 0 : index
    %c0_6 = arith.constant 0 : index
    %9 = vector.load %arg5[%c0_5, %c0_6] : memref<1x96xf32, #tpu.memory_space<vmem>>, vector<1x96xf32>
    %c0_7 = arith.constant 0 : index
    %c0_8 = arith.constant 0 : index
    %10 = vector.load %arg6[%c0_7, %c0_8] : memref<32x16xf32, #tpu.memory_space<vmem>>, vector<32x16xf32>
    %c0_9 = arith.constant 0 : index
    %c0_10 = arith.constant 0 : index
    %11 = vector.load %arg7[%c0_9, %c0_10] : memref<1x16xf32, #tpu.memory_space<vmem>>, vector<1x16xf32>
    %c0_11 = arith.constant 0 : index
    %c0_12 = arith.constant 0 : index
    %12 = vector.load %arg1[%c0_11, %c0_12] : memref<8x32xf32, #tpu.memory_space<vmem>>, vector<8x32xf32>
    %true = arith.constant true
    %13 = vector.broadcast %true : i1 to vector<8x1xi1>
    %c0_i32 = arith.constant 0 : i32
    %14 = vector.broadcast %c0_i32 : i32 to vector<8x1xi32>
    %c8_i32 = arith.constant 8 : i32
    %15 = vector.broadcast %c8_i32 : i32 to vector<8x1xi32>
    %16 = vector.broadcast %14 : vector<8x1xi32> to vector<8x16xi32>
    %17 = arith.cmpi eq, %0, %16 : vector<8x16xi32>
    %18 = arith.extui %17 : vector<8x16xi1> to vector<8x16xi32>
    %19 = arith.sitofp %18 : vector<8x16xi32> to vector<8x16xf32>
    %cst = arith.constant dense<0.000000e+00> : vector<8x96xf32>
    %20 = tpu.matmul %19, %6, %cst {dimension_numbers = #tpu.dot_dimension_numbers<[1], [0], [0], [1], [0, 0, 1, 1], [], []>} : vector<8x16xf32>, vector<16x96xf32>, vector<8x96xf32> -> vector<8x96xf32>
    %21 = vector.broadcast %8 : vector<1x96xf32> to vector<8x96xf32>
    %22 = arith.addf %20, %21 : vector<8x96xf32>
    %cst_13 = arith.constant dense<0.000000e+00> : vector<8x96xf32>
    %23 = tpu.matmul %12, %7, %cst_13 {dimension_numbers = #tpu.dot_dimension_numbers<[1], [0], [0], [1], [0, 0, 1, 1], [], []>} : vector<8x32xf32>, vector<32x96xf32>, vector<8x96xf32> -> vector<8x96xf32>
    %24 = vector.broadcast %9 : vector<1x96xf32> to vector<8x96xf32>
    %25 = arith.addf %23, %24 : vector<8x96xf32>
    %26 = vector.extract_strided_slice %22 {offsets = [0, 0], sizes = [8, 32], strides = [1, 1]} : vector<8x96xf32> to vector<8x32xf32>
    %27 = vector.extract_strided_slice %25 {offsets = [0, 0], sizes = [8, 32], strides = [1, 1]} : vector<8x96xf32> to vector<8x32xf32>
    %28 = arith.addf %26, %27 : vector<8x32xf32>
    %29 = arith.negf %28 : vector<8x32xf32>
    %30 = math.exp %29 : vector<8x32xf32>
    %cst_14 = arith.constant 1.000000e+00 : f32
    %31 = vector.broadcast %cst_14 : f32 to vector<8x32xf32>
    %32 = arith.addf %31, %30 : vector<8x32xf32>
    %33 = arith.divf %31, %32 : vector<8x32xf32>
    %34 = vector.extract_strided_slice %22 {offsets = [0, 32], sizes = [8, 32], strides = [1, 1]} : vector<8x96xf32> to vector<8x32xf32>
    %35 = vector.extract_strided_slice %25 {offsets = [0, 32], sizes = [8, 32], strides = [1, 1]} : vector<8x96xf32> to vector<8x32xf32>
    %36 = arith.addf %34, %35 : vector<8x32xf32>
    %37 = arith.negf %36 : vector<8x32xf32>
    %38 = math.exp %37 : vector<8x32xf32>
    %cst_15 = arith.constant 1.000000e+00 : f32
    %39 = vector.broadcast %cst_15 : f32 to vector<8x32xf32>
    %40 = arith.addf %39, %38 : vector<8x32xf32>
    %41 = arith.divf %39, %40 : vector<8x32xf32>
    %42 = vector.extract_strided_slice %22 {offsets = [0, 64], sizes = [8, 32], strides = [1, 1]} : vector<8x96xf32> to vector<8x32xf32>
    %43 = vector.extract_strided_slice %25 {offsets = [0, 64], sizes = [8, 32], strides = [1, 1]} : vector<8x96xf32> to vector<8x32xf32>
    %44 = arith.mulf %33, %43 : vector<8x32xf32>
    %45 = arith.addf %42, %44 : vector<8x32xf32>
    %46 = math.tanh %45 : vector<8x32xf32>
    %cst_16 = arith.constant 1.000000e+00 : f32
    %47 = vector.broadcast %cst_16 : f32 to vector<8x32xf32>
    %48 = arith.subf %47, %41 : vector<8x32xf32>
    %49 = arith.mulf %48, %46 : vector<8x32xf32>
    %50 = arith.mulf %41, %12 : vector<8x32xf32>
    %51 = arith.addf %49, %50 : vector<8x32xf32>
    %cst_17 = arith.constant dense<0.000000e+00> : vector<8x16xf32>
    %52 = tpu.matmul %51, %10, %cst_17 {dimension_numbers = #tpu.dot_dimension_numbers<[1], [0], [0], [1], [0, 0, 1, 1], [], []>} : vector<8x32xf32>, vector<32x16xf32>, vector<8x16xf32> -> vector<8x16xf32>
    %53 = vector.broadcast %11 : vector<1x16xf32> to vector<8x16xf32>
    %54 = arith.addf %52, %53 : vector<8x16xf32>
    %cst_18 = arith.constant dense<0xFF800000> : vector<8xf32>
    %55 = vector.multi_reduction <maximumf>, %54, %cst_18 [1] : vector<8x16xf32> to vector<8xf32>
    %56 = vector.shape_cast %55 : vector<8xf32> to vector<8x1xf32>
    %57 = vector.broadcast %56 : vector<8x1xf32> to vector<8x16xf32>
    %58 = arith.subf %54, %57 : vector<8x16xf32>
    %59 = math.exp %58 : vector<8x16xf32>
    %cst_19 = arith.constant dense<0.000000e+00> : vector<8xf32>
    %60 = vector.multi_reduction <add>, %59, %cst_19 [1] : vector<8x16xf32> to vector<8xf32>
    %61 = vector.shape_cast %60 : vector<8xf32> to vector<8x1xf32>
    %cst_20 = arith.constant dense<0.000000e+00> : vector<8x16xf32>
    %62 = tpu.matmul %59, %5, %cst_20 {dimension_numbers = #tpu.dot_dimension_numbers<[1], [0], [0], [1], [0, 0, 1, 1], [], []>} : vector<8x16xf32>, vector<16x16xf32>, vector<8x16xf32> -> vector<8x16xf32>
    %c0_21 = arith.constant 0 : index
    %c0_22 = arith.constant 0 : index
    %63 = vector.load %arg8[%c0_21, %c0_22] : memref<8x8xf32, #tpu.memory_space<vmem>>, vector<8x1xf32>
    %64 = arith.mulf %63, %61 : vector<8x1xf32>
    %65 = vector.broadcast %64 : vector<8x1xf32> to vector<8x16xf32>
    %66 = arith.cmpf ole, %62, %65 : vector<8x16xf32>
    %67 = arith.extui %66 : vector<8x16xi1> to vector<8x16xi32>
    %cst_23 = arith.constant dense<0> : vector<8xi32>
    %68 = vector.multi_reduction <add>, %67, %cst_23 [1] : vector<8x16xi32> to vector<8xi32>
    %69 = vector.shape_cast %68 : vector<8xi32> to vector<8x1xi32>
    %c15_i32 = arith.constant 15 : i32
    %70 = vector.broadcast %c15_i32 : i32 to vector<8x1xi32>
    %71 = arith.minsi %69, %70 : vector<8x1xi32>
    %c0_i32_24 = arith.constant 0 : i32
    %72 = vector.broadcast %c0_i32_24 : i32 to vector<8x1xi32>
    %73 = arith.select %13, %71, %72 : vector<8x1xi1>, vector<8x1xi32>
    %c0_i32_25 = arith.constant 0 : i32
    %74 = vector.broadcast %c0_i32_25 : i32 to vector<8x1xi32>
    %75 = arith.cmpi eq, %73, %74 : vector<8x1xi32>
    %76 = arith.andi %13, %75 : vector<8x1xi1>
    %c1_i32 = arith.constant 1 : i32
    %77 = vector.broadcast %c1_i32 : i32 to vector<8x1xi32>
    %78 = arith.select %76, %77, %15 : vector<8x1xi1>, vector<8x1xi32>
    %c0_i32_26 = arith.constant 0 : i32
    %79 = vector.broadcast %c0_i32_26 : i32 to vector<8x1xi32>
    %80 = arith.cmpi ne, %73, %79 : vector<8x1xi32>
    %81 = arith.andi %13, %80 : vector<8x1xi1>
    %c0_27 = arith.constant 0 : index
    %c0_28 = arith.constant 0 : index
    %82 = vector.load %arg9[%c0_27, %c0_28] : memref<8x8xi32, #tpu.memory_space<vmem>>, vector<8x1xi32>
    tpu.vector_store %arg9[%c0_27, %c0_28], %73 {strides = array<i32>} : memref<8x8xi32, #tpu.memory_space<vmem>>, vector<8x1xi32>,
    %83 = vector.broadcast %73 : vector<8x1xi32> to vector<8x16xi32>
    %84 = arith.cmpi eq, %0, %83 : vector<8x16xi32>
    %85 = arith.extui %84 : vector<8x16xi1> to vector<8x16xi32>
    %86 = arith.sitofp %85 : vector<8x16xi32> to vector<8x16xf32>
    %cst_29 = arith.constant dense<0.000000e+00> : vector<8x96xf32>
    %87 = tpu.matmul %86, %6, %cst_29 {dimension_numbers = #tpu.dot_dimension_numbers<[1], [0], [0], [1], [0, 0, 1, 1], [], []>} : vector<8x16xf32>, vector<16x96xf32>, vector<8x96xf32> -> vector<8x96xf32>
    %88 = vector.broadcast %8 : vector<1x96xf32> to vector<8x96xf32>
    %89 = arith.addf %87, %88 : vector<8x96xf32>
    %cst_30 = arith.constant dense<0.000000e+00> : vector<8x96xf32>
    %90 = tpu.matmul %51, %7, %cst_30 {dimension_numbers = #tpu.dot_dimension_numbers<[1], [0], [0], [1], [0, 0, 1, 1], [], []>} : vector<8x32xf32>, vector<32x96xf32>, vector<8x96xf32> -> vector<8x96xf32>
    %91 = vector.broadcast %9 : vector<1x96xf32> to vector<8x96xf32>
    %92 = arith.addf %90, %91 : vector<8x96xf32>
    %93 = vector.extract_strided_slice %89 {offsets = [0, 0], sizes = [8, 32], strides = [1, 1]} : vector<8x96xf32> to vector<8x32xf32>
    %94 = vector.extract_strided_slice %92 {offsets = [0, 0], sizes = [8, 32], strides = [1, 1]} : vector<8x96xf32> to vector<8x32xf32>
    %95 = arith.addf %93, %94 : vector<8x32xf32>
    %96 = arith.negf %95 : vector<8x32xf32>
    %97 = math.exp %96 : vector<8x32xf32>
    %cst_31 = arith.constant 1.000000e+00 : f32
    %98 = vector.broadcast %cst_31 : f32 to vector<8x32xf32>
    %99 = arith.addf %98, %97 : vector<8x32xf32>
    %100 = arith.divf %98, %99 : vector<8x32xf32>
    %101 = vector.extract_strided_slice %89 {offsets = [0, 32], sizes = [8, 32], strides = [1, 1]} : vector<8x96xf32> to vector<8x32xf32>
    %102 = vector.extract_strided_slice %92 {offsets = [0, 32], sizes = [8, 32], strides = [1, 1]} : vector<8x96xf32> to vector<8x32xf32>
    %103 = arith.addf %101, %102 : vector<8x32xf32>
    %104 = arith.negf %103 : vector<8x32xf32>
    %105 = math.exp %104 : vector<8x32xf32>
    %cst_32 = arith.constant 1.000000e+00 : f32
    %106 = vector.broadcast %cst_32 : f32 to vector<8x32xf32>
    %107 = arith.addf %106, %105 : vector<8x32xf32>
    %108 = arith.divf %106, %107 : vector<8x32xf32>
    %109 = vector.extract_strided_slice %89 {offsets = [0, 64], sizes = [8, 32], strides = [1, 1]} : vector<8x96xf32> to vector<8x32xf32>
    %110 = vector.extract_strided_slice %92 {offsets = [0, 64], sizes = [8, 32], strides = [1, 1]} : vector<8x96xf32> to vector<8x32xf32>
    %111 = arith.mulf %100, %110 : vector<8x32xf32>
    %112 = arith.addf %109, %111 : vector<8x32xf32>
    %113 = math.tanh %112 : vector<8x32xf32>
    %cst_33 = arith.constant 1.000000e+00 : f32
    %114 = vector.broadcast %cst_33 : f32 to vector<8x32xf32>
    %115 = arith.subf %114, %108 : vector<8x32xf32>
    %116 = arith.mulf %115, %113 : vector<8x32xf32>
    %117 = arith.mulf %108, %51 : vector<8x32xf32>
    %118 = arith.addf %116, %117 : vector<8x32xf32>
    %cst_34 = arith.constant dense<0.000000e+00> : vector<8x16xf32>
    %119 = tpu.matmul %118, %10, %cst_34 {dimension_numbers = #tpu.dot_dimension_numbers<[1], [0], [0], [1], [0, 0, 1, 1], [], []>} : vector<8x32xf32>, vector<32x16xf32>, vector<8x16xf32> -> vector<8x16xf32>
    %120 = vector.broadcast %11 : vector<1x16xf32> to vector<8x16xf32>
    %121 = arith.addf %119, %120 : vector<8x16xf32>
    %cst_35 = arith.constant dense<0xFF800000> : vector<8xf32>
    %122 = vector.multi_reduction <maximumf>, %121, %cst_35 [1] : vector<8x16xf32> to vector<8xf32>
    %123 = vector.shape_cast %122 : vector<8xf32> to vector<8x1xf32>
    %124 = vector.broadcast %123 : vector<8x1xf32> to vector<8x16xf32>
    %125 = arith.subf %121, %124 : vector<8x16xf32>
    %126 = math.exp %125 : vector<8x16xf32>
    %cst_36 = arith.constant dense<0.000000e+00> : vector<8xf32>
    %127 = vector.multi_reduction <add>, %126, %cst_36 [1] : vector<8x16xf32> to vector<8xf32>
    %128 = vector.shape_cast %127 : vector<8xf32> to vector<8x1xf32>
    %cst_37 = arith.constant dense<0.000000e+00> : vector<8x16xf32>
    %129 = tpu.matmul %126, %5, %cst_37 {dimension_numbers = #tpu.dot_dimension_numbers<[1], [0], [0], [1], [0, 0, 1, 1], [], []>} : vector<8x16xf32>, vector<16x16xf32>, vector<8x16xf32> -> vector<8x16xf32>
    %c0_38 = arith.constant 0 : index
    %c1 = arith.constant 1 : index
    %130 = vector.load %arg8[%c0_38, %c1] : memref<8x8xf32, #tpu.memory_space<vmem>>, vector<8x1xf32>
    %131 = arith.mulf %130, %128 : vector<8x1xf32>
    %132 = vector.broadcast %131 : vector<8x1xf32> to vector<8x16xf32>
    %133 = arith.cmpf ole, %129, %132 : vector<8x16xf32>
    %134 = arith.extui %133 : vector<8x16xi1> to vector<8x16xi32>
    %cst_39 = arith.constant dense<0> : vector<8xi32>
    %135 = vector.multi_reduction <add>, %134, %cst_39 [1] : vector<8x16xi32> to vector<8xi32>
    %136 = vector.shape_cast %135 : vector<8xi32> to vector<8x1xi32>
    %c15_i32_40 = arith.constant 15 : i32
    %137 = vector.broadcast %c15_i32_40 : i32 to vector<8x1xi32>
    %138 = arith.minsi %136, %137 : vector<8x1xi32>
    %c0_i32_41 = arith.constant 0 : i32
    %139 = vector.broadcast %c0_i32_41 : i32 to vector<8x1xi32>
    %140 = arith.select %81, %138, %139 : vector<8x1xi1>, vector<8x1xi32>
    %c0_i32_42 = arith.constant 0 : i32
    %141 = vector.broadcast %c0_i32_42 : i32 to vector<8x1xi32>
    %142 = arith.cmpi eq, %140, %141 : vector<8x1xi32>
    %143 = arith.andi %81, %142 : vector<8x1xi1>
    %c2_i32 = arith.constant 2 : i32
    %144 = vector.broadcast %c2_i32 : i32 to vector<8x1xi32>
    %145 = arith.select %143, %144, %78 : vector<8x1xi1>, vector<8x1xi32>
    %c0_i32_43 = arith.constant 0 : i32
    %146 = vector.broadcast %c0_i32_43 : i32 to vector<8x1xi32>
    %147 = arith.cmpi ne, %140, %146 : vector<8x1xi32>
    %148 = arith.andi %81, %147 : vector<8x1xi1>
    %c0_44 = arith.constant 0 : index
    %c1_45 = arith.constant 1 : index
    %149 = vector.load %arg9[%c0_44, %c1_45] : memref<8x8xi32, #tpu.memory_space<vmem>>, vector<8x1xi32>
    tpu.vector_store %arg9[%c0_44, %c1_45], %140 {strides = array<i32>} : memref<8x8xi32, #tpu.memory_space<vmem>>, vector<8x1xi32>,
    %150 = vector.broadcast %140 : vector<8x1xi32> to vector<8x16xi32>
    %151 = arith.cmpi eq, %0, %150 : vector<8x16xi32>
    %152 = arith.extui %151 : vector<8x16xi1> to vector<8x16xi32>
    %153 = arith.sitofp %152 : vector<8x16xi32> to vector<8x16xf32>
    %cst_46 = arith.constant dense<0.000000e+00> : vector<8x96xf32>
    %154 = tpu.matmul %153, %6, %cst_46 {dimension_numbers = #tpu.dot_dimension_numbers<[1], [0], [0], [1], [0, 0, 1, 1], [], []>} : vector<8x16xf32>, vector<16x96xf32>, vector<8x96xf32> -> vector<8x96xf32>
    %155 = vector.broadcast %8 : vector<1x96xf32> to vector<8x96xf32>
    %156 = arith.addf %154, %155 : vector<8x96xf32>
    %cst_47 = arith.constant dense<0.000000e+00> : vector<8x96xf32>
    %157 = tpu.matmul %118, %7, %cst_47 {dimension_numbers = #tpu.dot_dimension_numbers<[1], [0], [0], [1], [0, 0, 1, 1], [], []>} : vector<8x32xf32>, vector<32x96xf32>, vector<8x96xf32> -> vector<8x96xf32>
    %158 = vector.broadcast %9 : vector<1x96xf32> to vector<8x96xf32>
    %159 = arith.addf %157, %158 : vector<8x96xf32>
    %160 = vector.extract_strided_slice %156 {offsets = [0, 0], sizes = [8, 32], strides = [1, 1]} : vector<8x96xf32> to vector<8x32xf32>
    %161 = vector.extract_strided_slice %159 {offsets = [0, 0], sizes = [8, 32], strides = [1, 1]} : vector<8x96xf32> to vector<8x32xf32>
    %162 = arith.addf %160, %161 : vector<8x32xf32>
    %163 = arith.negf %162 : vector<8x32xf32>
    %164 = math.exp %163 : vector<8x32xf32>
    %cst_48 = arith.constant 1.000000e+00 : f32
    %165 = vector.broadcast %cst_48 : f32 to vector<8x32xf32>
    %166 = arith.addf %165, %164 : vector<8x32xf32>
    %167 = arith.divf %165, %166 : vector<8x32xf32>
    %168 = vector.extract_strided_slice %156 {offsets = [0, 32], sizes = [8, 32], strides = [1, 1]} : vector<8x96xf32> to vector<8x32xf32>
    %169 = vector.extract_strided_slice %159 {offsets = [0, 32], sizes = [8, 32], strides = [1, 1]} : vector<8x96xf32> to vector<8x32xf32>
    %170 = arith.addf %168, %169 : vector<8x32xf32>
    %171 = arith.negf %170 : vector<8x32xf32>
    %172 = math.exp %171 : vector<8x32xf32>
    %cst_49 = arith.constant 1.000000e+00 : f32
    %173 = vector.broadcast %cst_49 : f32 to vector<8x32xf32>
    %174 = arith.addf %173, %172 : vector<8x32xf32>
    %175 = arith.divf %173, %174 : vector<8x32xf32>
    %176 = vector.extract_strided_slice %156 {offsets = [0, 64], sizes = [8, 32], strides = [1, 1]} : vector<8x96xf32> to vector<8x32xf32>
    %177 = vector.extract_strided_slice %159 {offsets = [0, 64], sizes = [8, 32], strides = [1, 1]} : vector<8x96xf32> to vector<8x32xf32>
    %178 = arith.mulf %167, %177 : vector<8x32xf32>
    %179 = arith.addf %176, %178 : vector<8x32xf32>
    %180 = math.tanh %179 : vector<8x32xf32>
    %cst_50 = arith.constant 1.000000e+00 : f32
    %181 = vector.broadcast %cst_50 : f32 to vector<8x32xf32>
    %182 = arith.subf %181, %175 : vector<8x32xf32>
    %183 = arith.mulf %182, %180 : vector<8x32xf32>
    %184 = arith.mulf %175, %118 : vector<8x32xf32>
    %185 = arith.addf %183, %184 : vector<8x32xf32>
    %cst_51 = arith.constant dense<0.000000e+00> : vector<8x16xf32>
    %186 = tpu.matmul %185, %10, %cst_51 {dimension_numbers = #tpu.dot_dimension_numbers<[1], [0], [0], [1], [0, 0, 1, 1], [], []>} : vector<8x32xf32>, vector<32x16xf32>, vector<8x16xf32> -> vector<8x16xf32>
    %187 = vector.broadcast %11 : vector<1x16xf32> to vector<8x16xf32>
    %188 = arith.addf %186, %187 : vector<8x16xf32>
    %cst_52 = arith.constant dense<0xFF800000> : vector<8xf32>
    %189 = vector.multi_reduction <maximumf>, %188, %cst_52 [1] : vector<8x16xf32> to vector<8xf32>
    %190 = vector.shape_cast %189 : vector<8xf32> to vector<8x1xf32>
    %191 = vector.broadcast %190 : vector<8x1xf32> to vector<8x16xf32>
    %192 = arith.subf %188, %191 : vector<8x16xf32>
    %193 = math.exp %192 : vector<8x16xf32>
    %cst_53 = arith.constant dense<0.000000e+00> : vector<8xf32>
    %194 = vector.multi_reduction <add>, %193, %cst_53 [1] : vector<8x16xf32> to vector<8xf32>
    %195 = vector.shape_cast %194 : vector<8xf32> to vector<8x1xf32>
    %cst_54 = arith.constant dense<0.000000e+00> : vector<8x16xf32>
    %196 = tpu.matmul %193, %5, %cst_54 {dimension_numbers = #tpu.dot_dimension_numbers<[1], [0], [0], [1], [0, 0, 1, 1], [], []>} : vector<8x16xf32>, vector<16x16xf32>, vector<8x16xf32> -> vector<8x16xf32>
    %c0_55 = arith.constant 0 : index
    %c2 = arith.constant 2 : index
    %197 = vector.load %arg8[%c0_55, %c2] : memref<8x8xf32, #tpu.memory_space<vmem>>, vector<8x1xf32>
    %198 = arith.mulf %197, %195 : vector<8x1xf32>
    %199 = vector.broadcast %198 : vector<8x1xf32> to vector<8x16xf32>
    %200 = arith.cmpf ole, %196, %199 : vector<8x16xf32>
    %201 = arith.extui %200 : vector<8x16xi1> to vector<8x16xi32>
    %cst_56 = arith.constant dense<0> : vector<8xi32>
    %202 = vector.multi_reduction <add>, %201, %cst_56 [1] : vector<8x16xi32> to vector<8xi32>
    %203 = vector.shape_cast %202 : vector<8xi32> to vector<8x1xi32>
    %c15_i32_57 = arith.constant 15 : i32
    %204 = vector.broadcast %c15_i32_57 : i32 to vector<8x1xi32>
    %205 = arith.minsi %203, %204 : vector<8x1xi32>
    %c0_i32_58 = arith.constant 0 : i32
    %206 = vector.broadcast %c0_i32_58 : i32 to vector<8x1xi32>
    %207 = arith.select %148, %205, %206 : vector<8x1xi1>, vector<8x1xi32>
    %c0_i32_59 = arith.constant 0 : i32
    %208 = vector.broadcast %c0_i32_59 : i32 to vector<8x1xi32>
    %209 = arith.cmpi eq, %207, %208 : vector<8x1xi32>
    %210 = arith.andi %148, %209 : vector<8x1xi1>
    %c3_i32 = arith.constant 3 : i32
    %211 = vector.broadcast %c3_i32 : i32 to vector<8x1xi32>
    %212 = arith.select %210, %211, %145 : vector<8x1xi1>, vector<8x1xi32>
    %c0_i32_60 = arith.constant 0 : i32
    %213 = vector.broadcast %c0_i32_60 : i32 to vector<8x1xi32>
    %214 = arith.cmpi ne, %207, %213 : vector<8x1xi32>
    %215 = arith.andi %148, %214 : vector<8x1xi1>
    %c0_61 = arith.constant 0 : index
    %c2_62 = arith.constant 2 : index
    %216 = vector.load %arg9[%c0_61, %c2_62] : memref<8x8xi32, #tpu.memory_space<vmem>>, vector<8x1xi32>
    tpu.vector_store %arg9[%c0_61, %c2_62], %207 {strides = array<i32>} : memref<8x8xi32, #tpu.memory_space<vmem>>, vector<8x1xi32>,
    %217 = vector.broadcast %207 : vector<8x1xi32> to vector<8x16xi32>
    %218 = arith.cmpi eq, %0, %217 : vector<8x16xi32>
    %219 = arith.extui %218 : vector<8x16xi1> to vector<8x16xi32>
    %220 = arith.sitofp %219 : vector<8x16xi32> to vector<8x16xf32>
    %cst_63 = arith.constant dense<0.000000e+00> : vector<8x96xf32>
    %221 = tpu.matmul %220, %6, %cst_63 {dimension_numbers = #tpu.dot_dimension_numbers<[1], [0], [0], [1], [0, 0, 1, 1], [], []>} : vector<8x16xf32>, vector<16x96xf32>, vector<8x96xf32> -> vector<8x96xf32>
    %222 = vector.broadcast %8 : vector<1x96xf32> to vector<8x96xf32>
    %223 = arith.addf %221, %222 : vector<8x96xf32>
    %cst_64 = arith.constant dense<0.000000e+00> : vector<8x96xf32>
    %224 = tpu.matmul %185, %7, %cst_64 {dimension_numbers = #tpu.dot_dimension_numbers<[1], [0], [0], [1], [0, 0, 1, 1], [], []>} : vector<8x32xf32>, vector<32x96xf32>, vector<8x96xf32> -> vector<8x96xf32>
    %225 = vector.broadcast %9 : vector<1x96xf32> to vector<8x96xf32>
    %226 = arith.addf %224, %225 : vector<8x96xf32>
    %227 = vector.extract_strided_slice %223 {offsets = [0, 0], sizes = [8, 32], strides = [1, 1]} : vector<8x96xf32> to vector<8x32xf32>
    %228 = vector.extract_strided_slice %226 {offsets = [0, 0], sizes = [8, 32], strides = [1, 1]} : vector<8x96xf32> to vector<8x32xf32>
    %229 = arith.addf %227, %228 : vector<8x32xf32>
    %230 = arith.negf %229 : vector<8x32xf32>
    %231 = math.exp %230 : vector<8x32xf32>
    %cst_65 = arith.constant 1.000000e+00 : f32
    %232 = vector.broadcast %cst_65 : f32 to vector<8x32xf32>
    %233 = arith.addf %232, %231 : vector<8x32xf32>
    %234 = arith.divf %232, %233 : vector<8x32xf32>
    %235 = vector.extract_strided_slice %223 {offsets = [0, 32], sizes = [8, 32], strides = [1, 1]} : vector<8x96xf32> to vector<8x32xf32>
    %236 = vector.extract_strided_slice %226 {offsets = [0, 32], sizes = [8, 32], strides = [1, 1]} : vector<8x96xf32> to vector<8x32xf32>
    %237 = arith.addf %235, %236 : vector<8x32xf32>
    %238 = arith.negf %237 : vector<8x32xf32>
    %239 = math.exp %238 : vector<8x32xf32>
    %cst_66 = arith.constant 1.000000e+00 : f32
    %240 = vector.broadcast %cst_66 : f32 to vector<8x32xf32>
    %241 = arith.addf %240, %239 : vector<8x32xf32>
    %242 = arith.divf %240, %241 : vector<8x32xf32>
    %243 = vector.extract_strided_slice %223 {offsets = [0, 64], sizes = [8, 32], strides = [1, 1]} : vector<8x96xf32> to vector<8x32xf32>
    %244 = vector.extract_strided_slice %226 {offsets = [0, 64], sizes = [8, 32], strides = [1, 1]} : vector<8x96xf32> to vector<8x32xf32>
    %245 = arith.mulf %234, %244 : vector<8x32xf32>
    %246 = arith.addf %243, %245 : vector<8x32xf32>
    %247 = math.tanh %246 : vector<8x32xf32>
    %cst_67 = arith.constant 1.000000e+00 : f32
    %248 = vector.broadcast %cst_67 : f32 to vector<8x32xf32>
    %249 = arith.subf %248, %242 : vector<8x32xf32>
    %250 = arith.mulf %249, %247 : vector<8x32xf32>
    %251 = arith.mulf %242, %185 : vector<8x32xf32>
    %252 = arith.addf %250, %251 : vector<8x32xf32>
    %cst_68 = arith.constant dense<0.000000e+00> : vector<8x16xf32>
    %253 = tpu.matmul %252, %10, %cst_68 {dimension_numbers = #tpu.dot_dimension_numbers<[1], [0], [0], [1], [0, 0, 1, 1], [], []>} : vector<8x32xf32>, vector<32x16xf32>, vector<8x16xf32> -> vector<8x16xf32>
    %254 = vector.broadcast %11 : vector<1x16xf32> to vector<8x16xf32>
    %255 = arith.addf %253, %254 : vector<8x16xf32>
    %cst_69 = arith.constant dense<0xFF800000> : vector<8xf32>
    %256 = vector.multi_reduction <maximumf>, %255, %cst_69 [1] : vector<8x16xf32> to vector<8xf32>
    %257 = vector.shape_cast %256 : vector<8xf32> to vector<8x1xf32>
    %258 = vector.broadcast %257 : vector<8x1xf32> to vector<8x16xf32>
    %259 = arith.subf %255, %258 : vector<8x16xf32>
    %260 = math.exp %259 : vector<8x16xf32>
    %cst_70 = arith.constant dense<0.000000e+00> : vector<8xf32>
    %261 = vector.multi_reduction <add>, %260, %cst_70 [1] : vector<8x16xf32> to vector<8xf32>
    %262 = vector.shape_cast %261 : vector<8xf32> to vector<8x1xf32>
    %cst_71 = arith.constant dense<0.000000e+00> : vector<8x16xf32>
    %263 = tpu.matmul %260, %5, %cst_71 {dimension_numbers = #tpu.dot_dimension_numbers<[1], [0], [0], [1], [0, 0, 1, 1], [], []>} : vector<8x16xf32>, vector<16x16xf32>, vector<8x16xf32> -> vector<8x16xf32>
    %c0_72 = arith.constant 0 : index
    %c3 = arith.constant 3 : index
    %264 = vector.load %arg8[%c0_72, %c3] : memref<8x8xf32, #tpu.memory_space<vmem>>, vector<8x1xf32>
    %265 = arith.mulf %264, %262 : vector<8x1xf32>
    %266 = vector.broadcast %265 : vector<8x1xf32> to vector<8x16xf32>
    %267 = arith.cmpf ole, %263, %266 : vector<8x16xf32>
    %268 = arith.extui %267 : vector<8x16xi1> to vector<8x16xi32>
    %cst_73 = arith.constant dense<0> : vector<8xi32>
    %269 = vector.multi_reduction <add>, %268, %cst_73 [1] : vector<8x16xi32> to vector<8xi32>
    %270 = vector.shape_cast %269 : vector<8xi32> to vector<8x1xi32>
    %c15_i32_74 = arith.constant 15 : i32
    %271 = vector.broadcast %c15_i32_74 : i32 to vector<8x1xi32>
    %272 = arith.minsi %270, %271 : vector<8x1xi32>
    %c0_i32_75 = arith.constant 0 : i32
    %273 = vector.broadcast %c0_i32_75 : i32 to vector<8x1xi32>
    %274 = arith.select %215, %272, %273 : vector<8x1xi1>, vector<8x1xi32>
    %c0_i32_76 = arith.constant 0 : i32
    %275 = vector.broadcast %c0_i32_76 : i32 to vector<8x1xi32>
    %276 = arith.cmpi eq, %274, %275 : vector<8x1xi32>
    %277 = arith.andi %215, %276 : vector<8x1xi1>
    %c4_i32 = arith.constant 4 : i32
    %278 = vector.broadcast %c4_i32 : i32 to vector<8x1xi32>
    %279 = arith.select %277, %278, %212 : vector<8x1xi1>, vector<8x1xi32>
    %c0_i32_77 = arith.constant 0 : i32
    %280 = vector.broadcast %c0_i32_77 : i32 to vector<8x1xi32>
    %281 = arith.cmpi ne, %274, %280 : vector<8x1xi32>
    %282 = arith.andi %215, %281 : vector<8x1xi1>
    %c0_78 = arith.constant 0 : index
    %c3_79 = arith.constant 3 : index
    %283 = vector.load %arg9[%c0_78, %c3_79] : memref<8x8xi32, #tpu.memory_space<vmem>>, vector<8x1xi32>
    tpu.vector_store %arg9[%c0_78, %c3_79], %274 {strides = array<i32>} : memref<8x8xi32, #tpu.memory_space<vmem>>, vector<8x1xi32>,
    %284 = vector.broadcast %274 : vector<8x1xi32> to vector<8x16xi32>
    %285 = arith.cmpi eq, %0, %284 : vector<8x16xi32>
    %286 = arith.extui %285 : vector<8x16xi1> to vector<8x16xi32>
    %287 = arith.sitofp %286 : vector<8x16xi32> to vector<8x16xf32>
    %cst_80 = arith.constant dense<0.000000e+00> : vector<8x96xf32>
    %288 = tpu.matmul %287, %6, %cst_80 {dimension_numbers = #tpu.dot_dimension_numbers<[1], [0], [0], [1], [0, 0, 1, 1], [], []>} : vector<8x16xf32>, vector<16x96xf32>, vector<8x96xf32> -> vector<8x96xf32>
    %289 = vector.broadcast %8 : vector<1x96xf32> to vector<8x96xf32>
    %290 = arith.addf %288, %289 : vector<8x96xf32>
    %cst_81 = arith.constant dense<0.000000e+00> : vector<8x96xf32>
    %291 = tpu.matmul %252, %7, %cst_81 {dimension_numbers = #tpu.dot_dimension_numbers<[1], [0], [0], [1], [0, 0, 1, 1], [], []>} : vector<8x32xf32>, vector<32x96xf32>, vector<8x96xf32> -> vector<8x96xf32>
    %292 = vector.broadcast %9 : vector<1x96xf32> to vector<8x96xf32>
    %293 = arith.addf %291, %292 : vector<8x96xf32>
    %294 = vector.extract_strided_slice %290 {offsets = [0, 0], sizes = [8, 32], strides = [1, 1]} : vector<8x96xf32> to vector<8x32xf32>
    %295 = vector.extract_strided_slice %293 {offsets = [0, 0], sizes = [8, 32], strides = [1, 1]} : vector<8x96xf32> to vector<8x32xf32>
    %296 = arith.addf %294, %295 : vector<8x32xf32>
    %297 = arith.negf %296 : vector<8x32xf32>
    %298 = math.exp %297 : vector<8x32xf32>
    %cst_82 = arith.constant 1.000000e+00 : f32
    %299 = vector.broadcast %cst_82 : f32 to vector<8x32xf32>
    %300 = arith.addf %299, %298 : vector<8x32xf32>
    %301 = arith.divf %299, %300 : vector<8x32xf32>
    %302 = vector.extract_strided_slice %290 {offsets = [0, 32], sizes = [8, 32], strides = [1, 1]} : vector<8x96xf32> to vector<8x32xf32>
    %303 = vector.extract_strided_slice %293 {offsets = [0, 32], sizes = [8, 32], strides = [1, 1]} : vector<8x96xf32> to vector<8x32xf32>
    %304 = arith.addf %302, %303 : vector<8x32xf32>
    %305 = arith.negf %304 : vector<8x32xf32>
    %306 = math.exp %305 : vector<8x32xf32>
    %cst_83 = arith.constant 1.000000e+00 : f32
    %307 = vector.broadcast %cst_83 : f32 to vector<8x32xf32>
    %308 = arith.addf %307, %306 : vector<8x32xf32>
    %309 = arith.divf %307, %308 : vector<8x32xf32>
    %310 = vector.extract_strided_slice %290 {offsets = [0, 64], sizes = [8, 32], strides = [1, 1]} : vector<8x96xf32> to vector<8x32xf32>
    %311 = vector.extract_strided_slice %293 {offsets = [0, 64], sizes = [8, 32], strides = [1, 1]} : vector<8x96xf32> to vector<8x32xf32>
    %312 = arith.mulf %301, %311 : vector<8x32xf32>
    %313 = arith.addf %310, %312 : vector<8x32xf32>
    %314 = math.tanh %313 : vector<8x32xf32>
    %cst_84 = arith.constant 1.000000e+00 : f32
    %315 = vector.broadcast %cst_84 : f32 to vector<8x32xf32>
    %316 = arith.subf %315, %309 : vector<8x32xf32>
    %317 = arith.mulf %316, %314 : vector<8x32xf32>
    %318 = arith.mulf %309, %252 : vector<8x32xf32>
    %319 = arith.addf %317, %318 : vector<8x32xf32>
    %cst_85 = arith.constant dense<0.000000e+00> : vector<8x16xf32>
    %320 = tpu.matmul %319, %10, %cst_85 {dimension_numbers = #tpu.dot_dimension_numbers<[1], [0], [0], [1], [0, 0, 1, 1], [], []>} : vector<8x32xf32>, vector<32x16xf32>, vector<8x16xf32> -> vector<8x16xf32>
    %321 = vector.broadcast %11 : vector<1x16xf32> to vector<8x16xf32>
    %322 = arith.addf %320, %321 : vector<8x16xf32>
    %cst_86 = arith.constant dense<0xFF800000> : vector<8xf32>
    %323 = vector.multi_reduction <maximumf>, %322, %cst_86 [1] : vector<8x16xf32> to vector<8xf32>
    %324 = vector.shape_cast %323 : vector<8xf32> to vector<8x1xf32>
    %325 = vector.broadcast %324 : vector<8x1xf32> to vector<8x16xf32>
    %326 = arith.subf %322, %325 : vector<8x16xf32>
    %327 = math.exp %326 : vector<8x16xf32>
    %cst_87 = arith.constant dense<0.000000e+00> : vector<8xf32>
    %328 = vector.multi_reduction <add>, %327, %cst_87 [1] : vector<8x16xf32> to vector<8xf32>
    %329 = vector.shape_cast %328 : vector<8xf32> to vector<8x1xf32>
    %cst_88 = arith.constant dense<0.000000e+00> : vector<8x16xf32>
    %330 = tpu.matmul %327, %5, %cst_88 {dimension_numbers = #tpu.dot_dimension_numbers<[1], [0], [0], [1], [0, 0, 1, 1], [], []>} : vector<8x16xf32>, vector<16x16xf32>, vector<8x16xf32> -> vector<8x16xf32>
    %c0_89 = arith.constant 0 : index
    %c4 = arith.constant 4 : index
    %331 = vector.load %arg8[%c0_89, %c4] : memref<8x8xf32, #tpu.memory_space<vmem>>, vector<8x1xf32>
    %332 = arith.mulf %331, %329 : vector<8x1xf32>
    %333 = vector.broadcast %332 : vector<8x1xf32> to vector<8x16xf32>
    %334 = arith.cmpf ole, %330, %333 : vector<8x16xf32>
    %335 = arith.extui %334 : vector<8x16xi1> to vector<8x16xi32>
    %cst_90 = arith.constant dense<0> : vector<8xi32>
    %336 = vector.multi_reduction <add>, %335, %cst_90 [1] : vector<8x16xi32> to vector<8xi32>
    %337 = vector.shape_cast %336 : vector<8xi32> to vector<8x1xi32>
    %c15_i32_91 = arith.constant 15 : i32
    %338 = vector.broadcast %c15_i32_91 : i32 to vector<8x1xi32>
    %339 = arith.minsi %337, %338 : vector<8x1xi32>
    %c0_i32_92 = arith.constant 0 : i32
    %340 = vector.broadcast %c0_i32_92 : i32 to vector<8x1xi32>
    %341 = arith.select %282, %339, %340 : vector<8x1xi1>, vector<8x1xi32>
    %c0_i32_93 = arith.constant 0 : i32
    %342 = vector.broadcast %c0_i32_93 : i32 to vector<8x1xi32>
    %343 = arith.cmpi eq, %341, %342 : vector<8x1xi32>
    %344 = arith.andi %282, %343 : vector<8x1xi1>
    %c5_i32 = arith.constant 5 : i32
    %345 = vector.broadcast %c5_i32 : i32 to vector<8x1xi32>
    %346 = arith.select %344, %345, %279 : vector<8x1xi1>, vector<8x1xi32>
    %c0_i32_94 = arith.constant 0 : i32
    %347 = vector.broadcast %c0_i32_94 : i32 to vector<8x1xi32>
    %348 = arith.cmpi ne, %341, %347 : vector<8x1xi32>
    %349 = arith.andi %282, %348 : vector<8x1xi1>
    %c0_95 = arith.constant 0 : index
    %c4_96 = arith.constant 4 : index
    %350 = vector.load %arg9[%c0_95, %c4_96] : memref<8x8xi32, #tpu.memory_space<vmem>>, vector<8x1xi32>
    tpu.vector_store %arg9[%c0_95, %c4_96], %341 {strides = array<i32>} : memref<8x8xi32, #tpu.memory_space<vmem>>, vector<8x1xi32>,
    %351 = vector.broadcast %341 : vector<8x1xi32> to vector<8x16xi32>
    %352 = arith.cmpi eq, %0, %351 : vector<8x16xi32>
    %353 = arith.extui %352 : vector<8x16xi1> to vector<8x16xi32>
    %354 = arith.sitofp %353 : vector<8x16xi32> to vector<8x16xf32>
    %cst_97 = arith.constant dense<0.000000e+00> : vector<8x96xf32>
    %355 = tpu.matmul %354, %6, %cst_97 {dimension_numbers = #tpu.dot_dimension_numbers<[1], [0], [0], [1], [0, 0, 1, 1], [], []>} : vector<8x16xf32>, vector<16x96xf32>, vector<8x96xf32> -> vector<8x96xf32>
    %356 = vector.broadcast %8 : vector<1x96xf32> to vector<8x96xf32>
    %357 = arith.addf %355, %356 : vector<8x96xf32>
    %cst_98 = arith.constant dense<0.000000e+00> : vector<8x96xf32>
    %358 = tpu.matmul %319, %7, %cst_98 {dimension_numbers = #tpu.dot_dimension_numbers<[1], [0], [0], [1], [0, 0, 1, 1], [], []>} : vector<8x32xf32>, vector<32x96xf32>, vector<8x96xf32> -> vector<8x96xf32>
    %359 = vector.broadcast %9 : vector<1x96xf32> to vector<8x96xf32>
    %360 = arith.addf %358, %359 : vector<8x96xf32>
    %361 = vector.extract_strided_slice %357 {offsets = [0, 0], sizes = [8, 32], strides = [1, 1]} : vector<8x96xf32> to vector<8x32xf32>
    %362 = vector.extract_strided_slice %360 {offsets = [0, 0], sizes = [8, 32], strides = [1, 1]} : vector<8x96xf32> to vector<8x32xf32>
    %363 = arith.addf %361, %362 : vector<8x32xf32>
    %364 = arith.negf %363 : vector<8x32xf32>
    %365 = math.exp %364 : vector<8x32xf32>
    %cst_99 = arith.constant 1.000000e+00 : f32
    %366 = vector.broadcast %cst_99 : f32 to vector<8x32xf32>
    %367 = arith.addf %366, %365 : vector<8x32xf32>
    %368 = arith.divf %366, %367 : vector<8x32xf32>
    %369 = vector.extract_strided_slice %357 {offsets = [0, 32], sizes = [8, 32], strides = [1, 1]} : vector<8x96xf32> to vector<8x32xf32>
    %370 = vector.extract_strided_slice %360 {offsets = [0, 32], sizes = [8, 32], strides = [1, 1]} : vector<8x96xf32> to vector<8x32xf32>
    %371 = arith.addf %369, %370 : vector<8x32xf32>
    %372 = arith.negf %371 : vector<8x32xf32>
    %373 = math.exp %372 : vector<8x32xf32>
    %cst_100 = arith.constant 1.000000e+00 : f32
    %374 = vector.broadcast %cst_100 : f32 to vector<8x32xf32>
    %375 = arith.addf %374, %373 : vector<8x32xf32>
    %376 = arith.divf %374, %375 : vector<8x32xf32>
    %377 = vector.extract_strided_slice %357 {offsets = [0, 64], sizes = [8, 32], strides = [1, 1]} : vector<8x96xf32> to vector<8x32xf32>
    %378 = vector.extract_strided_slice %360 {offsets = [0, 64], sizes = [8, 32], strides = [1, 1]} : vector<8x96xf32> to vector<8x32xf32>
    %379 = arith.mulf %368, %378 : vector<8x32xf32>
    %380 = arith.addf %377, %379 : vector<8x32xf32>
    %381 = math.tanh %380 : vector<8x32xf32>
    %cst_101 = arith.constant 1.000000e+00 : f32
    %382 = vector.broadcast %cst_101 : f32 to vector<8x32xf32>
    %383 = arith.subf %382, %376 : vector<8x32xf32>
    %384 = arith.mulf %383, %381 : vector<8x32xf32>
    %385 = arith.mulf %376, %319 : vector<8x32xf32>
    %386 = arith.addf %384, %385 : vector<8x32xf32>
    %cst_102 = arith.constant dense<0.000000e+00> : vector<8x16xf32>
    %387 = tpu.matmul %386, %10, %cst_102 {dimension_numbers = #tpu.dot_dimension_numbers<[1], [0], [0], [1], [0, 0, 1, 1], [], []>} : vector<8x32xf32>, vector<32x16xf32>, vector<8x16xf32> -> vector<8x16xf32>
    %388 = vector.broadcast %11 : vector<1x16xf32> to vector<8x16xf32>
    %389 = arith.addf %387, %388 : vector<8x16xf32>
    %cst_103 = arith.constant dense<0xFF800000> : vector<8xf32>
    %390 = vector.multi_reduction <maximumf>, %389, %cst_103 [1] : vector<8x16xf32> to vector<8xf32>
    %391 = vector.shape_cast %390 : vector<8xf32> to vector<8x1xf32>
    %392 = vector.broadcast %391 : vector<8x1xf32> to vector<8x16xf32>
    %393 = arith.subf %389, %392 : vector<8x16xf32>
    %394 = math.exp %393 : vector<8x16xf32>
    %cst_104 = arith.constant dense<0.000000e+00> : vector<8xf32>
    %395 = vector.multi_reduction <add>, %394, %cst_104 [1] : vector<8x16xf32> to vector<8xf32>
    %396 = vector.shape_cast %395 : vector<8xf32> to vector<8x1xf32>
    %cst_105 = arith.constant dense<0.000000e+00> : vector<8x16xf32>
    %397 = tpu.matmul %394, %5, %cst_105 {dimension_numbers = #tpu.dot_dimension_numbers<[1], [0], [0], [1], [0, 0, 1, 1], [], []>} : vector<8x16xf32>, vector<16x16xf32>, vector<8x16xf32> -> vector<8x16xf32>
    %c0_106 = arith.constant 0 : index
    %c5 = arith.constant 5 : index
    %398 = vector.load %arg8[%c0_106, %c5] : memref<8x8xf32, #tpu.memory_space<vmem>>, vector<8x1xf32>
    %399 = arith.mulf %398, %396 : vector<8x1xf32>
    %400 = vector.broadcast %399 : vector<8x1xf32> to vector<8x16xf32>
    %401 = arith.cmpf ole, %397, %400 : vector<8x16xf32>
    %402 = arith.extui %401 : vector<8x16xi1> to vector<8x16xi32>
    %cst_107 = arith.constant dense<0> : vector<8xi32>
    %403 = vector.multi_reduction <add>, %402, %cst_107 [1] : vector<8x16xi32> to vector<8xi32>
    %404 = vector.shape_cast %403 : vector<8xi32> to vector<8x1xi32>
    %c15_i32_108 = arith.constant 15 : i32
    %405 = vector.broadcast %c15_i32_108 : i32 to vector<8x1xi32>
    %406 = arith.minsi %404, %405 : vector<8x1xi32>
    %c0_i32_109 = arith.constant 0 : i32
    %407 = vector.broadcast %c0_i32_109 : i32 to vector<8x1xi32>
    %408 = arith.select %349, %406, %407 : vector<8x1xi1>, vector<8x1xi32>
    %c0_i32_110 = arith.constant 0 : i32
    %409 = vector.broadcast %c0_i32_110 : i32 to vector<8x1xi32>
    %410 = arith.cmpi eq, %408, %409 : vector<8x1xi32>
    %411 = arith.andi %349, %410 : vector<8x1xi1>
    %c6_i32 = arith.constant 6 : i32
    %412 = vector.broadcast %c6_i32 : i32 to vector<8x1xi32>
    %413 = arith.select %411, %412, %346 : vector<8x1xi1>, vector<8x1xi32>
    %c0_i32_111 = arith.constant 0 : i32
    %414 = vector.broadcast %c0_i32_111 : i32 to vector<8x1xi32>
    %415 = arith.cmpi ne, %408, %414 : vector<8x1xi32>
    %416 = arith.andi %349, %415 : vector<8x1xi1>
    %c0_112 = arith.constant 0 : index
    %c5_113 = arith.constant 5 : index
    %417 = vector.load %arg9[%c0_112, %c5_113] : memref<8x8xi32, #tpu.memory_space<vmem>>, vector<8x1xi32>
    tpu.vector_store %arg9[%c0_112, %c5_113], %408 {strides = array<i32>} : memref<8x8xi32, #tpu.memory_space<vmem>>, vector<8x1xi32>,
    %418 = vector.broadcast %408 : vector<8x1xi32> to vector<8x16xi32>
    %419 = arith.cmpi eq, %0, %418 : vector<8x16xi32>
    %420 = arith.extui %419 : vector<8x16xi1> to vector<8x16xi32>
    %421 = arith.sitofp %420 : vector<8x16xi32> to vector<8x16xf32>
    %cst_114 = arith.constant dense<0.000000e+00> : vector<8x96xf32>
    %422 = tpu.matmul %421, %6, %cst_114 {dimension_numbers = #tpu.dot_dimension_numbers<[1], [0], [0], [1], [0, 0, 1, 1], [], []>} : vector<8x16xf32>, vector<16x96xf32>, vector<8x96xf32> -> vector<8x96xf32>
    %423 = vector.broadcast %8 : vector<1x96xf32> to vector<8x96xf32>
    %424 = arith.addf %422, %423 : vector<8x96xf32>
    %cst_115 = arith.constant dense<0.000000e+00> : vector<8x96xf32>
    %425 = tpu.matmul %386, %7, %cst_115 {dimension_numbers = #tpu.dot_dimension_numbers<[1], [0], [0], [1], [0, 0, 1, 1], [], []>} : vector<8x32xf32>, vector<32x96xf32>, vector<8x96xf32> -> vector<8x96xf32>
    %426 = vector.broadcast %9 : vector<1x96xf32> to vector<8x96xf32>
    %427 = arith.addf %425, %426 : vector<8x96xf32>
    %428 = vector.extract_strided_slice %424 {offsets = [0, 0], sizes = [8, 32], strides = [1, 1]} : vector<8x96xf32> to vector<8x32xf32>
    %429 = vector.extract_strided_slice %427 {offsets = [0, 0], sizes = [8, 32], strides = [1, 1]} : vector<8x96xf32> to vector<8x32xf32>
    %430 = arith.addf %428, %429 : vector<8x32xf32>
    %431 = arith.negf %430 : vector<8x32xf32>
    %432 = math.exp %431 : vector<8x32xf32>
    %cst_116 = arith.constant 1.000000e+00 : f32
    %433 = vector.broadcast %cst_116 : f32 to vector<8x32xf32>
    %434 = arith.addf %433, %432 : vector<8x32xf32>
    %435 = arith.divf %433, %434 : vector<8x32xf32>
    %436 = vector.extract_strided_slice %424 {offsets = [0, 32], sizes = [8, 32], strides = [1, 1]} : vector<8x96xf32> to vector<8x32xf32>
    %437 = vector.extract_strided_slice %427 {offsets = [0, 32], sizes = [8, 32], strides = [1, 1]} : vector<8x96xf32> to vector<8x32xf32>
    %438 = arith.addf %436, %437 : vector<8x32xf32>
    %439 = arith.negf %438 : vector<8x32xf32>
    %440 = math.exp %439 : vector<8x32xf32>
    %cst_117 = arith.constant 1.000000e+00 : f32
    %441 = vector.broadcast %cst_117 : f32 to vector<8x32xf32>
    %442 = arith.addf %441, %440 : vector<8x32xf32>
    %443 = arith.divf %441, %442 : vector<8x32xf32>
    %444 = vector.extract_strided_slice %424 {offsets = [0, 64], sizes = [8, 32], strides = [1, 1]} : vector<8x96xf32> to vector<8x32xf32>
    %445 = vector.extract_strided_slice %427 {offsets = [0, 64], sizes = [8, 32], strides = [1, 1]} : vector<8x96xf32> to vector<8x32xf32>
    %446 = arith.mulf %435, %445 : vector<8x32xf32>
    %447 = arith.addf %444, %446 : vector<8x32xf32>
    %448 = math.tanh %447 : vector<8x32xf32>
    %cst_118 = arith.constant 1.000000e+00 : f32
    %449 = vector.broadcast %cst_118 : f32 to vector<8x32xf32>
    %450 = arith.subf %449, %443 : vector<8x32xf32>
    %451 = arith.mulf %450, %448 : vector<8x32xf32>
    %452 = arith.mulf %443, %386 : vector<8x32xf32>
    %453 = arith.addf %451, %452 : vector<8x32xf32>
    %cst_119 = arith.constant dense<0.000000e+00> : vector<8x16xf32>
    %454 = tpu.matmul %453, %10, %cst_119 {dimension_numbers = #tpu.dot_dimension_numbers<[1], [0], [0], [1], [0, 0, 1, 1], [], []>} : vector<8x32xf32>, vector<32x16xf32>, vector<8x16xf32> -> vector<8x16xf32>
    %455 = vector.broadcast %11 : vector<1x16xf32> to vector<8x16xf32>
    %456 = arith.addf %454, %455 : vector<8x16xf32>
    %cst_120 = arith.constant dense<0xFF800000> : vector<8xf32>
    %457 = vector.multi_reduction <maximumf>, %456, %cst_120 [1] : vector<8x16xf32> to vector<8xf32>
    %458 = vector.shape_cast %457 : vector<8xf32> to vector<8x1xf32>
    %459 = vector.broadcast %458 : vector<8x1xf32> to vector<8x16xf32>
    %460 = arith.subf %456, %459 : vector<8x16xf32>
    %461 = math.exp %460 : vector<8x16xf32>
    %cst_121 = arith.constant dense<0.000000e+00> : vector<8xf32>
    %462 = vector.multi_reduction <add>, %461, %cst_121 [1] : vector<8x16xf32> to vector<8xf32>
    %463 = vector.shape_cast %462 : vector<8xf32> to vector<8x1xf32>
    %cst_122 = arith.constant dense<0.000000e+00> : vector<8x16xf32>
    %464 = tpu.matmul %461, %5, %cst_122 {dimension_numbers = #tpu.dot_dimension_numbers<[1], [0], [0], [1], [0, 0, 1, 1], [], []>} : vector<8x16xf32>, vector<16x16xf32>, vector<8x16xf32> -> vector<8x16xf32>
    %c0_123 = arith.constant 0 : index
    %c6 = arith.constant 6 : index
    %465 = vector.load %arg8[%c0_123, %c6] : memref<8x8xf32, #tpu.memory_space<vmem>>, vector<8x1xf32>
    %466 = arith.mulf %465, %463 : vector<8x1xf32>
    %467 = vector.broadcast %466 : vector<8x1xf32> to vector<8x16xf32>
    %468 = arith.cmpf ole, %464, %467 : vector<8x16xf32>
    %469 = arith.extui %468 : vector<8x16xi1> to vector<8x16xi32>
    %cst_124 = arith.constant dense<0> : vector<8xi32>
    %470 = vector.multi_reduction <add>, %469, %cst_124 [1] : vector<8x16xi32> to vector<8xi32>
    %471 = vector.shape_cast %470 : vector<8xi32> to vector<8x1xi32>
    %c15_i32_125 = arith.constant 15 : i32
    %472 = vector.broadcast %c15_i32_125 : i32 to vector<8x1xi32>
    %473 = arith.minsi %471, %472 : vector<8x1xi32>
    %c0_i32_126 = arith.constant 0 : i32
    %474 = vector.broadcast %c0_i32_126 : i32 to vector<8x1xi32>
    %475 = arith.select %416, %473, %474 : vector<8x1xi1>, vector<8x1xi32>
    %c0_i32_127 = arith.constant 0 : i32
    %476 = vector.broadcast %c0_i32_127 : i32 to vector<8x1xi32>
    %477 = arith.cmpi eq, %475, %476 : vector<8x1xi32>
    %478 = arith.andi %416, %477 : vector<8x1xi1>
    %c7_i32 = arith.constant 7 : i32
    %479 = vector.broadcast %c7_i32 : i32 to vector<8x1xi32>
    %480 = arith.select %478, %479, %413 : vector<8x1xi1>, vector<8x1xi32>
    %c0_i32_128 = arith.constant 0 : i32
    %481 = vector.broadcast %c0_i32_128 : i32 to vector<8x1xi32>
    %482 = arith.cmpi ne, %475, %481 : vector<8x1xi32>
    %483 = arith.andi %416, %482 : vector<8x1xi1>
    %c0_129 = arith.constant 0 : index
    %c6_130 = arith.constant 6 : index
    %484 = vector.load %arg9[%c0_129, %c6_130] : memref<8x8xi32, #tpu.memory_space<vmem>>, vector<8x1xi32>
    tpu.vector_store %arg9[%c0_129, %c6_130], %475 {strides = array<i32>} : memref<8x8xi32, #tpu.memory_space<vmem>>, vector<8x1xi32>,
    %485 = vector.broadcast %475 : vector<8x1xi32> to vector<8x16xi32>
    %486 = arith.cmpi eq, %0, %485 : vector<8x16xi32>
    %487 = arith.extui %486 : vector<8x16xi1> to vector<8x16xi32>
    %488 = arith.sitofp %487 : vector<8x16xi32> to vector<8x16xf32>
    %cst_131 = arith.constant dense<0.000000e+00> : vector<8x96xf32>
    %489 = tpu.matmul %488, %6, %cst_131 {dimension_numbers = #tpu.dot_dimension_numbers<[1], [0], [0], [1], [0, 0, 1, 1], [], []>} : vector<8x16xf32>, vector<16x96xf32>, vector<8x96xf32> -> vector<8x96xf32>
    %490 = vector.broadcast %8 : vector<1x96xf32> to vector<8x96xf32>
    %491 = arith.addf %489, %490 : vector<8x96xf32>
    %cst_132 = arith.constant dense<0.000000e+00> : vector<8x96xf32>
    %492 = tpu.matmul %453, %7, %cst_132 {dimension_numbers = #tpu.dot_dimension_numbers<[1], [0], [0], [1], [0, 0, 1, 1], [], []>} : vector<8x32xf32>, vector<32x96xf32>, vector<8x96xf32> -> vector<8x96xf32>
    %493 = vector.broadcast %9 : vector<1x96xf32> to vector<8x96xf32>
    %494 = arith.addf %492, %493 : vector<8x96xf32>
    %495 = vector.extract_strided_slice %491 {offsets = [0, 0], sizes = [8, 32], strides = [1, 1]} : vector<8x96xf32> to vector<8x32xf32>
    %496 = vector.extract_strided_slice %494 {offsets = [0, 0], sizes = [8, 32], strides = [1, 1]} : vector<8x96xf32> to vector<8x32xf32>
    %497 = arith.addf %495, %496 : vector<8x32xf32>
    %498 = arith.negf %497 : vector<8x32xf32>
    %499 = math.exp %498 : vector<8x32xf32>
    %cst_133 = arith.constant 1.000000e+00 : f32
    %500 = vector.broadcast %cst_133 : f32 to vector<8x32xf32>
    %501 = arith.addf %500, %499 : vector<8x32xf32>
    %502 = arith.divf %500, %501 : vector<8x32xf32>
    %503 = vector.extract_strided_slice %491 {offsets = [0, 32], sizes = [8, 32], strides = [1, 1]} : vector<8x96xf32> to vector<8x32xf32>
    %504 = vector.extract_strided_slice %494 {offsets = [0, 32], sizes = [8, 32], strides = [1, 1]} : vector<8x96xf32> to vector<8x32xf32>
    %505 = arith.addf %503, %504 : vector<8x32xf32>
    %506 = arith.negf %505 : vector<8x32xf32>
    %507 = math.exp %506 : vector<8x32xf32>
    %cst_134 = arith.constant 1.000000e+00 : f32
    %508 = vector.broadcast %cst_134 : f32 to vector<8x32xf32>
    %509 = arith.addf %508, %507 : vector<8x32xf32>
    %510 = arith.divf %508, %509 : vector<8x32xf32>
    %511 = vector.extract_strided_slice %491 {offsets = [0, 64], sizes = [8, 32], strides = [1, 1]} : vector<8x96xf32> to vector<8x32xf32>
    %512 = vector.extract_strided_slice %494 {offsets = [0, 64], sizes = [8, 32], strides = [1, 1]} : vector<8x96xf32> to vector<8x32xf32>
    %513 = arith.mulf %502, %512 : vector<8x32xf32>
    %514 = arith.addf %511, %513 : vector<8x32xf32>
    %515 = math.tanh %514 : vector<8x32xf32>
    %cst_135 = arith.constant 1.000000e+00 : f32
    %516 = vector.broadcast %cst_135 : f32 to vector<8x32xf32>
    %517 = arith.subf %516, %510 : vector<8x32xf32>
    %518 = arith.mulf %517, %515 : vector<8x32xf32>
    %519 = arith.mulf %510, %453 : vector<8x32xf32>
    %520 = arith.addf %518, %519 : vector<8x32xf32>
    %cst_136 = arith.constant dense<0.000000e+00> : vector<8x16xf32>
    %521 = tpu.matmul %520, %10, %cst_136 {dimension_numbers = #tpu.dot_dimension_numbers<[1], [0], [0], [1], [0, 0, 1, 1], [], []>} : vector<8x32xf32>, vector<32x16xf32>, vector<8x16xf32> -> vector<8x16xf32>
    %522 = vector.broadcast %11 : vector<1x16xf32> to vector<8x16xf32>
    %523 = arith.addf %521, %522 : vector<8x16xf32>
    %cst_137 = arith.constant dense<0xFF800000> : vector<8xf32>
    %524 = vector.multi_reduction <maximumf>, %523, %cst_137 [1] : vector<8x16xf32> to vector<8xf32>
    %525 = vector.shape_cast %524 : vector<8xf32> to vector<8x1xf32>
    %526 = vector.broadcast %525 : vector<8x1xf32> to vector<8x16xf32>
    %527 = arith.subf %523, %526 : vector<8x16xf32>
    %528 = math.exp %527 : vector<8x16xf32>
    %cst_138 = arith.constant dense<0.000000e+00> : vector<8xf32>
    %529 = vector.multi_reduction <add>, %528, %cst_138 [1] : vector<8x16xf32> to vector<8xf32>
    %530 = vector.shape_cast %529 : vector<8xf32> to vector<8x1xf32>
    %cst_139 = arith.constant dense<0.000000e+00> : vector<8x16xf32>
    %531 = tpu.matmul %528, %5, %cst_139 {dimension_numbers = #tpu.dot_dimension_numbers<[1], [0], [0], [1], [0, 0, 1, 1], [], []>} : vector<8x16xf32>, vector<16x16xf32>, vector<8x16xf32> -> vector<8x16xf32>
    %c0_140 = arith.constant 0 : index
    %c7 = arith.constant 7 : index
    %532 = vector.load %arg8[%c0_140, %c7] : memref<8x8xf32, #tpu.memory_space<vmem>>, vector<8x1xf32>
    %533 = arith.mulf %532, %530 : vector<8x1xf32>
    %534 = vector.broadcast %533 : vector<8x1xf32> to vector<8x16xf32>
    %535 = arith.cmpf ole, %531, %534 : vector<8x16xf32>
    %536 = arith.extui %535 : vector<8x16xi1> to vector<8x16xi32>
    %cst_141 = arith.constant dense<0> : vector<8xi32>
    %537 = vector.multi_reduction <add>, %536, %cst_141 [1] : vector<8x16xi32> to vector<8xi32>
    %538 = vector.shape_cast %537 : vector<8xi32> to vector<8x1xi32>
    %c15_i32_142 = arith.constant 15 : i32
    %539 = vector.broadcast %c15_i32_142 : i32 to vector<8x1xi32>
    %540 = arith.minsi %538, %539 : vector<8x1xi32>
    %c0_i32_143 = arith.constant 0 : i32
    %541 = vector.broadcast %c0_i32_143 : i32 to vector<8x1xi32>
    %542 = arith.select %483, %540, %541 : vector<8x1xi1>, vector<8x1xi32>
    %c0_i32_144 = arith.constant 0 : i32
    %543 = vector.broadcast %c0_i32_144 : i32 to vector<8x1xi32>
    %544 = arith.cmpi eq, %542, %543 : vector<8x1xi32>
    %545 = arith.andi %483, %544 : vector<8x1xi1>
    %c8_i32_145 = arith.constant 8 : i32
    %546 = vector.broadcast %c8_i32_145 : i32 to vector<8x1xi32>
    %547 = arith.select %545, %546, %480 : vector<8x1xi1>, vector<8x1xi32>
    %c0_146 = arith.constant 0 : index
    %c7_147 = arith.constant 7 : index
    %548 = vector.load %arg9[%c0_146, %c7_147] : memref<8x8xi32, #tpu.memory_space<vmem>>, vector<8x1xi32>
    tpu.vector_store %arg9[%c0_146, %c7_147], %542 {strides = array<i32>} : memref<8x8xi32, #tpu.memory_space<vmem>>, vector<8x1xi32>,
    %c0_148 = arith.constant 0 : index
    %c0_149 = arith.constant 0 : index
    %549 = vector.load %arg10[%c0_148, %c0_149] : memref<8x1xi32, #tpu.memory_space<vmem>>, vector<8x1xi32>
    tpu.vector_store %arg10[%c0_148, %c0_149], %547 {strides = array<i32>} : memref<8x1xi32, #tpu.memory_space<vmem>>, vector<8x1xi32>,
    return
  }
  func.func @transform_0(%arg0: i32) -> (i32, i32) {
    %c0_i32 = arith.constant 0 : i32
    %c0_i32_0 = arith.constant 0 : i32
    return %arg0, %c0_i32 : i32, i32
  }
  func.func @transform_1(%arg0: i32) -> (i32, i32) {
    %c0_i32 = arith.constant 0 : i32
    %c0_i32_0 = arith.constant 0 : i32
    %c0_i32_1 = arith.constant 0 : i32
    return %c0_i32, %c0_i32_0 : i32, i32
  }
  func.func @transform_2(%arg0: i32) -> (i32, i32) {
    %c0_i32 = arith.constant 0 : i32
    %c0_i32_0 = arith.constant 0 : i32
    %c0_i32_1 = arith.constant 0 : i32
    return %c0_i32, %c0_i32_0 : i32, i32
  }
  func.func @transform_3(%arg0: i32) -> (i32, i32) {
    %c0_i32 = arith.constant 0 : i32
    %c0_i32_0 = arith.constant 0 : i32
    %c0_i32_1 = arith.constant 0 : i32
    return %c0_i32, %c0_i32_0 : i32, i32
  }
  func.func @transform_4(%arg0: i32) -> (i32, i32) {
    %c0_i32 = arith.constant 0 : i32
    %c0_i32_0 = arith.constant 0 : i32
    %c0_i32_1 = arith.constant 0 : i32
    return %c0_i32, %c0_i32_0 : i32, i32
  }
  func.func @transform_5(%arg0: i32) -> (i32, i32) {
    %c0_i32 = arith.constant 0 : i32
    %c0_i32_0 = arith.constant 0 : i32
    %c0_i32_1 = arith.constant 0 : i32
    return %c0_i32, %c0_i32_0 : i32, i32
  }
  func.func @transform_6(%arg0: i32) -> (i32, i32) {
    %c0_i32 = arith.constant 0 : i32
    %c0_i32_0 = arith.constant 0 : i32
    %c0_i32_1 = arith.constant 0 : i32
    return %c0_i32, %c0_i32_0 : i32, i32
  }
  func.func @transform_7(%arg0: i32) -> (i32, i32) {
    %c0_i32 = arith.constant 0 : i32
    %c0_i32_0 = arith.constant 0 : i32
    return %arg0, %c0_i32 : i32, i32
  }
  func.func @transform_8(%arg0: i32) -> (i32, i32) {
    %c0_i32 = arith.constant 0 : i32
    %c0_i32_0 = arith.constant 0 : i32
    return %arg0, %c0_i32 : i32, i32
  }
  func.func @transform_9(%arg0: i32) -> (i32, i32) {
    %c0_i32 = arith.constant 0 : i32
    %c0_i32_0 = arith.constant 0 : i32
    return %arg0, %c0_i32 : i32, i32
  }
}

</mosaic_0001>

<llo_original>
// kernel: speaker_forward.1
$region0: #{speaker_forward.1}
  #allocation0 [shape = 'u32[]', space=smem, size = 0x4, offset = 0x4, fixed_abs, tag = 'smem constant byte address 0x4 - core index']
  #allocation1 [shape = 'u32[144,128]{1,0:T(1,128)}', space=vmem, size = 0x12000, scoped, tag = 'internal scratch']
  %s0 = inlined_call_operand.vmem [shape: f32[8,32], index: 0, kind: input, shape index: {}]
  %s1 = inlined_call_operand.vmem [shape: f32[16,96], index: 1, kind: input, shape index: {}]
  %s2 = inlined_call_operand.vmem [shape: f32[32,96], index: 2, kind: input, shape index: {}]
  %s3 = inlined_call_operand.vmem [shape: f32[1,96], index: 3, kind: input, shape index: {}]
  %s4 = inlined_call_operand.vmem [shape: f32[1,96], index: 4, kind: input, shape index: {}]
  %s5 = inlined_call_operand.vmem [shape: f32[32,16], index: 5, kind: input, shape index: {}]
  %s6 = inlined_call_operand.vmem [shape: f32[1,16], index: 6, kind: input, shape index: {}]
  %s7 = inlined_call_operand.vmem [shape: f32[8,8], index: 7, kind: input, shape index: {}]
  %s8 = inlined_call_operand.hbm [shape: s32[8,8], index: 8, kind: output, shape index: {0}]
  %s9 = inlined_call_operand.vmem [shape: s32[8,1], index: 9, kind: output, shape index: {1}]
  %10 = xla_tuple %s8, %s9
  %s11 = sld [smem:[#allocation0]]
  $region50: #{speaker_forward.1} parent=0
    _
  %s13 = ssub.s32 1, %s11
  %s14 = scalar_select 0, %s13, %s11
  $region1: #{speaker_forward.1} parent=0
    #allocation2 [shape = 'u8[4096]{0}', space=vmem, size = 0x1000, scoped, tag = 'output window, operand 0, single buffered']
    #allocation3 [shape = 's32[1]{0}', space=sflag, size = 0x4, scoped, tag = 'scoped memory for speaker_forward.1']
    %15 = vsyncpa [#allocation3], 0
    // Predicated region
    $region2: #{speaker_forward.1} parent=1 // pred_check
      _
    $region3: #{speaker_forward.1} parent=1 // pred_check_branch
      %17 = sbr.rel (0) target = $region5
    $region4: #{speaker_forward.1} parent=1 // pred_region
      _
    $region5: #{speaker_forward.1} parent=1 // pred_fallthru
      _
    // Predicated region
    $region6: #{speaker_forward.1} parent=1 // pred_check
      _
    $region7: #{speaker_forward.1} parent=1 // pred_check_branch
      %19 = sbr.rel (0) target = $region9
    $region8: #{speaker_forward.1} parent=1 // pred_region
      _
    $region9: #{speaker_forward.1} parent=1 // pred_fallthru
      _
    // Predicated region
    $region10: #{speaker_forward.1} parent=1 // pred_check
      _
    $region11: #{speaker_forward.1} parent=1 // pred_check_branch
      %21 = sbr.rel (0) target = $region13
    $region12: #{speaker_forward.1} parent=1 // pred_region
      _
    $region13: #{speaker_forward.1} parent=1 // pred_fallthru
      _
    // Predicated region
    $region14: #{speaker_forward.1} parent=1 // pred_check
      _
    $region15: #{speaker_forward.1} parent=1 // pred_check_branch
      %23 = sbr.rel (0) target = $region17
    $region16: #{speaker_forward.1} parent=1 // pred_region
      _
    $region17: #{speaker_forward.1} parent=1 // pred_fallthru
      _
    // Predicated region
    $region18: #{speaker_forward.1} parent=1 // pred_check
      _
    $region19: #{speaker_forward.1} parent=1 // pred_check_branch
      %25 = sbr.rel (0) target = $region21
    $region20: #{speaker_forward.1} parent=1 // pred_region
      _
    $region21: #{speaker_forward.1} parent=1 // pred_fallthru
      _
    // Predicated region
    $region22: #{speaker_forward.1} parent=1 // pred_check
      _
    $region23: #{speaker_forward.1} parent=1 // pred_check_branch
      %27 = sbr.rel (0) target = $region25
    $region24: #{speaker_forward.1} parent=1 // pred_region
      _
    $region25: #{speaker_forward.1} parent=1 // pred_fallthru
      _
    // Predicated region
    $region26: #{speaker_forward.1} parent=1 // pred_check
      _
    $region27: #{speaker_forward.1} parent=1 // pred_check_branch
      %29 = sbr.rel (0) target = $region29
    $region28: #{speaker_forward.1} parent=1 // pred_region
      _
    $region29: #{speaker_forward.1} parent=1 // pred_fallthru
      _
    // Predicated region
    $region30: #{speaker_forward.1} parent=1 // pred_check
      _
    $region31: #{speaker_forward.1} parent=1 // pred_check_branch
      %31 = sbr.rel (0) target = $region33
    $region32: #{speaker_forward.1} parent=1 // pred_region
      _
    $region33: #{speaker_forward.1} parent=1 // pred_fallthru
      _
    %v32 = vlaneseq
    %v33 = vand.u32 %v32, 127
    %v34 = vlaneseq
    %v35 = vshrl.u32 %v34, 7
    %v36 = vadd.s32 %v35, 8
    %vm37 = vcmp.le.s32.totalorder %v35, %v33
    %vm38 = vcmp.le.s32.totalorder %v36, %v33
    %v39 = vsel %vm37, 1, 0
    %v40 = vsel %vm38, 1, 0
    %v41 = vcvt.s32.f32 %v39
    %v42 = vcvt.s32.f32 %v40
    %v43 = vld [vmem:[%s1] sm:$0xff]
    %v44 = vld [vmem:[%s1 + $0x8] sm:$0xff]
    %v45 = vld [vmem:[%s2] sm:$0xff]
    %v46 = vld [vmem:[%s2 + $0x8] sm:$0xff]
    %v47 = vld [vmem:[%s2 + $0x10] sm:$0xff]
    %v48 = vld [vmem:[%s2 + $0x18] sm:$0xff]
    %v49 = vld [vmem:[%s3] sm:$0x1]
    %v50 = vld [vmem:[%s4] sm:$0x1]
    %v51 = vld [vmem:[%s5] sm:$0xff]
    %v52 = vld [vmem:[%s5 + $0x8] sm:$0xff]
    %v53 = vld [vmem:[%s5 + $0x10] sm:$0xff]
    %v54 = vld [vmem:[%s5 + $0x18] sm:$0xff]
    %v55 = vld [vmem:[%s6] sm:$0x1]
    %v56 = vld [vmem:[%s0] sm:$0xff]
    %vm57 = vcmp.eq.s32.totalorder %v33, 0
    %v58 = vsel %vm57, 1, 0
    %v59 = vcvt.s32.f32 %v58
    %v61 = vlaneseq
    %v62 = vshrl.u32 %v61, 7
    %v63 = vsub.s32 0, %v62
    %v64 = vrot.slane %v49, %v63
    %vm66 = vcmask 130048
    %v68 = vsel %vm66, %v59, 0
    %70 = vmatprep.subr.mxu0 0.0
    %71 = vmatpush1.msra.mxu0 0.0
    %72 = vmatprep.subr.mxu0 0.0
    %73 = vmatpush1.msra.mxu0 0.0
    %74 = vmatprep.subr.mxu0 0.0
    %75 = vmatpush1.msra.mxu0 0.0
    %76 = vmatprep.subr.mxu0 0.0
    %77 = vmatpush1.msra.mxu0 0.0
    %78 = vmatprep.subr.mxu0 0.0
    %79 = vmatpush1.msra.mxu0 0.0
    %80 = vmatprep.subr.mxu0 0.0
    %81 = vmatpush1.msra.mxu0 0.0
    %82 = vmatprep.subr.mxu0 0.0
    %83 = vmatpush1.msra.mxu0 0.0
    %84 = vmatprep.subr.mxu0 0.0
    %85 = vmatpush1.msra.mxu0 0.0
    %86 = vmatprep.subr.mxu0 0.0
    %87 = vmatpush1.msra.mxu0 0.0
    %88 = vmatprep.subr.mxu0 0.0
    %89 = vmatpush1.msra.mxu0 0.0
    %90 = vmatprep.subr.mxu0 0.0
    %91 = vmatpush1.msra.mxu0 0.0
    %92 = vmatprep.subr.mxu0 0.0
    %93 = vmatpush1.msra.mxu0 0.0
    %94 = vmatprep.subr.mxu0 0.0
    %95 = vmatpush1.msra.mxu0 0.0
    %96 = vmatprep.subr.mxu0 0.0
    %97 = vmatpush1.msra.mxu0 0.0
    %98 = vmatprep.subr.mxu0 0.0
    %99 = vmatpush1.msra.mxu0 %v44
    %100 = vmatprep.subr.mxu0 0.0
    %101 = vmatpush1.msra.mxu0 %v43
    %102 = vmatprep.subr.mxu0 0.0
    %103 = vmatpush2.msra.mxu0 0.0
    %104 = vmatprep.subr.mxu0 0.0
    %105 = vmatpush2.msra.mxu0 0.0
    %106 = vmatprep.subr.mxu0 0.0
    %107 = vmatpush2.msra.mxu0 0.0
    %108 = vmatprep.subr.mxu0 0.0
    %109 = vmatpush2.msra.mxu0 0.0
    %110 = vmatprep.subr.mxu0 0.0
    %111 = vmatpush2.msra.mxu0 0.0
    %112 = vmatprep.subr.mxu0 0.0
    %113 = vmatpush2.msra.mxu0 0.0
    %114 = vmatprep.subr.mxu0 0.0
    %115 = vmatpush2.msra.mxu0 0.0
    %116 = vmatprep.subr.mxu0 0.0
    %117 = vmatpush2.msra.mxu0 0.0
    %118 = vmatprep.subr.mxu0 0.0
    %119 = vmatpush2.msra.mxu0 0.0
    %120 = vmatprep.subr.mxu0 0.0
    %121 = vmatpush2.msra.mxu0 0.0
    %122 = vmatprep.subr.mxu0 0.0
    %123 = vmatpush2.msra.mxu0 0.0
    %124 = vmatprep.subr.mxu0 0.0
    %125 = vmatpush2.msra.mxu0 0.0
    %126 = vmatprep.subr.mxu0 0.0
    %127 = vmatpush2.msra.mxu0 0.0
    %128 = vmatprep.subr.mxu0 0.0
    %129 = vmatpush2.msra.mxu0 0.0
    %130 = vmatprep.subr.mxu0 0.0
    %131 = vmatpush2.msra.mxu0 0.0
    %132 = vmatprep.subr.mxu0 0.0
    %133 = vmatpush2.msra.mxu0 0.0
    %134 = vmatprep.mubr.f32.mxu0 0.0
    %135 = vmatmul.mubr.f32.gmra.mxu0 %v68
    %v136 = vpop.f32.mrf.mxu0
    %v137 = vadd.f32 %v64, %v136
    %v138 = vpop.f32.mrf.mxu0
    %139 = vdwg.mxu0
    %v141 = vlaneseq
    %v142 = vshrl.u32 %v141, 7
    %v143 = vsub.s32 0, %v142
    %v144 = vrot.slane %v50, %v143
    %vm146 = vcmask 261120
    %v148 = vsel %vm146, %v56, 0
    %150 = vmatprep.subr.mxu0 0.0
    %151 = vmatpush1.msra.mxu0 0.0
    %152 = vmatprep.subr.mxu0 0.0
    %153 = vmatpush1.msra.mxu0 0.0
    %154 = vmatprep.subr.mxu0 0.0
    %155 = vmatpush1.msra.mxu0 0.0
    %156 = vmatprep.subr.mxu0 0.0
    %157 = vmatpush1.msra.mxu0 0.0
    %158 = vmatprep.subr.mxu0 0.0
    %159 = vmatpush1.msra.mxu0 0.0
    %160 = vmatprep.subr.mxu0 0.0
    %161 = vmatpush1.msra.mxu0 0.0
    %162 = vmatprep.subr.mxu0 0.0
    %163 = vmatpush1.msra.mxu0 0.0
    %164 = vmatprep.subr.mxu0 0.0
    %165 = vmatpush1.msra.mxu0 0.0
    %166 = vmatprep.subr.mxu0 0.0
    %167 = vmatpush1.msra.mxu0 0.0
    %168 = vmatprep.subr.mxu0 0.0
    %169 = vmatpush1.msra.mxu0 0.0
    %170 = vmatprep.subr.mxu0 0.0
    %171 = vmatpush1.msra.mxu0 0.0
    %172 = vmatprep.subr.mxu0 0.0
    %173 = vmatpush1.msra.mxu0 0.0
    %174 = vmatprep.subr.mxu0 0.0
    %175 = vmatpush1.msra.mxu0 %v48
    %176 = vmatprep.subr.mxu0 0.0
    %177 = vmatpush1.msra.mxu0 %v47
    %178 = vmatprep.subr.mxu0 0.0
    %179 = vmatpush1.msra.mxu0 %v46
    %180 = vmatprep.subr.mxu0 0.0
    %181 = vmatpush1.msra.mxu0 %v45
    %182 = vmatprep.subr.mxu0 0.0
    %183 = vmatpush2.msra.mxu0 0.0
    %184 = vmatprep.subr.mxu0 0.0
    %185 = vmatpush2.msra.mxu0 0.0
    %186 = vmatprep.subr.mxu0 0.0
    %187 = vmatpush2.msra.mxu0 0.0
    %188 = vmatprep.subr.mxu0 0.0
    %189 = vmatpush2.msra.mxu0 0.0
    %190 = vmatprep.subr.mxu0 0.0
    %191 = vmatpush2.msra.mxu0 0.0
    %192 = vmatprep.subr.mxu0 0.0
    %193 = vmatpush2.msra.mxu0 0.0
    %194 = vmatprep.subr.mxu0 0.0
    %195 = vmatpush2.msra.mxu0 0.0
    %196 = vmatprep.subr.mxu0 0.0
    %197 = vmatpush2.msra.mxu0 0.0
    %198 = vmatprep.subr.mxu0 0.0
    %199 = vmatpush2.msra.mxu0 0.0
    %200 = vmatprep.subr.mxu0 0.0
    %201 = vmatpush2.msra.mxu0 0.0
    %202 = vmatprep.subr.mxu0 0.0
    %203 = vmatpush2.msra.mxu0 0.0
    %204 = vmatprep.subr.mxu0 0.0
    %205 = vmatpush2.msra.mxu0 0.0
    %206 = vmatprep.subr.mxu0 0.0
    %207 = vmatpush2.msra.mxu0 0.0
    %208 = vmatprep.subr.mxu0 0.0
    %209 = vmatpush2.msra.mxu0 0.0
    %210 = vmatprep.subr.mxu0 0.0
    %211 = vmatpush2.msra.mxu0 0.0
    %212 = vmatprep.subr.mxu0 0.0
    %213 = vmatpush2.msra.mxu0 0.0
    %214 = vmatprep.mubr.f32.mxu0 0.0
    %215 = vmatmul.mubr.f32.gmra.mxu0 %v148
    %v216 = vpop.f32.mrf.mxu0
    %v217 = vadd.f32 %v144, %v216
    %v218 = vpop.f32.mrf.mxu0
    %219 = vdwg.mxu0
    %v220 = vadd.f32 %v137, %v217
    %v221 = vxor.u32 %v220, 2147483648
    %v222 = vmul.f32 %v221, 1.442695
    %v223 = vpow.pop %v222
    %v224 = vadd.f32 %v223, 1.0
    %v225 = vrcp.pop %v224
    %v226 = vmul.f32 1.0, %v225
    %228 = vrot.lane.b32.xlu0 %v217, 64
    %v229 = vpop.permute.xlu0 %228
    %v231 = vmul.f32 %v226, %v229
    %233 = vrot.lane.b32.xlu0 %v231, 64
    %v234 = vpop.permute.xlu0 %233
    %v236 = vadd.f32 %v137, %v234
    %v237 = vtanh.pop %v236
    %v238 = vsub.f32 1.0, %v226
    %240 = vrot.lane.b32.xlu0 %v237, 96
    %v241 = vpop.permute.xlu0 %240
    %v243 = vmul.f32 %v238, %v241
    %244 = vrot.lane.b32.xlu0 %v56, 32
    %v245 = vpop.permute.xlu0 %244
    %v247 = vmul.f32 %v226, %v245
    %v248 = vadd.f32 %v243, %v247
    %v250 = vlaneseq
    %v251 = vshrl.u32 %v250, 7
    %v252 = vsub.s32 0, %v251
    %v253 = vrot.slane %v55, %v252
    %256 = vrot.lane.b32.xlu0 %v248, 96
    %v257 = vpop.permute.xlu0 %256
    %v258 = vsel %vm146, %v257, 0
    %260 = vmatprep.subr.mxu0 0.0
    %261 = vmatpush1.msra.mxu0 0.0
    %262 = vmatprep.subr.mxu0 0.0
    %263 = vmatpush1.msra.mxu0 0.0
    %264 = vmatprep.subr.mxu0 0.0
    %265 = vmatpush1.msra.mxu0 0.0
    %266 = vmatprep.subr.mxu0 0.0
    %267 = vmatpush1.msra.mxu0 0.0
    %268 = vmatprep.subr.mxu0 0.0
    %269 = vmatpush1.msra.mxu0 0.0
    %270 = vmatprep.subr.mxu0 0.0
    %271 = vmatpush1.msra.mxu0 0.0
    %272 = vmatprep.subr.mxu0 0.0
    %273 = vmatpush1.msra.mxu0 0.0
    %274 = vmatprep.subr.mxu0 0.0
    %275 = vmatpush1.msra.mxu0 0.0
    %276 = vmatprep.subr.mxu0 0.0
    %277 = vmatpush1.msra.mxu0 0.0
    %278 = vmatprep.subr.mxu0 0.0
    %279 = vmatpush1.msra.mxu0 0.0
    %280 = vmatprep.subr.mxu0 0.0
    %281 = vmatpush1.msra.mxu0 0.0
    %282 = vmatprep.subr.mxu0 0.0
    %283 = vmatpush1.msra.mxu0 0.0
    %284 = vmatprep.subr.mxu0 0.0
    %285 = vmatpush1.msra.mxu0 %v54
    %286 = vmatprep.subr.mxu0 0.0
    %287 = vmatpush1.msra.mxu0 %v53
    %288 = vmatprep.subr.mxu0 0.0
    %289 = vmatpush1.msra.mxu0 %v52
    %290 = vmatprep.subr.mxu0 0.0
    %291 = vmatpush1.msra.mxu0 %v51
    %292 = vmatprep.subr.mxu0 0.0
    %293 = vmatpush2.msra.mxu0 0.0
    %294 = vmatprep.subr.mxu0 0.0
    %295 = vmatpush2.msra.mxu0 0.0
    %296 = vmatprep.subr.mxu0 0.0
    %297 = vmatpush2.msra.mxu0 0.0
    %298 = vmatprep.subr.mxu0 0.0
    %299 = vmatpush2.msra.mxu0 0.0
    %300 = vmatprep.subr.mxu0 0.0
    %301 = vmatpush2.msra.mxu0 0.0
    %302 = vmatprep.subr.mxu0 0.0
    %303 = vmatpush2.msra.mxu0 0.0
    %304 = vmatprep.subr.mxu0 0.0
    %305 = vmatpush2.msra.mxu0 0.0
    %306 = vmatprep.subr.mxu0 0.0
    %307 = vmatpush2.msra.mxu0 0.0
    %308 = vmatprep.subr.mxu0 0.0
    %309 = vmatpush2.msra.mxu0 0.0
    %310 = vmatprep.subr.mxu0 0.0
    %311 = vmatpush2.msra.mxu0 0.0
    %312 = vmatprep.subr.mxu0 0.0
    %313 = vmatpush2.msra.mxu0 0.0
    %314 = vmatprep.subr.mxu0 0.0
    %315 = vmatpush2.msra.mxu0 0.0
    %316 = vmatprep.subr.mxu0 0.0
    %317 = vmatpush2.msra.mxu0 0.0
    %318 = vmatprep.subr.mxu0 0.0
    %319 = vmatpush2.msra.mxu0 0.0
    %320 = vmatprep.subr.mxu0 0.0
    %321 = vmatpush2.msra.mxu0 0.0
    %322 = vmatprep.subr.mxu0 0.0
    %323 = vmatpush2.msra.mxu0 0.0
    %324 = vmatprep.mubr.f32.mxu0 0.0
    %325 = vmatmul.mubr.f32.gmra.mxu0 %v258
    %v326 = vpop.f32.mrf.mxu0
    %v327 = vadd.f32 %v253, %v326
    %v328 = vpop.f32.mrf.mxu0
    %329 = vdwg.mxu0
    %v330 = vsel %vm66, %v327, -inf
    %331 = vmax.xlane.f32.xlu0 %v330
    %v332 = vpop.xlane.xlu0 %331
    %v333 = vsub.f32 %v327, %v332
    %v334 = vmul.f32 %v333, 1.442695
    %v335 = vpow.pop %v334
    %v336 = vsel %vm66, %v335, 0.0
    %337 = vadd.xlane.f32.xlu0 %v336
    %v338 = vpop.xlane.xlu0 %337
    %v340 = vsel %vm66, %v335, 0
    %342 = vmatprep.subr.mxu0 0.0
    %343 = vmatpush1.msra.mxu0 0.0
    %344 = vmatprep.subr.mxu0 0.0
    %345 = vmatpush1.msra.mxu0 0.0
    %346 = vmatprep.subr.mxu0 0.0
    %347 = vmatpush1.msra.mxu0 0.0
    %348 = vmatprep.subr.mxu0 0.0
    %349 = vmatpush1.msra.mxu0 0.0
    %350 = vmatprep.subr.mxu0 0.0
    %351 = vmatpush1.msra.mxu0 0.0
    %352 = vmatprep.subr.mxu0 0.0
    %353 = vmatpush1.msra.mxu0 0.0
    %354 = vmatprep.subr.mxu0 0.0
    %355 = vmatpush1.msra.mxu0 0.0
    %356 = vmatprep.subr.mxu0 0.0
    %357 = vmatpush1.msra.mxu0 0.0
    %358 = vmatprep.subr.mxu0 0.0
    %359 = vmatpush1.msra.mxu0 0.0
    %360 = vmatprep.subr.mxu0 0.0
    %361 = vmatpush1.msra.mxu0 0.0
    %362 = vmatprep.subr.mxu0 0.0
    %363 = vmatpush1.msra.mxu0 0.0
    %364 = vmatprep.subr.mxu0 0.0
    %365 = vmatpush1.msra.mxu0 0.0
    %366 = vmatprep.subr.mxu0 0.0
    %367 = vmatpush1.msra.mxu0 0.0
    %368 = vmatprep.subr.mxu0 0.0
    %369 = vmatpush1.msra.mxu0 0.0
    %370 = vmatprep.subr.mxu0 0.0
    %371 = vmatpush1.msra.mxu0 %v42
    %372 = vmatprep.subr.mxu0 0.0
    %373 = vmatpush1.msra.mxu0 %v41
    %374 = vmatprep.subr.mxu0 0.0
    %375 = vmatpush2.msra.mxu0 0.0
    %376 = vmatprep.subr.mxu0 0.0
    %377 = vmatpush2.msra.mxu0 0.0
    %378 = vmatprep.subr.mxu0 0.0
    %379 = vmatpush2.msra.mxu0 0.0
    %380 = vmatprep.subr.mxu0 0.0
    %381 = vmatpush2.msra.mxu0 0.0
    %382 = vmatprep.subr.mxu0 0.0
    %383 = vmatpush2.msra.mxu0 0.0
    %384 = vmatprep.subr.mxu0 0.0
    %385 = vmatpush2.msra.mxu0 0.0
    %386 = vmatprep.subr.mxu0 0.0
    %387 = vmatpush2.msra.mxu0 0.0
    %388 = vmatprep.subr.mxu0 0.0
    %389 = vmatpush2.msra.mxu0 0.0
    %390 = vmatprep.subr.mxu0 0.0
    %391 = vmatpush2.msra.mxu0 0.0
    %392 = vmatprep.subr.mxu0 0.0
    %393 = vmatpush2.msra.mxu0 0.0
    %394 = vmatprep.subr.mxu0 0.0
    %395 = vmatpush2.msra.mxu0 0.0
    %396 = vmatprep.subr.mxu0 0.0
    %397 = vmatpush2.msra.mxu0 0.0
    %398 = vmatprep.subr.mxu0 0.0
    %399 = vmatpush2.msra.mxu0 0.0
    %400 = vmatprep.subr.mxu0 0.0
    %401 = vmatpush2.msra.mxu0 0.0
    %402 = vmatprep.subr.mxu0 0.0
    %403 = vmatpush2.msra.mxu0 0.0
    %404 = vmatprep.subr.mxu0 0.0
    %405 = vmatpush2.msra.mxu0 0.0
    %406 = vmatprep.mubr.f32.mxu0 0.0
    %407 = vmatmul.mubr.f32.gmra.mxu0 %v340
    %v408 = vpop.f32.mrf.mxu0
    %v409 = vadd.f32 0.0, %v408
    %v410 = vpop.f32.mrf.mxu0
    %411 = vdwg.mxu0
    %v412 = vld [vmem:[%s7] sm:$0xff]
    %v413 = vmul.f32 %v412, %v338
    %415 = vset.pattern.permute.xlu0 0
    %416 = vperm.xlu0 %415, %v413
    %v417 = vpop.permute.xlu0 %416
    %vm419 = vcmp.le.f32.partialorder %v409, %v417
    %v420 = vsel %vm419, 1, 0
    %v421 = vsel %vm66, %v420, 0
    %v422 = vand.u32 %v421, 65535
    %v423 = vshrl.u32 %v421, 16
    %v424 = vcvt.s32.f32 %v422
    %v425 = vcvt.s32.f32 %v423
    %426 = vadd.xlane.f32.xlu0 %v424
    %v427 = vpop.xlane.xlu0 %426
    %428 = vadd.xlane.f32.xlu0 %v425
    %v429 = vpop.xlane.xlu0 %428
    %v430 = vcvt.f32.s32 %v427
    %v431 = vcvt.f32.s32 %v429
    %v432 = vshll.u32 %v431, 16
    %v433 = vadd.s32 %v432, %v430
    %vm434 = vcmp.lt.s32.totalorder %v433, 15
    %v435 = vsel %vm434, %v433, 15
    %vm436 = vcmp.eq.s32.totalorder %v435, 0
    %v437 = vsel %vm436, 1, 8
    %vm438 = vcmp.ne.s32.totalorder %v435, 0
    %vm439 = vcmask 7168
    %440 = vst.msk [vmem:[#allocation2] sm:$0xff] %vm439, %v435
    %vm441 = vcmp.eq.s32.totalorder %v33, %v435
    %v442 = vsel %vm441, 1, 0
    %v443 = vcvt.s32.f32 %v442
    %v445 = vsel %vm66, %v443, 0
    %447 = vmatprep.subr.mxu0 0.0
    %448 = vmatpush1.msra.mxu0 0.0
    %449 = vmatprep.subr.mxu0 0.0
    %450 = vmatpush1.msra.mxu0 0.0
    %451 = vmatprep.subr.mxu0 0.0
    %452 = vmatpush1.msra.mxu0 0.0
    %453 = vmatprep.subr.mxu0 0.0
    %454 = vmatpush1.msra.mxu0 0.0
    %455 = vmatprep.subr.mxu0 0.0
    %456 = vmatpush1.msra.mxu0 0.0
    %457 = vmatprep.subr.mxu0 0.0
    %458 = vmatpush1.msra.mxu0 0.0
    %459 = vmatprep.subr.mxu0 0.0
    %460 = vmatpush1.msra.mxu0 0.0
    %461 = vmatprep.subr.mxu0 0.0
    %462 = vmatpush1.msra.mxu0 0.0
    %463 = vmatprep.subr.mxu0 0.0
    %464 = vmatpush1.msra.mxu0 0.0
    %465 = vmatprep.subr.mxu0 0.0
    %466 = vmatpush1.msra.mxu0 0.0
    %467 = vmatprep.subr.mxu0 0.0
    %468 = vmatpush1.msra.mxu0 0.0
    %469 = vmatprep.subr.mxu0 0.0
    %470 = vmatpush1.msra.mxu0 0.0
    %471 = vmatprep.subr.mxu0 0.0
    %472 = vmatpush1.msra.mxu0 0.0
    %473 = vmatprep.subr.mxu0 0.0
    %474 = vmatpush1.msra.mxu0 0.0
    %475 = vmatprep.subr.mxu0 0.0
    %476 = vmatpush1.msra.mxu0 %v44
    %477 = vmatprep.subr.mxu0 0.0
    %478 = vmatpush1.msra.mxu0 %v43
    %479 = vmatprep.subr.mxu0 0.0
    %480 = vmatpush2.msra.mxu0 0.0
    %481 = vmatprep.subr.mxu0 0.0
    %482 = vmatpush2.msra.mxu0 0.0
    %483 = vmatprep.subr.mxu0 0.0
    %484 = vmatpush2.msra.mxu0 0.0
    %485 = vmatprep.subr.mxu0 0.0
    %486 = vmatpush2.msra.mxu0 0.0
    %487 = vmatprep.subr.mxu0 0.0
    %488 = vmatpush2.msra.mxu0 0.0
    %489 = vmatprep.subr.mxu0 0.0
    %490 = vmatpush2.msra.mxu0 0.0
    %491 = vmatprep.subr.mxu0 0.0
    %492 = vmatpush2.msra.mxu0 0.0
    %493 = vmatprep.subr.mxu0 0.0
    %494 = vmatpush2.msra.mxu0 0.0
    %495 = vmatprep.subr.mxu0 0.0
    %496 = vmatpush2.msra.mxu0 0.0
    %497 = vmatprep.subr.mxu0 0.0
    %498 = vmatpush2.msra.mxu0 0.0
    %499 = vmatprep.subr.mxu0 0.0
    %500 = vmatpush2.msra.mxu0 0.0
    %501 = vmatprep.subr.mxu0 0.0
    %502 = vmatpush2.msra.mxu0 0.0
    %503 = vmatprep.subr.mxu0 0.0
    %504 = vmatpush2.msra.mxu0 0.0
    %505 = vmatprep.subr.mxu0 0.0
    %506 = vmatpush2.msra.mxu0 0.0
    %507 = vmatprep.subr.mxu0 0.0
    %508 = vmatpush2.msra.mxu0 0.0
    %509 = vmatprep.subr.mxu0 0.0
    %510 = vmatpush2.msra.mxu0 0.0
    %511 = vmatprep.mubr.f32.mxu0 0.0
    %512 = vmatmul.mubr.f32.gmra.mxu0 %v445
    %v513 = vpop.f32.mrf.mxu0
    %v514 = vadd.f32 %v64, %v513
    %v515 = vpop.f32.mrf.mxu0
    %516 = vdwg.mxu0
    %517 = vmatprep.subr.mxu0 0.0
    %518 = vmatpush1.msra.mxu0 0.0
    %519 = vmatprep.subr.mxu0 0.0
    %520 = vmatpush1.msra.mxu0 0.0
    %521 = vmatprep.subr.mxu0 0.0
    %522 = vmatpush1.msra.mxu0 0.0
    %523 = vmatprep.subr.mxu0 0.0
    %524 = vmatpush1.msra.mxu0 0.0
    %525 = vmatprep.subr.mxu0 0.0
    %526 = vmatpush1.msra.mxu0 0.0
    %527 = vmatprep.subr.mxu0 0.0
    %528 = vmatpush1.msra.mxu0 0.0
    %529 = vmatprep.subr.mxu0 0.0
    %530 = vmatpush1.msra.mxu0 0.0
    %531 = vmatprep.subr.mxu0 0.0
    %532 = vmatpush1.msra.mxu0 0.0
    %533 = vmatprep.subr.mxu0 0.0
    %534 = vmatpush1.msra.mxu0 0.0
    %535 = vmatprep.subr.mxu0 0.0
    %536 = vmatpush1.msra.mxu0 0.0
    %537 = vmatprep.subr.mxu0 0.0
    %538 = vmatpush1.msra.mxu0 0.0
    %539 = vmatprep.subr.mxu0 0.0
    %540 = vmatpush1.msra.mxu0 0.0
    %541 = vmatprep.subr.mxu0 0.0
    %542 = vmatpush1.msra.mxu0 %v48
    %543 = vmatprep.subr.mxu0 0.0
    %544 = vmatpush1.msra.mxu0 %v47
    %545 = vmatprep.subr.mxu0 0.0
    %546 = vmatpush1.msra.mxu0 %v46
    %547 = vmatprep.subr.mxu0 0.0
    %548 = vmatpush1.msra.mxu0 %v45
    %549 = vmatprep.subr.mxu0 0.0
    %550 = vmatpush2.msra.mxu0 0.0
    %551 = vmatprep.subr.mxu0 0.0
    %552 = vmatpush2.msra.mxu0 0.0
    %553 = vmatprep.subr.mxu0 0.0
    %554 = vmatpush2.msra.mxu0 0.0
    %555 = vmatprep.subr.mxu0 0.0
    %556 = vmatpush2.msra.mxu0 0.0
    %557 = vmatprep.subr.mxu0 0.0
    %558 = vmatpush2.msra.mxu0 0.0
    %559 = vmatprep.subr.mxu0 0.0
    %560 = vmatpush2.msra.mxu0 0.0
    %561 = vmatprep.subr.mxu0 0.0
    %562 = vmatpush2.msra.mxu0 0.0
    %563 = vmatprep.subr.mxu0 0.0
    %564 = vmatpush2.msra.mxu0 0.0
    %565 = vmatprep.subr.mxu0 0.0
    %566 = vmatpush2.msra.mxu0 0.0
    %567 = vmatprep.subr.mxu0 0.0
    %568 = vmatpush2.msra.mxu0 0.0
    %569 = vmatprep.subr.mxu0 0.0
    %570 = vmatpush2.msra.mxu0 0.0
    %571 = vmatprep.subr.mxu0 0.0
    %572 = vmatpush2.msra.mxu0 0.0
    %573 = vmatprep.subr.mxu0 0.0
    %574 = vmatpush2.msra.mxu0 0.0
    %575 = vmatprep.subr.mxu0 0.0
    %576 = vmatpush2.msra.mxu0 0.0
    %577 = vmatprep.subr.mxu0 0.0
    %578 = vmatpush2.msra.mxu0 0.0
    %579 = vmatprep.subr.mxu0 0.0
    %580 = vmatpush2.msra.mxu0 0.0
    %581 = vmatprep.mubr.f32.mxu0 0.0
    %582 = vmatmul.mubr.f32.gmra.mxu0 %v258
    %v583 = vpop.f32.mrf.mxu0
    %v584 = vadd.f32 %v144, %v583
    %v585 = vpop.f32.mrf.mxu0
    %586 = vdwg.mxu0
    %v587 = vadd.f32 %v514, %v584
    %v588 = vxor.u32 %v587, 2147483648
    %v589 = vmul.f32 %v588, 1.442695
    %v590 = vpow.pop %v589
    %v591 = vadd.f32 %v590, 1.0
    %v592 = vrcp.pop %v591
    %v593 = vmul.f32 1.0, %v592
    %595 = vrot.lane.b32.xlu0 %v584, 64
    %v596 = vpop.permute.xlu0 %595
    %v598 = vmul.f32 %v593, %v596
    %600 = vrot.lane.b32.xlu0 %v598, 64
    %v601 = vpop.permute.xlu0 %600
    %v603 = vadd.f32 %v514, %v601
    %v604 = vtanh.pop %v603
    %v605 = vsub.f32 1.0, %v593
    %607 = vrot.lane.b32.xlu0 %v604, 96
    %v608 = vpop.permute.xlu0 %607
    %v610 = vmul.f32 %v605, %v608
    %v611 = vmul.f32 %v593, %v248
    %v612 = vadd.f32 %v610, %v611
    %614 = vrot.lane.b32.xlu0 %v612, 96
    %v615 = vpop.permute.xlu0 %614
    %v616 = vsel %vm146, %v615, 0
    %618 = vmatprep.subr.mxu0 0.0
    %619 = vmatpush1.msra.mxu0 0.0
    %620 = vmatprep.subr.mxu0 0.0
    %621 = vmatpush1.msra.mxu0 0.0
    %622 = vmatprep.subr.mxu0 0.0
    %623 = vmatpush1.msra.mxu0 0.0
    %624 = vmatprep.subr.mxu0 0.0
    %625 = vmatpush1.msra.mxu0 0.0
    %626 = vmatprep.subr.mxu0 0.0
    %627 = vmatpush1.msra.mxu0 0.0
    %628 = vmatprep.subr.mxu0 0.0
    %629 = vmatpush1.msra.mxu0 0.0
    %630 = vmatprep.subr.mxu0 0.0
    %631 = vmatpush1.msra.mxu0 0.0
    %632 = vmatprep.subr.mxu0 0.0
    %633 = vmatpush1.msra.mxu0 0.0
    %634 = vmatprep.subr.mxu0 0.0
    %635 = vmatpush1.msra.mxu0 0.0
    %636 = vmatprep.subr.mxu0 0.0
    %637 = vmatpush1.msra.mxu0 0.0
    %638 = vmatprep.subr.mxu0 0.0
    %639 = vmatpush1.msra.mxu0 0.0
    %640 = vmatprep.subr.mxu0 0.0
    %641 = vmatpush1.msra.mxu0 0.0
    %642 = vmatprep.subr.mxu0 0.0
    %643 = vmatpush1.msra.mxu0 %v54
    %644 = vmatprep.subr.mxu0 0.0
    %645 = vmatpush1.msra.mxu0 %v53
    %646 = vmatprep.subr.mxu0 0.0
    %647 = vmatpush1.msra.mxu0 %v52
    %648 = vmatprep.subr.mxu0 0.0
    %649 = vmatpush1.msra.mxu0 %v51
    %650 = vmatprep.subr.mxu0 0.0
    %651 = vmatpush2.msra.mxu0 0.0
    %652 = vmatprep.subr.mxu0 0.0
    %653 = vmatpush2.msra.mxu0 0.0
    %654 = vmatprep.subr.mxu0 0.0
    %655 = vmatpush2.msra.mxu0 0.0
    %656 = vmatprep.subr.mxu0 0.0
    %657 = vmatpush2.msra.mxu0 0.0
    %658 = vmatprep.subr.mxu0 0.0
    %659 = vmatpush2.msra.mxu0 0.0
    %660 = vmatprep.subr.mxu0 0.0
    %661 = vmatpush2.msra.mxu0 0.0
    %662 = vmatprep.subr.mxu0 0.0
    %663 = vmatpush2.msra.mxu0 0.0
    %664 = vmatprep.subr.mxu0 0.0
    %665 = vmatpush2.msra.mxu0 0.0
    %666 = vmatprep.subr.mxu0 0.0
    %667 = vmatpush2.msra.mxu0 0.0
    %668 = vmatprep.subr.mxu0 0.0
    %669 = vmatpush2.msra.mxu0 0.0
    %670 = vmatprep.subr.mxu0 0.0
    %671 = vmatpush2.msra.mxu0 0.0
    %672 = vmatprep.subr.mxu0 0.0
    %673 = vmatpush2.msra.mxu0 0.0
    %674 = vmatprep.subr.mxu0 0.0
    %675 = vmatpush2.msra.mxu0 0.0
    %676 = vmatprep.subr.mxu0 0.0
    %677 = vmatpush2.msra.mxu0 0.0
    %678 = vmatprep.subr.mxu0 0.0
    %679 = vmatpush2.msra.mxu0 0.0
    %680 = vmatprep.subr.mxu0 0.0
    %681 = vmatpush2.msra.mxu0 0.0
    %682 = vmatprep.mubr.f32.mxu0 0.0
    %683 = vmatmul.mubr.f32.gmra.mxu0 %v616
    %v684 = vpop.f32.mrf.mxu0
    %v685 = vadd.f32 %v253, %v684
    %v686 = vpop.f32.mrf.mxu0
    %687 = vdwg.mxu0
    %v688 = vsel %vm66, %v685, -inf
    %689 = vmax.xlane.f32.xlu0 %v688
    %v690 = vpop.xlane.xlu0 %689
    %v691 = vsub.f32 %v685, %v690
    %v692 = vmul.f32 %v691, 1.442695
    %v693 = vpow.pop %v692
    %v694 = vsel %vm66, %v693, 0.0
    %695 = vadd.xlane.f32.xlu0 %v694
    %v696 = vpop.xlane.xlu0 %695
    %v698 = vsel %vm66, %v693, 0
    %700 = vmatprep.subr.mxu0 0.0
    %701 = vmatpush1.msra.mxu0 0.0
    %702 = vmatprep.subr.mxu0 0.0
    %703 = vmatpush1.msra.mxu0 0.0
    %704 = vmatprep.subr.mxu0 0.0
    %705 = vmatpush1.msra.mxu0 0.0
    %706 = vmatprep.subr.mxu0 0.0
    %707 = vmatpush1.msra.mxu0 0.0
    %708 = vmatprep.subr.mxu0 0.0
    %709 = vmatpush1.msra.mxu0 0.0
    %710 = vmatprep.subr.mxu0 0.0
    %711 = vmatpush1.msra.mxu0 0.0
    %712 = vmatprep.subr.mxu0 0.0
    %713 = vmatpush1.msra.mxu0 0.0
    %714 = vmatprep.subr.mxu0 0.0
    %715 = vmatpush1.msra.mxu0 0.0
    %716 = vmatprep.subr.mxu0 0.0
    %717 = vmatpush1.msra.mxu0 0.0
    %718 = vmatprep.subr.mxu0 0.0
    %719 = vmatpush1.msra.mxu0 0.0
    %720 = vmatprep.subr.mxu0 0.0
    %721 = vmatpush1.msra.mxu0 0.0
    %722 = vmatprep.subr.mxu0 0.0
    %723 = vmatpush1.msra.mxu0 0.0
    %724 = vmatprep.subr.mxu0 0.0
    %725 = vmatpush1.msra.mxu0 0.0
    %726 = vmatprep.subr.mxu0 0.0
    %727 = vmatpush1.msra.mxu0 0.0
    %728 = vmatprep.subr.mxu0 0.0
    %729 = vmatpush1.msra.mxu0 %v42
    %730 = vmatprep.subr.mxu0 0.0
    %731 = vmatpush1.msra.mxu0 %v41
    %732 = vmatprep.subr.mxu0 0.0
    %733 = vmatpush2.msra.mxu0 0.0
    %734 = vmatprep.subr.mxu0 0.0
    %735 = vmatpush2.msra.mxu0 0.0
    %736 = vmatprep.subr.mxu0 0.0
    %737 = vmatpush2.msra.mxu0 0.0
    %738 = vmatprep.subr.mxu0 0.0
    %739 = vmatpush2.msra.mxu0 0.0
    %740 = vmatprep.subr.mxu0 0.0
    %741 = vmatpush2.msra.mxu0 0.0
    %742 = vmatprep.subr.mxu0 0.0
    %743 = vmatpush2.msra.mxu0 0.0
    %744 = vmatprep.subr.mxu0 0.0
    %745 = vmatpush2.msra.mxu0 0.0
    %746 = vmatprep.subr.mxu0 0.0
    %747 = vmatpush2.msra.mxu0 0.0
    %748 = vmatprep.subr.mxu0 0.0
    %749 = vmatpush2.msra.mxu0 0.0
    %750 = vmatprep.subr.mxu0 0.0
    %751 = vmatpush2.msra.mxu0 0.0
    %752 = vmatprep.subr.mxu0 0.0
    %753 = vmatpush2.msra.mxu0 0.0
    %754 = vmatprep.subr.mxu0 0.0
    %755 = vmatpush2.msra.mxu0 0.0
    %756 = vmatprep.subr.mxu0 0.0
    %757 = vmatpush2.msra.mxu0 0.0
    %758 = vmatprep.subr.mxu0 0.0
    %759 = vmatpush2.msra.mxu0 0.0
    %760 = vmatprep.subr.mxu0 0.0
    %761 = vmatpush2.msra.mxu0 0.0
    %762 = vmatprep.subr.mxu0 0.0
    %763 = vmatpush2.msra.mxu0 0.0
    %764 = vmatprep.mubr.f32.mxu0 0.0
    %765 = vmatmul.mubr.f32.gmra.mxu0 %v698
    %v766 = vpop.f32.mrf.mxu0
    %v767 = vadd.f32 0.0, %v766
    %v768 = vpop.f32.mrf.mxu0
    %769 = vdwg.mxu0
    %v770 = vld [vmem:[%s7] sm:$0xff]
    %v771 = vmul.f32 %v770, %v696
    %773 = vset.pattern.permute.xlu0 1
    %774 = vperm.xlu0 %773, %v771
    %v775 = vpop.permute.xlu0 %774
    %vm777 = vcmp.le.f32.partialorder %v767, %v775
    %v778 = vsel %vm777, 1, 0
    %v779 = vsel %vm66, %v778, 0
    %v780 = vand.u32 %v779, 65535
    %v781 = vshrl.u32 %v779, 16
    %v782 = vcvt.s32.f32 %v780
    %v783 = vcvt.s32.f32 %v781
    %784 = vadd.xlane.f32.xlu0 %v782
    %v785 = vpop.xlane.xlu0 %784
    %786 = vadd.xlane.f32.xlu0 %v783
    %v787 = vpop.xlane.xlu0 %786
    %v788 = vcvt.f32.s32 %v785
    %v789 = vcvt.f32.s32 %v787
    %v790 = vshll.u32 %v789, 16
    %v791 = vadd.s32 %v790, %v788
    %vm792 = vcmp.lt.s32.totalorder %v791, 15
    %v793 = vsel %vm792, %v791, 15
    %v794 = vsel %vm438, %v793, 0
    %vm795 = vcmp.eq.s32.totalorder %v794, 0
    %vm796 = vmand %vm438, %vm795
    %v797 = vsel %vm796, 2, %v437
    %vm798 = vcmp.ne.s32.totalorder %v794, 0
    %vm799 = vmand %vm438, %vm798
    %vm800 = vcmask 15368
    %801 = vst.msk [vmem:[#allocation2] sm:$0xff] %vm800, %v794
    %vm802 = vcmp.eq.s32.totalorder %v33, %v794
    %v803 = vsel %vm802, 1, 0
    %v804 = vcvt.s32.f32 %v803
    %v806 = vsel %vm66, %v804, 0
    %808 = vmatprep.subr.mxu0 0.0
    %809 = vmatpush1.msra.mxu0 0.0
    %810 = vmatprep.subr.mxu0 0.0
    %811 = vmatpush1.msra.mxu0 0.0
    %812 = vmatprep.subr.mxu0 0.0
    %813 = vmatpush1.msra.mxu0 0.0
    %814 = vmatprep.subr.mxu0 0.0
    %815 = vmatpush1.msra.mxu0 0.0
    %816 = vmatprep.subr.mxu0 0.0
    %817 = vmatpush1.msra.mxu0 0.0
    %818 = vmatprep.subr.mxu0 0.0
    %819 = vmatpush1.msra.mxu0 0.0
    %820 = vmatprep.subr.mxu0 0.0
    %821 = vmatpush1.msra.mxu0 0.0
    %822 = vmatprep.subr.mxu0 0.0
    %823 = vmatpush1.msra.mxu0 0.0
    %824 = vmatprep.subr.mxu0 0.0
    %825 = vmatpush1.msra.mxu0 0.0
    %826 = vmatprep.subr.mxu0 0.0
    %827 = vmatpush1.msra.mxu0 0.0
    %828 = vmatprep.subr.mxu0 0.0
    %829 = vmatpush1.msra.mxu0 0.0
    %830 = vmatprep.subr.mxu0 0.0
    %831 = vmatpush1.msra.mxu0 0.0
    %832 = vmatprep.subr.mxu0 0.0
    %833 = vmatpush1.msra.mxu0 0.0
    %834 = vmatprep.subr.mxu0 0.0
    %835 = vmatpush1.msra.mxu0 0.0
    %836 = vmatprep.subr.mxu0 0.0
    %837 = vmatpush1.msra.mxu0 %v44
    %838 = vmatprep.subr.mxu0 0.0
    %839 = vmatpush1.msra.mxu0 %v43
    %840 = vmatprep.subr.mxu0 0.0
    %841 = vmatpush2.msra.mxu0 0.0
    %842 = vmatprep.subr.mxu0 0.0
    %843 = vmatpush2.msra.mxu0 0.0
    %844 = vmatprep.subr.mxu0 0.0
    %845 = vmatpush2.msra.mxu0 0.0
    %846 = vmatprep.subr.mxu0 0.0
    %847 = vmatpush2.msra.mxu0 0.0
    %848 = vmatprep.subr.mxu0 0.0
    %849 = vmatpush2.msra.mxu0 0.0
    %850 = vmatprep.subr.mxu0 0.0
    %851 = vmatpush2.msra.mxu0 0.0
    %852 = vmatprep.subr.mxu0 0.0
    %853 = vmatpush2.msra.mxu0 0.0
    %854 = vmatprep.subr.mxu0 0.0
    %855 = vmatpush2.msra.mxu0 0.0
    %856 = vmatprep.subr.mxu0 0.0
    %857 = vmatpush2.msra.mxu0 0.0
    %858 = vmatprep.subr.mxu0 0.0
    %859 = vmatpush2.msra.mxu0 0.0
    %860 = vmatprep.subr.mxu0 0.0
    %861 = vmatpush2.msra.mxu0 0.0
    %862 = vmatprep.subr.mxu0 0.0
    %863 = vmatpush2.msra.mxu0 0.0
    %864 = vmatprep.subr.mxu0 0.0
    %865 = vmatpush2.msra.mxu0 0.0
    %866 = vmatprep.subr.mxu0 0.0
    %867 = vmatpush2.msra.mxu0 0.0
    %868 = vmatprep.subr.mxu0 0.0
    %869 = vmatpush2.msra.mxu0 0.0
    %870 = vmatprep.subr.mxu0 0.0
    %871 = vmatpush2.msra.mxu0 0.0
    %872 = vmatprep.mubr.f32.mxu0 0.0
    %873 = vmatmul.mubr.f32.gmra.mxu0 %v806
    %v874 = vpop.f32.mrf.mxu0
    %v875 = vadd.f32 %v64, %v874
    %v876 = vpop.f32.mrf.mxu0
    %877 = vdwg.mxu0
    %878 = vmatprep.subr.mxu0 0.0
    %879 = vmatpush1.msra.mxu0 0.0
    %880 = vmatprep.subr.mxu0 0.0
    %881 = vmatpush1.msra.mxu0 0.0
    %882 = vmatprep.subr.mxu0 0.0
    %883 = vmatpush1.msra.mxu0 0.0
    %884 = vmatprep.subr.mxu0 0.0
    %885 = vmatpush1.msra.mxu0 0.0
    %886 = vmatprep.subr.mxu0 0.0
    %887 = vmatpush1.msra.mxu0 0.0
    %888 = vmatprep.subr.mxu0 0.0
    %889 = vmatpush1.msra.mxu0 0.0
    %890 = vmatprep.subr.mxu0 0.0
    %891 = vmatpush1.msra.mxu0 0.0
    %892 = vmatprep.subr.mxu0 0.0
    %893 = vmatpush1.msra.mxu0 0.0
    %894 = vmatprep.subr.mxu0 0.0
    %895 = vmatpush1.msra.mxu0 0.0
    %896 = vmatprep.subr.mxu0 0.0
    %897 = vmatpush1.msra.mxu0 0.0
    %898 = vmatprep.subr.mxu0 0.0
    %899 = vmatpush1.msra.mxu0 0.0
    %900 = vmatprep.subr.mxu0 0.0
    %901 = vmatpush1.msra.mxu0 0.0
    %902 = vmatprep.subr.mxu0 0.0
    %903 = vmatpush1.msra.mxu0 %v48
    %904 = vmatprep.subr.mxu0 0.0
    %905 = vmatpush1.msra.mxu0 %v47
    %906 = vmatprep.subr.mxu0 0.0
    %907 = vmatpush1.msra.mxu0 %v46
    %908 = vmatprep.subr.mxu0 0.0
    %909 = vmatpush1.msra.mxu0 %v45
    %910 = vmatprep.subr.mxu0 0.0
    %911 = vmatpush2.msra.mxu0 0.0
    %912 = vmatprep.subr.mxu0 0.0
    %913 = vmatpush2.msra.mxu0 0.0
    %914 = vmatprep.subr.mxu0 0.0
    %915 = vmatpush2.msra.mxu0 0.0
    %916 = vmatprep.subr.mxu0 0.0
    %917 = vmatpush2.msra.mxu0 0.0
    %918 = vmatprep.subr.mxu0 0.0
    %919 = vmatpush2.msra.mxu0 0.0
    %920 = vmatprep.subr.mxu0 0.0
    %921 = vmatpush2.msra.mxu0 0.0
    %922 = vmatprep.subr.mxu0 0.0
    %923 = vmatpush2.msra.mxu0 0.0
    %924 = vmatprep.subr.mxu0 0.0
    %925 = vmatpush2.msra.mxu0 0.0
    %926 = vmatprep.subr.mxu0 0.0
    %927 = vmatpush2.msra.mxu0 0.0
    %928 = vmatprep.subr.mxu0 0.0
    %929 = vmatpush2.msra.mxu0 0.0
    %930 = vmatprep.subr.mxu0 0.0
    %931 = vmatpush2.msra.mxu0 0.0
    %932 = vmatprep.subr.mxu0 0.0
    %933 = vmatpush2.msra.mxu0 0.0
    %934 = vmatprep.subr.mxu0 0.0
    %935 = vmatpush2.msra.mxu0 0.0
    %936 = vmatprep.subr.mxu0 0.0
    %937 = vmatpush2.msra.mxu0 0.0
    %938 = vmatprep.subr.mxu0 0.0
    %939 = vmatpush2.msra.mxu0 0.0
    %940 = vmatprep.subr.mxu0 0.0
    %941 = vmatpush2.msra.mxu0 0.0
    %942 = vmatprep.mubr.f32.mxu0 0.0
    %943 = vmatmul.mubr.f32.gmra.mxu0 %v616
    %v944 = vpop.f32.mrf.mxu0
    %v945 = vadd.f32 %v144, %v944
    %v946 = vpop.f32.mrf.mxu0
    %947 = vdwg.mxu0
    %v948 = vadd.f32 %v875, %v945
    %v949 = vxor.u32 %v948, 2147483648
    %v950 = vmul.f32 %v949, 1.442695
    %v951 = vpow.pop %v950
    %v952 = vadd.f32 %v951, 1.0
    %v953 = vrcp.pop %v952
    %v954 = vmul.f32 1.0, %v953
    %956 = vrot.lane.b32.xlu0 %v945, 64
    %v957 = vpop.permute.xlu0 %956
    %v959 = vmul.f32 %v954, %v957
    %961 = vrot.lane.b32.xlu0 %v959, 64
    %v962 = vpop.permute.xlu0 %961
    %v964 = vadd.f32 %v875, %v962
    %v965 = vtanh.pop %v964
    %v966 = vsub.f32 1.0, %v954
    %968 = vrot.lane.b32.xlu0 %v965, 96
    %v969 = vpop.permute.xlu0 %968
    %v971 = vmul.f32 %v966, %v969
    %v972 = vmul.f32 %v954, %v612
    %v973 = vadd.f32 %v971, %v972
    %975 = vrot.lane.b32.xlu0 %v973, 96
    %v976 = vpop.permute.xlu0 %975
    %v977 = vsel %vm146, %v976, 0
    %979 = vmatprep.subr.mxu0 0.0
    %980 = vmatpush1.msra.mxu0 0.0
    %981 = vmatprep.subr.mxu0 0.0
    %982 = vmatpush1.msra.mxu0 0.0
    %983 = vmatprep.subr.mxu0 0.0
    %984 = vmatpush1.msra.mxu0 0.0
    %985 = vmatprep.subr.mxu0 0.0
    %986 = vmatpush1.msra.mxu0 0.0
    %987 = vmatprep.subr.mxu0 0.0
    %988 = vmatpush1.msra.mxu0 0.0
    %989 = vmatprep.subr.mxu0 0.0
    %990 = vmatpush1.msra.mxu0 0.0
    %991 = vmatprep.subr.mxu0 0.0
    %992 = vmatpush1.msra.mxu0 0.0
    %993 = vmatprep.subr.mxu0 0.0
    %994 = vmatpush1.msra.mxu0 0.0
    %995 = vmatprep.subr.mxu0 0.0
    %996 = vmatpush1.msra.mxu0 0.0
    %997 = vmatprep.subr.mxu0 0.0
    %998 = vmatpush1.msra.mxu0 0.0
    %999 = vmatprep.subr.mxu0 0.0
    %1000 = vmatpush1.msra.mxu0 0.0
    %1001 = vmatprep.subr.mxu0 0.0
    %1002 = vmatpush1.msra.mxu0 0.0
    %1003 = vmatprep.subr.mxu0 0.0
    %1004 = vmatpush1.msra.mxu0 %v54
    %1005 = vmatprep.subr.mxu0 0.0
    %1006 = vmatpush1.msra.mxu0 %v53
    %1007 = vmatprep.subr.mxu0 0.0
    %1008 = vmatpush1.msra.mxu0 %v52
    %1009 = vmatprep.subr.mxu0 0.0
    %1010 = vmatpush1.msra.mxu0 %v51
    %1011 = vmatprep.subr.mxu0 0.0
    %1012 = vmatpush2.msra.mxu0 0.0
    %1013 = vmatprep.subr.mxu0 0.0
    %1014 = vmatpush2.msra.mxu0 0.0
    %1015 = vmatprep.subr.mxu0 0.0
    %1016 = vmatpush2.msra.mxu0 0.0
    %1017 = vmatprep.subr.mxu0 0.0
    %1018 = vmatpush2.msra.mxu0 0.0
    %1019 = vmatprep.subr.mxu0 0.0
    %1020 = vmatpush2.msra.mxu0 0.0
    %1021 = vmatprep.subr.mxu0 0.0
    %1022 = vmatpush2.msra.mxu0 0.0
    %1023 = vmatprep.subr.mxu0 0.0
    %1024 = vmatpush2.msra.mxu0 0.0
    %1025 = vmatprep.subr.mxu0 0.0
    %1026 = vmatpush2.msra.mxu0 0.0
    %1027 = vmatprep.subr.mxu0 0.0
    %1028 = vmatpush2.msra.mxu0 0.0
    %1029 = vmatprep.subr.mxu0 0.0
    %1030 = vmatpush2.msra.mxu0 0.0
    %1031 = vmatprep.subr.mxu0 0.0
    %1032 = vmatpush2.msra.mxu0 0.0
    %1033 = vmatprep.subr.mxu0 0.0
    %1034 = vmatpush2.msra.mxu0 0.0
    %1035 = vmatprep.subr.mxu0 0.0
    %1036 = vmatpush2.msra.mxu0 0.0
    %1037 = vmatprep.subr.mxu0 0.0
    %1038 = vmatpush2.msra.mxu0 0.0
    %1039 = vmatprep.subr.mxu0 0.0
    %1040 = vmatpush2.msra.mxu0 0.0
    %1041 = vmatprep.subr.mxu0 0.0
    %1042 = vmatpush2.msra.mxu0 0.0
    %1043 = vmatprep.mubr.f32.mxu0 0.0
    %1044 = vmatmul.mubr.f32.gmra.mxu0 %v977
    %v1045 = vpop.f32.mrf.mxu0
    %v1046 = vadd.f32 %v253, %v1045
    %v1047 = vpop.f32.mrf.mxu0
    %1048 = vdwg.mxu0
    %v1049 = vsel %vm66, %v1046, -inf
    %1050 = vmax.xlane.f32.xlu0 %v1049
    %v1051 = vpop.xlane.xlu0 %1050
    %v1052 = vsub.f32 %v1046, %v1051
    %v1053 = vmul.f32 %v1052, 1.442695
    %v1054 = vpow.pop %v1053
    %v1055 = vsel %vm66, %v1054, 0.0
    %1056 = vadd.xlane.f32.xlu0 %v1055
    %v1057 = vpop.xlane.xlu0 %1056
    %v1059 = vsel %vm66, %v1054, 0
    %1061 = vmatprep.subr.mxu0 0.0
    %1062 = vmatpush1.msra.mxu0 0.0
    %1063 = vmatprep.subr.mxu0 0.0
    %1064 = vmatpush1.msra.mxu0 0.0
    %1065 = vmatprep.subr.mxu0 0.0
    %1066 = vmatpush1.msra.mxu0 0.0
    %1067 = vmatprep.subr.mxu0 0.0
    %1068 = vmatpush1.msra.mxu0 0.0
    %1069 = vmatprep.subr.mxu0 0.0
    %1070 = vmatpush1.msra.mxu0 0.0
    %1071 = vmatprep.subr.mxu0 0.0
    %1072 = vmatpush1.msra.mxu0 0.0
    %1073 = vmatprep.subr.mxu0 0.0
    %1074 = vmatpush1.msra.mxu0 0.0
    %1075 = vmatprep.subr.mxu0 0.0
    %1076 = vmatpush1.msra.mxu0 0.0
    %1077 = vmatprep.subr.mxu0 0.0
    %1078 = vmatpush1.msra.mxu0 0.0
    %1079 = vmatprep.subr.mxu0 0.0
    %1080 = vmatpush1.msra.mxu0 0.0
    %1081 = vmatprep.subr.mxu0 0.0
    %1082 = vmatpush1.msra.mxu0 0.0
    %1083 = vmatprep.subr.mxu0 0.0
    %1084 = vmatpush1.msra.mxu0 0.0
    %1085 = vmatprep.subr.mxu0 0.0
    %1086 = vmatpush1.msra.mxu0 0.0
    %1087 = vmatprep.subr.mxu0 0.0
    %1088 = vmatpush1.msra.mxu0 0.0
    %1089 = vmatprep.subr.mxu0 0.0
    %1090 = vmatpush1.msra.mxu0 %v42
    %1091 = vmatprep.subr.mxu0 0.0
    %1092 = vmatpush1.msra.mxu0 %v41
    %1093 = vmatprep.subr.mxu0 0.0
    %1094 = vmatpush2.msra.mxu0 0.0
    %1095 = vmatprep.subr.mxu0 0.0
    %1096 = vmatpush2.msra.mxu0 0.0
    %1097 = vmatprep.subr.mxu0 0.0
    %1098 = vmatpush2.msra.mxu0 0.0
    %1099 = vmatprep.subr.mxu0 0.0
    %1100 = vmatpush2.msra.mxu0 0.0
    %1101 = vmatprep.subr.mxu0 0.0
    %1102 = vmatpush2.msra.mxu0 0.0
    %1103 = vmatprep.subr.mxu0 0.0
    %1104 = vmatpush2.msra.mxu0 0.0
    %1105 = vmatprep.subr.mxu0 0.0
    %1106 = vmatpush2.msra.mxu0 0.0
    %1107 = vmatprep.subr.mxu0 0.0
    %1108 = vmatpush2.msra.mxu0 0.0
    %1109 = vmatprep.subr.mxu0 0.0
    %1110 = vmatpush2.msra.mxu0 0.0
    %1111 = vmatprep.subr.mxu0 0.0
    %1112 = vmatpush2.msra.mxu0 0.0
    %1113 = vmatprep.subr.mxu0 0.0
    %1114 = vmatpush2.msra.mxu0 0.0
    %1115 = vmatprep.subr.mxu0 0.0
    %1116 = vmatpush2.msra.mxu0 0.0
    %1117 = vmatprep.subr.mxu0 0.0
    %1118 = vmatpush2.msra.mxu0 0.0
    %1119 = vmatprep.subr.mxu0 0.0
    %1120 = vmatpush2.msra.mxu0 0.0
    %1121 = vmatprep.subr.mxu0 0.0
    %1122 = vmatpush2.msra.mxu0 0.0
    %1123 = vmatprep.subr.mxu0 0.0
    %1124 = vmatpush2.msra.mxu0 0.0
    %1125 = vmatprep.mubr.f32.mxu0 0.0
    %1126 = vmatmul.mubr.f32.gmra.mxu0 %v1059
    %v1127 = vpop.f32.mrf.mxu0
    %v1128 = vadd.f32 0.0, %v1127
    %v1129 = vpop.f32.mrf.mxu0
    %1130 = vdwg.mxu0
    %v1131 = vld [vmem:[%s7] sm:$0xff]
    %v1132 = vmul.f32 %v1131, %v1057
    %1134 = vset.pattern.permute.xlu0 2
    %1135 = vperm.xlu0 %1134, %v1132
    %v1136 = vpop.permute.xlu0 %1135
    %vm1138 = vcmp.le.f32.partialorder %v1128, %v1136
    %v1139 = vsel %vm1138, 1, 0
    %v1140 = vsel %vm66, %v1139, 0
    %v1141 = vand.u32 %v1140, 65535
    %v1142 = vshrl.u32 %v1140, 16
    %v1143 = vcvt.s32.f32 %v1141
    %v1144 = vcvt.s32.f32 %v1142
    %1145 = vadd.xlane.f32.xlu0 %v1143
    %v1146 = vpop.xlane.xlu0 %1145
    %1147 = vadd.xlane.f32.xlu0 %v1144
    %v1148 = vpop.xlane.xlu0 %1147
    %v1149 = vcvt.f32.s32 %v1146
    %v1150 = vcvt.f32.s32 %v1148
    %v1151 = vshll.u32 %v1150, 16
    %v1152 = vadd.s32 %v1151, %v1149
    %vm1153 = vcmp.lt.s32.totalorder %v1152, 15
    %v1154 = vsel %vm1153, %v1152, 15
    %v1155 = vsel %vm799, %v1154, 0
    %vm1156 = vcmp.eq.s32.totalorder %v1155, 0
    %vm1157 = vmand %vm799, %vm1156
    %v1158 = vsel %vm1157, 3, %v797
    %vm1159 = vcmp.ne.s32.totalorder %v1155, 0
    %vm1160 = vmand %vm799, %vm1159
    %vm1161 = vcmask 23568
    %1162 = vst.msk [vmem:[#allocation2] sm:$0xff] %vm1161, %v1155
    %vm1163 = vcmp.eq.s32.totalorder %v33, %v1155
    %v1164 = vsel %vm1163, 1, 0
    %v1165 = vcvt.s32.f32 %v1164
    %v1167 = vsel %vm66, %v1165, 0
    %1169 = vmatprep.subr.mxu0 0.0
    %1170 = vmatpush1.msra.mxu0 0.0
    %1171 = vmatprep.subr.mxu0 0.0
    %1172 = vmatpush1.msra.mxu0 0.0
    %1173 = vmatprep.subr.mxu0 0.0
    %1174 = vmatpush1.msra.mxu0 0.0
    %1175 = vmatprep.subr.mxu0 0.0
    %1176 = vmatpush1.msra.mxu0 0.0
    %1177 = vmatprep.subr.mxu0 0.0
    %1178 = vmatpush1.msra.mxu0 0.0
    %1179 = vmatprep.subr.mxu0 0.0
    %1180 = vmatpush1.msra.mxu0 0.0
    %1181 = vmatprep.subr.mxu0 0.0
    %1182 = vmatpush1.msra.mxu0 0.0
    %1183 = vmatprep.subr.mxu0 0.0
    %1184 = vmatpush1.msra.mxu0 0.0
    %1185 = vmatprep.subr.mxu0 0.0
    %1186 = vmatpush1.msra.mxu0 0.0
    %1187 = vmatprep.subr.mxu0 0.0
    %1188 = vmatpush1.msra.mxu0 0.0
    %1189 = vmatprep.subr.mxu0 0.0
    %1190 = vmatpush1.msra.mxu0 0.0
    %1191 = vmatprep.subr.mxu0 0.0
    %1192 = vmatpush1.msra.mxu0 0.0
    %1193 = vmatprep.subr.mxu0 0.0
    %1194 = vmatpush1.msra.mxu0 0.0
    %1195 = vmatprep.subr.mxu0 0.0
    %1196 = vmatpush1.msra.mxu0 0.0
    %1197 = vmatprep.subr.mxu0 0.0
    %1198 = vmatpush1.msra.mxu0 %v44
    %1199 = vmatprep.subr.mxu0 0.0
    %1200 = vmatpush1.msra.mxu0 %v43
    %1201 = vmatprep.subr.mxu0 0.0
    %1202 = vmatpush2.msra.mxu0 0.0
    %1203 = vmatprep.subr.mxu0 0.0
    %1204 = vmatpush2.msra.mxu0 0.0
    %1205 = vmatprep.subr.mxu0 0.0
    %1206 = vmatpush2.msra.mxu0 0.0
    %1207 = vmatprep.subr.mxu0 0.0
    %1208 = vmatpush2.msra.mxu0 0.0
    %1209 = vmatprep.subr.mxu0 0.0
    %1210 = vmatpush2.msra.mxu0 0.0
    %1211 = vmatprep.subr.mxu0 0.0
    %1212 = vmatpush2.msra.mxu0 0.0
    %1213 = vmatprep.subr.mxu0 0.0
    %1214 = vmatpush2.msra.mxu0 0.0
    %1215 = vmatprep.subr.mxu0 0.0
    %1216 = vmatpush2.msra.mxu0 0.0
    %1217 = vmatprep.subr.mxu0 0.0
    %1218 = vmatpush2.msra.mxu0 0.0
    %1219 = vmatprep.subr.mxu0 0.0
    %1220 = vmatpush2.msra.mxu0 0.0
    %1221 = vmatprep.subr.mxu0 0.0
    %1222 = vmatpush2.msra.mxu0 0.0
    %1223 = vmatprep.subr.mxu0 0.0
    %1224 = vmatpush2.msra.mxu0 0.0
    %1225 = vmatprep.subr.mxu0 0.0
    %1226 = vmatpush2.msra.mxu0 0.0
    %1227 = vmatprep.subr.mxu0 0.0
    %1228 = vmatpush2.msra.mxu0 0.0
    %1229 = vmatprep.subr.mxu0 0.0
    %1230 = vmatpush2.msra.mxu0 0.0
    %1231 = vmatprep.subr.mxu0 0.0
    %1232 = vmatpush2.msra.mxu0 0.0
    %1233 = vmatprep.mubr.f32.mxu0 0.0
    %1234 = vmatmul.mubr.f32.gmra.mxu0 %v1167
    %v1235 = vpop.f32.mrf.mxu0
    %v1236 = vadd.f32 %v64, %v1235
    %v1237 = vpop.f32.mrf.mxu0
    %1238 = vdwg.mxu0
    %1239 = vmatprep.subr.mxu0 0.0
    %1240 = vmatpush1.msra.mxu0 0.0
    %1241 = vmatprep.subr.mxu0 0.0
    %1242 = vmatpush1.msra.mxu0 0.0
    %1243 = vmatprep.subr.mxu0 0.0
    %1244 = vmatpush1.msra.mxu0 0.0
    %1245 = vmatprep.subr.mxu0 0.0
    %1246 = vmatpush1.msra.mxu0 0.0
    %1247 = vmatprep.subr.mxu0 0.0
    %1248 = vmatpush1.msra.mxu0 0.0
    %1249 = vmatprep.subr.mxu0 0.0
    %1250 = vmatpush1.msra.mxu0 0.0
    %1251 = vmatprep.subr.mxu0 0.0
    %1252 = vmatpush1.msra.mxu0 0.0
    %1253 = vmatprep.subr.mxu0 0.0
    %1254 = vmatpush1.msra.mxu0 0.0
    %1255 = vmatprep.subr.mxu0 0.0
    %1256 = vmatpush1.msra.mxu0 0.0
    %1257 = vmatprep.subr.mxu0 0.0
    %1258 = vmatpush1.msra.mxu0 0.0
    %1259 = vmatprep.subr.mxu0 0.0
    %1260 = vmatpush1.msra.mxu0 0.0
    %1261 = vmatprep.subr.mxu0 0.0
    %1262 = vmatpush1.msra.mxu0 0.0
    %1263 = vmatprep.subr.mxu0 0.0
    %1264 = vmatpush1.msra.mxu0 %v48
    %1265 = vmatprep.subr.mxu0 0.0
    %1266 = vmatpush1.msra.mxu0 %v47
    %1267 = vmatprep.subr.mxu0 0.0
    %1268 = vmatpush1.msra.mxu0 %v46
    %1269 = vmatprep.subr.mxu0 0.0
    %1270 = vmatpush1.msra.mxu0 %v45
    %1271 = vmatprep.subr.mxu0 0.0
    %1272 = vmatpush2.msra.mxu0 0.0
    %1273 = vmatprep.subr.mxu0 0.0
    %1274 = vmatpush2.msra.mxu0 0.0
    %1275 = vmatprep.subr.mxu0 0.0
    %1276 = vmatpush2.msra.mxu0 0.0
    %1277 = vmatprep.subr.mxu0 0.0
    %1278 = vmatpush2.msra.mxu0 0.0
    %1279 = vmatprep.subr.mxu0 0.0
    %1280 = vmatpush2.msra.mxu0 0.0
    %1281 = vmatprep.subr.mxu0 0.0
    %1282 = vmatpush2.msra.mxu0 0.0
    %1283 = vmatprep.subr.mxu0 0.0
    %1284 = vmatpush2.msra.mxu0 0.0
    %1285 = vmatprep.subr.mxu0 0.0
    %1286 = vmatpush2.msra.mxu0 0.0
    %1287 = vmatprep.subr.mxu0 0.0
    %1288 = vmatpush2.msra.mxu0 0.0
    %1289 = vmatprep.subr.mxu0 0.0
    %1290 = vmatpush2.msra.mxu0 0.0
    %1291 = vmatprep.subr.mxu0 0.0
    %1292 = vmatpush2.msra.mxu0 0.0
    %1293 = vmatprep.subr.mxu0 0.0
    %1294 = vmatpush2.msra.mxu0 0.0
    %1295 = vmatprep.subr.mxu0 0.0
    %1296 = vmatpush2.msra.mxu0 0.0
    %1297 = vmatprep.subr.mxu0 0.0
    %1298 = vmatpush2.msra.mxu0 0.0
    %1299 = vmatprep.subr.mxu0 0.0
    %1300 = vmatpush2.msra.mxu0 0.0
    %1301 = vmatprep.subr.mxu0 0.0
    %1302 = vmatpush2.msra.mxu0 0.0
    %1303 = vmatprep.mubr.f32.mxu0 0.0
    %1304 = vmatmul.mubr.f32.gmra.mxu0 %v977
    %v1305 = vpop.f32.mrf.mxu0
    %v1306 = vadd.f32 %v144, %v1305
    %v1307 = vpop.f32.mrf.mxu0
    %1308 = vdwg.mxu0
    %v1309 = vadd.f32 %v1236, %v1306
    %v1310 = vxor.u32 %v1309, 2147483648
    %v1311 = vmul.f32 %v1310, 1.442695
    %v1312 = vpow.pop %v1311
    %v1313 = vadd.f32 %v1312, 1.0
    %v1314 = vrcp.pop %v1313
    %v1315 = vmul.f32 1.0, %v1314
    %1317 = vrot.lane.b32.xlu0 %v1306, 64
    %v1318 = vpop.permute.xlu0 %1317
    %v1320 = vmul.f32 %v1315, %v1318
    %1322 = vrot.lane.b32.xlu0 %v1320, 64
    %v1323 = vpop.permute.xlu0 %1322
    %v1325 = vadd.f32 %v1236, %v1323
    %v1326 = vtanh.pop %v1325
    %v1327 = vsub.f32 1.0, %v1315
    %1329 = vrot.lane.b32.xlu0 %v1326, 96
    %v1330 = vpop.permute.xlu0 %1329
    %v1332 = vmul.f32 %v1327, %v1330
    %v1333 = vmul.f32 %v1315, %v973
    %v1334 = vadd.f32 %v1332, %v1333
    %1336 = vrot.lane.b32.xlu0 %v1334, 96
    %v1337 = vpop.permute.xlu0 %1336
    %v1338 = vsel %vm146, %v1337, 0
    %1340 = vmatprep.subr.mxu0 0.0
    %1341 = vmatpush1.msra.mxu0 0.0
    %1342 = vmatprep.subr.mxu0 0.0
    %1343 = vmatpush1.msra.mxu0 0.0
    %1344 = vmatprep.subr.mxu0 0.0
    %1345 = vmatpush1.msra.mxu0 0.0
    %1346 = vmatprep.subr.mxu0 0.0
    %1347 = vmatpush1.msra.mxu0 0.0
    %1348 = vmatprep.subr.mxu0 0.0
    %1349 = vmatpush1.msra.mxu0 0.0
    %1350 = vmatprep.subr.mxu0 0.0
    %1351 = vmatpush1.msra.mxu0 0.0
    %1352 = vmatprep.subr.mxu0 0.0
    %1353 = vmatpush1.msra.mxu0 0.0
    %1354 = vmatprep.subr.mxu0 0.0
    %1355 = vmatpush1.msra.mxu0 0.0
    %1356 = vmatprep.subr.mxu0 0.0
    %1357 = vmatpush1.msra.mxu0 0.0
    %1358 = vmatprep.subr.mxu0 0.0
    %1359 = vmatpush1.msra.mxu0 0.0
    %1360 = vmatprep.subr.mxu0 0.0
    %1361 = vmatpush1.msra.mxu0 0.0
    %1362 = vmatprep.subr.mxu0 0.0
    %1363 = vmatpush1.msra.mxu0 0.0
    %1364 = vmatprep.subr.mxu0 0.0
    %1365 = vmatpush1.msra.mxu0 %v54
    %1366 = vmatprep.subr.mxu0 0.0
    %1367 = vmatpush1.msra.mxu0 %v53
    %1368 = vmatprep.subr.mxu0 0.0
    %1369 = vmatpush1.msra.mxu0 %v52
    %1370 = vmatprep.subr.mxu0 0.0
    %1371 = vmatpush1.msra.mxu0 %v51
    %1372 = vmatprep.subr.mxu0 0.0
    %1373 = vmatpush2.msra.mxu0 0.0
    %1374 = vmatprep.subr.mxu0 0.0
    %1375 = vmatpush2.msra.mxu0 0.0
    %1376 = vmatprep.subr.mxu0 0.0
    %1377 = vmatpush2.msra.mxu0 0.0
    %1378 = vmatprep.subr.mxu0 0.0
    %1379 = vmatpush2.msra.mxu0 0.0
    %1380 = vmatprep.subr.mxu0 0.0
    %1381 = vmatpush2.msra.mxu0 0.0
    %1382 = vmatprep.subr.mxu0 0.0
    %1383 = vmatpush2.msra.mxu0 0.0
    %1384 = vmatprep.subr.mxu0 0.0
    %1385 = vmatpush2.msra.mxu0 0.0
    %1386 = vmatprep.subr.mxu0 0.0
    %1387 = vmatpush2.msra.mxu0 0.0
    %1388 = vmatprep.subr.mxu0 0.0
    %1389 = vmatpush2.msra.mxu0 0.0
    %1390 = vmatprep.subr.mxu0 0.0
    %1391 = vmatpush2.msra.mxu0 0.0
    %1392 = vmatprep.subr.mxu0 0.0
    %1393 = vmatpush2.msra.mxu0 0.0
    %1394 = vmatprep.subr.mxu0 0.0
    %1395 = vmatpush2.msra.mxu0 0.0
    %1396 = vmatprep.subr.mxu0 0.0
    %1397 = vmatpush2.msra.mxu0 0.0
    %1398 = vmatprep.subr.mxu0 0.0
    %1399 = vmatpush2.msra.mxu0 0.0
    %1400 = vmatprep.subr.mxu0 0.0
    %1401 = vmatpush2.msra.mxu0 0.0
    %1402 = vmatprep.subr.mxu0 0.0
    %1403 = vmatpush2.msra.mxu0 0.0
    %1404 = vmatprep.mubr.f32.mxu0 0.0
    %1405 = vmatmul.mubr.f32.gmra.mxu0 %v1338
    %v1406 = vpop.f32.mrf.mxu0
    %v1407 = vadd.f32 %v253, %v1406
    %v1408 = vpop.f32.mrf.mxu0
    %1409 = vdwg.mxu0
    %v1410 = vsel %vm66, %v1407, -inf
    %1411 = vmax.xlane.f32.xlu0 %v1410
    %v1412 = vpop.xlane.xlu0 %1411
    %v1413 = vsub.f32 %v1407, %v1412
    %v1414 = vmul.f32 %v1413, 1.442695
    %v1415 = vpow.pop %v1414
    %v1416 = vsel %vm66, %v1415, 0.0
    %1417 = vadd.xlane.f32.xlu0 %v1416
    %v1418 = vpop.xlane.xlu0 %1417
    %v1420 = vsel %vm66, %v1415, 0
    %1422 = vmatprep.subr.mxu0 0.0
    %1423 = vmatpush1.msra.mxu0 0.0
    %1424 = vmatprep.subr.mxu0 0.0
    %1425 = vmatpush1.msra.mxu0 0.0
    %1426 = vmatprep.subr.mxu0 0.0
    %1427 = vmatpush1.msra.mxu0 0.0
    %1428 = vmatprep.subr.mxu0 0.0
    %1429 = vmatpush1.msra.mxu0 0.0
    %1430 = vmatprep.subr.mxu0 0.0
    %1431 = vmatpush1.msra.mxu0 0.0
    %1432 = vmatprep.subr.mxu0 0.0
    %1433 = vmatpush1.msra.mxu0 0.0
    %1434 = vmatprep.subr.mxu0 0.0
    %1435 = vmatpush1.msra.mxu0 0.0
    %1436 = vmatprep.subr.mxu0 0.0
    %1437 = vmatpush1.msra.mxu0 0.0
    %1438 = vmatprep.subr.mxu0 0.0
    %1439 = vmatpush1.msra.mxu0 0.0
    %1440 = vmatprep.subr.mxu0 0.0
    %1441 = vmatpush1.msra.mxu0 0.0
    %1442 = vmatprep.subr.mxu0 0.0
    %1443 = vmatpush1.msra.mxu0 0.0
    %1444 = vmatprep.subr.mxu0 0.0
    %1445 = vmatpush1.msra.mxu0 0.0
    %1446 = vmatprep.subr.mxu0 0.0
    %1447 = vmatpush1.msra.mxu0 0.0
    %1448 = vmatprep.subr.mxu0 0.0
    %1449 = vmatpush1.msra.mxu0 0.0
    %1450 = vmatprep.subr.mxu0 0.0
    %1451 = vmatpush1.msra.mxu0 %v42
    %1452 = vmatprep.subr.mxu0 0.0
    %1453 = vmatpush1.msra.mxu0 %v41
    %1454 = vmatprep.subr.mxu0 0.0
    %1455 = vmatpush2.msra.mxu0 0.0
    %1456 = vmatprep.subr.mxu0 0.0
    %1457 = vmatpush2.msra.mxu0 0.0
    %1458 = vmatprep.subr.mxu0 0.0
    %1459 = vmatpush2.msra.mxu0 0.0
    %1460 = vmatprep.subr.mxu0 0.0
    %1461 = vmatpush2.msra.mxu0 0.0
    %1462 = vmatprep.subr.mxu0 0.0
    %1463 = vmatpush2.msra.mxu0 0.0
    %1464 = vmatprep.subr.mxu0 0.0
    %1465 = vmatpush2.msra.mxu0 0.0
    %1466 = vmatprep.subr.mxu0 0.0
    %1467 = vmatpush2.msra.mxu0 0.0
    %1468 = vmatprep.subr.mxu0 0.0
    %1469 = vmatpush2.msra.mxu0 0.0
    %1470 = vmatprep.subr.mxu0 0.0
    %1471 = vmatpush2.msra.mxu0 0.0
    %1472 = vmatprep.subr.mxu0 0.0
    %1473 = vmatpush2.msra.mxu0 0.0
    %1474 = vmatprep.subr.mxu0 0.0
    %1475 = vmatpush2.msra.mxu0 0.0
    %1476 = vmatprep.subr.mxu0 0.0
    %1477 = vmatpush2.msra.mxu0 0.0
    %1478 = vmatprep.subr.mxu0 0.0
    %1479 = vmatpush2.msra.mxu0 0.0
    %1480 = vmatprep.subr.mxu0 0.0
    %1481 = vmatpush2.msra.mxu0 0.0
    %1482 = vmatprep.subr.mxu0 0.0
    %1483 = vmatpush2.msra.mxu0 0.0
    %1484 = vmatprep.subr.mxu0 0.0
    %1485 = vmatpush2.msra.mxu0 0.0
    %1486 = vmatprep.mubr.f32.mxu0 0.0
    %1487 = vmatmul.mubr.f32.gmra.mxu0 %v1420
    %v1488 = vpop.f32.mrf.mxu0
    %v1489 = vadd.f32 0.0, %v1488
    %v1490 = vpop.f32.mrf.mxu0
    %1491 = vdwg.mxu0
    %v1492 = vld [vmem:[%s7] sm:$0xff]
    %v1493 = vmul.f32 %v1492, %v1418
    %1495 = vset.pattern.permute.xlu0 3
    %1496 = vperm.xlu0 %1495, %v1493
    %v1497 = vpop.permute.xlu0 %1496
    %vm1499 = vcmp.le.f32.partialorder %v1489, %v1497
    %v1500 = vsel %vm1499, 1, 0
    %v1501 = vsel %vm66, %v1500, 0
    %v1502 = vand.u32 %v1501, 65535
    %v1503 = vshrl.u32 %v1501, 16
    %v1504 = vcvt.s32.f32 %v1502
    %v1505 = vcvt.s32.f32 %v1503
    %1506 = vadd.xlane.f32.xlu0 %v1504
    %v1507 = vpop.xlane.xlu0 %1506
    %1508 = vadd.xlane.f32.xlu0 %v1505
    %v1509 = vpop.xlane.xlu0 %1508
    %v1510 = vcvt.f32.s32 %v1507
    %v1511 = vcvt.f32.s32 %v1509
    %v1512 = vshll.u32 %v1511, 16
    %v1513 = vadd.s32 %v1512, %v1510
    %vm1514 = vcmp.lt.s32.totalorder %v1513, 15
    %v1515 = vsel %vm1514, %v1513, 15
    %v1516 = vsel %vm1160, %v1515, 0
    %vm1517 = vcmp.eq.s32.totalorder %v1516, 0
    %vm1518 = vmand %vm1160, %vm1517
    %v1519 = vsel %vm1518, 4, %v1158
    %vm1520 = vcmp.ne.s32.totalorder %v1516, 0
    %vm1521 = vmand %vm1160, %vm1520
    %vm1522 = vcmask 31768
    %1523 = vst.msk [vmem:[#allocation2] sm:$0xff] %vm1522, %v1516
    %vm1524 = vcmp.eq.s32.totalorder %v33, %v1516
    %v1525 = vsel %vm1524, 1, 0
    %v1526 = vcvt.s32.f32 %v1525
    %v1528 = vsel %vm66, %v1526, 0
    %1530 = vmatprep.subr.mxu0 0.0
    %1531 = vmatpush1.msra.mxu0 0.0
    %1532 = vmatprep.subr.mxu0 0.0
    %1533 = vmatpush1.msra.mxu0 0.0
    %1534 = vmatprep.subr.mxu0 0.0
    %1535 = vmatpush1.msra.mxu0 0.0
    %1536 = vmatprep.subr.mxu0 0.0
    %1537 = vmatpush1.msra.mxu0 0.0
    %1538 = vmatprep.subr.mxu0 0.0
    %1539 = vmatpush1.msra.mxu0 0.0
    %1540 = vmatprep.subr.mxu0 0.0
    %1541 = vmatpush1.msra.mxu0 0.0
    %1542 = vmatprep.subr.mxu0 0.0
    %1543 = vmatpush1.msra.mxu0 0.0
    %1544 = vmatprep.subr.mxu0 0.0
    %1545 = vmatpush1.msra.mxu0 0.0
    %1546 = vmatprep.subr.mxu0 0.0
    %1547 = vmatpush1.msra.mxu0 0.0
    %1548 = vmatprep.subr.mxu0 0.0
    %1549 = vmatpush1.msra.mxu0 0.0
    %1550 = vmatprep.subr.mxu0 0.0
    %1551 = vmatpush1.msra.mxu0 0.0
    %1552 = vmatprep.subr.mxu0 0.0
    %1553 = vmatpush1.msra.mxu0 0.0
    %1554 = vmatprep.subr.mxu0 0.0
    %1555 = vmatpush1.msra.mxu0 0.0
    %1556 = vmatprep.subr.mxu0 0.0
    %1557 = vmatpush1.msra.mxu0 0.0
    %1558 = vmatprep.subr.mxu0 0.0
    %1559 = vmatpush1.msra.mxu0 %v44
    %1560 = vmatprep.subr.mxu0 0.0
    %1561 = vmatpush1.msra.mxu0 %v43
    %1562 = vmatprep.subr.mxu0 0.0
    %1563 = vmatpush2.msra.mxu0 0.0
    %1564 = vmatprep.subr.mxu0 0.0
    %1565 = vmatpush2.msra.mxu0 0.0
    %1566 = vmatprep.subr.mxu0 0.0
    %1567 = vmatpush2.msra.mxu0 0.0
    %1568 = vmatprep.subr.mxu0 0.0
    %1569 = vmatpush2.msra.mxu0 0.0
    %1570 = vmatprep.subr.mxu0 0.0
    %1571 = vmatpush2.msra.mxu0 0.0
    %1572 = vmatprep.subr.mxu0 0.0
    %1573 = vmatpush2.msra.mxu0 0.0
    %1574 = vmatprep.subr.mxu0 0.0
    %1575 = vmatpush2.msra.mxu0 0.0
    %1576 = vmatprep.subr.mxu0 0.0
    %1577 = vmatpush2.msra.mxu0 0.0
    %1578 = vmatprep.subr.mxu0 0.0
    %1579 = vmatpush2.msra.mxu0 0.0
    %1580 = vmatprep.subr.mxu0 0.0
    %1581 = vmatpush2.msra.mxu0 0.0
    %1582 = vmatprep.subr.mxu0 0.0
    %1583 = vmatpush2.msra.mxu0 0.0
    %1584 = vmatprep.subr.mxu0 0.0
    %1585 = vmatpush2.msra.mxu0 0.0
    %1586 = vmatprep.subr.mxu0 0.0
    %1587 = vmatpush2.msra.mxu0 0.0
    %1588 = vmatprep.subr.mxu0 0.0
    %1589 = vmatpush2.msra.mxu0 0.0
    %1590 = vmatprep.subr.mxu0 0.0
    %1591 = vmatpush2.msra.mxu0 0.0
    %1592 = vmatprep.subr.mxu0 0.0
    %1593 = vmatpush2.msra.mxu0 0.0
    %1594 = vmatprep.mubr.f32.mxu0 0.0
    %1595 = vmatmul.mubr.f32.gmra.mxu0 %v1528
    %v1596 = vpop.f32.mrf.mxu0
    %v1597 = vadd.f32 %v64, %v1596
    %v1598 = vpop.f32.mrf.mxu0
    %1599 = vdwg.mxu0
    %1600 = vmatprep.subr.mxu0 0.0
    %1601 = vmatpush1.msra.mxu0 0.0
    %1602 = vmatprep.subr.mxu0 0.0
    %1603 = vmatpush1.msra.mxu0 0.0
    %1604 = vmatprep.subr.mxu0 0.0
    %1605 = vmatpush1.msra.mxu0 0.0
    %1606 = vmatprep.subr.mxu0 0.0
    %1607 = vmatpush1.msra.mxu0 0.0
    %1608 = vmatprep.subr.mxu0 0.0
    %1609 = vmatpush1.msra.mxu0 0.0
    %1610 = vmatprep.subr.mxu0 0.0
    %1611 = vmatpush1.msra.mxu0 0.0
    %1612 = vmatprep.subr.mxu0 0.0
    %1613 = vmatpush1.msra.mxu0 0.0
    %1614 = vmatprep.subr.mxu0 0.0
    %1615 = vmatpush1.msra.mxu0 0.0
    %1616 = vmatprep.subr.mxu0 0.0
    %1617 = vmatpush1.msra.mxu0 0.0
    %1618 = vmatprep.subr.mxu0 0.0
    %1619 = vmatpush1.msra.mxu0 0.0
    %1620 = vmatprep.subr.mxu0 0.0
    %1621 = vmatpush1.msra.mxu0 0.0
    %1622 = vmatprep.subr.mxu0 0.0
    %1623 = vmatpush1.msra.mxu0 0.0
    %1624 = vmatprep.subr.mxu0 0.0
    %1625 = vmatpush1.msra.mxu0 %v48
    %1626 = vmatprep.subr.mxu0 0.0
    %1627 = vmatpush1.msra.mxu0 %v47
    %1628 = vmatprep.subr.mxu0 0.0
    %1629 = vmatpush1.msra.mxu0 %v46
    %1630 = vmatprep.subr.mxu0 0.0
    %1631 = vmatpush1.msra.mxu0 %v45
    %1632 = vmatprep.subr.mxu0 0.0
    %1633 = vmatpush2.msra.mxu0 0.0
    %1634 = vmatprep.subr.mxu0 0.0
    %1635 = vmatpush2.msra.mxu0 0.0
    %1636 = vmatprep.subr.mxu0 0.0
    %1637 = vmatpush2.msra.mxu0 0.0
    %1638 = vmatprep.subr.mxu0 0.0
    %1639 = vmatpush2.msra.mxu0 0.0
    %1640 = vmatprep.subr.mxu0 0.0
    %1641 = vmatpush2.msra.mxu0 0.0
    %1642 = vmatprep.subr.mxu0 0.0
    %1643 = vmatpush2.msra.mxu0 0.0
    %1644 = vmatprep.subr.mxu0 0.0
    %1645 = vmatpush2.msra.mxu0 0.0
    %1646 = vmatprep.subr.mxu0 0.0
    %1647 = vmatpush2.msra.mxu0 0.0
    %1648 = vmatprep.subr.mxu0 0.0
    %1649 = vmatpush2.msra.mxu0 0.0
    %1650 = vmatprep.subr.mxu0 0.0
    %1651 = vmatpush2.msra.mxu0 0.0
    %1652 = vmatprep.subr.mxu0 0.0
    %1653 = vmatpush2.msra.mxu0 0.0
    %1654 = vmatprep.subr.mxu0 0.0
    %1655 = vmatpush2.msra.mxu0 0.0
    %1656 = vmatprep.subr.mxu0 0.0
    %1657 = vmatpush2.msra.mxu0 0.0
    %1658 = vmatprep.subr.mxu0 0.0
    %1659 = vmatpush2.msra.mxu0 0.0
    %1660 = vmatprep.subr.mxu0 0.0
    %1661 = vmatpush2.msra.mxu0 0.0
    %1662 = vmatprep.subr.mxu0 0.0
    %1663 = vmatpush2.msra.mxu0 0.0
    %1664 = vmatprep.mubr.f32.mxu0 0.0
    %1665 = vmatmul.mubr.f32.gmra.mxu0 %v1338
    %v1666 = vpop.f32.mrf.mxu0
    %v1667 = vadd.f32 %v144, %v1666
    %v1668 = vpop.f32.mrf.mxu0
    %1669 = vdwg.mxu0
    %v1670 = vadd.f32 %v1597, %v1667
    %v1671 = vxor.u32 %v1670, 2147483648
    %v1672 = vmul.f32 %v1671, 1.442695
    %v1673 = vpow.pop %v1672
    %v1674 = vadd.f32 %v1673, 1.0
    %v1675 = vrcp.pop %v1674
    %v1676 = vmul.f32 1.0, %v1675
    %1678 = vrot.lane.b32.xlu0 %v1667, 64
    %v1679 = vpop.permute.xlu0 %1678
    %v1681 = vmul.f32 %v1676, %v1679
    %1683 = vrot.lane.b32.xlu0 %v1681, 64
    %v1684 = vpop.permute.xlu0 %1683
    %v1686 = vadd.f32 %v1597, %v1684
    %v1687 = vtanh.pop %v1686
    %v1688 = vsub.f32 1.0, %v1676
    %1690 = vrot.lane.b32.xlu0 %v1687, 96
    %v1691 = vpop.permute.xlu0 %1690
    %v1693 = vmul.f32 %v1688, %v1691
    %v1694 = vmul.f32 %v1676, %v1334
    %v1695 = vadd.f32 %v1693, %v1694
    %1697 = vrot.lane.b32.xlu0 %v1695, 96
    %v1698 = vpop.permute.xlu0 %1697
    %v1699 = vsel %vm146, %v1698, 0
    %1701 = vmatprep.subr.mxu0 0.0
    %1702 = vmatpush1.msra.mxu0 0.0
    %1703 = vmatprep.subr.mxu0 0.0
    %1704 = vmatpush1.msra.mxu0 0.0
    %1705 = vmatprep.subr.mxu0 0.0
    %1706 = vmatpush1.msra.mxu0 0.0
    %1707 = vmatprep.subr.mxu0 0.0
    %1708 = vmatpush1.msra.mxu0 0.0
    %1709 = vmatprep.subr.mxu0 0.0
    %1710 = vmatpush1.msra.mxu0 0.0
    %1711 = vmatprep.subr.mxu0 0.0
    %1712 = vmatpush1.msra.mxu0 0.0
    %1713 = vmatprep.subr.mxu0 0.0
    %1714 = vmatpush1.msra.mxu0 0.0
    %1715 = vmatprep.subr.mxu0 0.0
    %1716 = vmatpush1.msra.mxu0 0.0
    %1717 = vmatprep.subr.mxu0 0.0
    %1718 = vmatpush1.msra.mxu0 0.0
    %1719 = vmatprep.subr.mxu0 0.0
    %1720 = vmatpush1.msra.mxu0 0.0
    %1721 = vmatprep.subr.mxu0 0.0
    %1722 = vmatpush1.msra.mxu0 0.0
    %1723 = vmatprep.subr.mxu0 0.0
    %1724 = vmatpush1.msra.mxu0 0.0
    %1725 = vmatprep.subr.mxu0 0.0
    %1726 = vmatpush1.msra.mxu0 %v54
    %1727 = vmatprep.subr.mxu0 0.0
    %1728 = vmatpush1.msra.mxu0 %v53
    %1729 = vmatprep.subr.mxu0 0.0
    %1730 = vmatpush1.msra.mxu0 %v52
    %1731 = vmatprep.subr.mxu0 0.0
    %1732 = vmatpush1.msra.mxu0 %v51
    %1733 = vmatprep.subr.mxu0 0.0
    %1734 = vmatpush2.msra.mxu0 0.0
    %1735 = vmatprep.subr.mxu0 0.0
    %1736 = vmatpush2.msra.mxu0 0.0
    %1737 = vmatprep.subr.mxu0 0.0
    %1738 = vmatpush2.msra.mxu0 0.0
    %1739 = vmatprep.subr.mxu0 0.0
    %1740 = vmatpush2.msra.mxu0 0.0
    %1741 = vmatprep.subr.mxu0 0.0
    %1742 = vmatpush2.msra.mxu0 0.0
    %1743 = vmatprep.subr.mxu0 0.0
    %1744 = vmatpush2.msra.mxu0 0.0
    %1745 = vmatprep.subr.mxu0 0.0
    %1746 = vmatpush2.msra.mxu0 0.0
    %1747 = vmatprep.subr.mxu0 0.0
    %1748 = vmatpush2.msra.mxu0 0.0
    %1749 = vmatprep.subr.mxu0 0.0
    %1750 = vmatpush2.msra.mxu0 0.0
    %1751 = vmatprep.subr.mxu0 0.0
    %1752 = vmatpush2.msra.mxu0 0.0
    %1753 = vmatprep.subr.mxu0 0.0
    %1754 = vmatpush2.msra.mxu0 0.0
    %1755 = vmatprep.subr.mxu0 0.0
    %1756 = vmatpush2.msra.mxu0 0.0
    %1757 = vmatprep.subr.mxu0 0.0
    %1758 = vmatpush2.msra.mxu0 0.0
    %1759 = vmatprep.subr.mxu0 0.0
    %1760 = vmatpush2.msra.mxu0 0.0
    %1761 = vmatprep.subr.mxu0 0.0
    %1762 = vmatpush2.msra.mxu0 0.0
    %1763 = vmatprep.subr.mxu0 0.0
    %1764 = vmatpush2.msra.mxu0 0.0
    %1765 = vmatprep.mubr.f32.mxu0 0.0
    %1766 = vmatmul.mubr.f32.gmra.mxu0 %v1699
    %v1767 = vpop.f32.mrf.mxu0
    %v1768 = vadd.f32 %v253, %v1767
    %v1769 = vpop.f32.mrf.mxu0
    %1770 = vdwg.mxu0
    %v1771 = vsel %vm66, %v1768, -inf
    %1772 = vmax.xlane.f32.xlu0 %v1771
    %v1773 = vpop.xlane.xlu0 %1772
    %v1774 = vsub.f32 %v1768, %v1773
    %v1775 = vmul.f32 %v1774, 1.442695
    %v1776 = vpow.pop %v1775
    %v1777 = vsel %vm66, %v1776, 0.0
    %1778 = vadd.xlane.f32.xlu0 %v1777
    %v1779 = vpop.xlane.xlu0 %1778
    %v1781 = vsel %vm66, %v1776, 0
    %1783 = vmatprep.subr.mxu0 0.0
    %1784 = vmatpush1.msra.mxu0 0.0
    %1785 = vmatprep.subr.mxu0 0.0
    %1786 = vmatpush1.msra.mxu0 0.0
    %1787 = vmatprep.subr.mxu0 0.0
    %1788 = vmatpush1.msra.mxu0 0.0
    %1789 = vmatprep.subr.mxu0 0.0
    %1790 = vmatpush1.msra.mxu0 0.0
    %1791 = vmatprep.subr.mxu0 0.0
    %1792 = vmatpush1.msra.mxu0 0.0
    %1793 = vmatprep.subr.mxu0 0.0
    %1794 = vmatpush1.msra.mxu0 0.0
    %1795 = vmatprep.subr.mxu0 0.0
    %1796 = vmatpush1.msra.mxu0 0.0
    %1797 = vmatprep.subr.mxu0 0.0
    %1798 = vmatpush1.msra.mxu0 0.0
    %1799 = vmatprep.subr.mxu0 0.0
    %1800 = vmatpush1.msra.mxu0 0.0
    %1801 = vmatprep.subr.mxu0 0.0
    %1802 = vmatpush1.msra.mxu0 0.0
    %1803 = vmatprep.subr.mxu0 0.0
    %1804 = vmatpush1.msra.mxu0 0.0
    %1805 = vmatprep.subr.mxu0 0.0
    %1806 = vmatpush1.msra.mxu0 0.0
    %1807 = vmatprep.subr.mxu0 0.0
    %1808 = vmatpush1.msra.mxu0 0.0
    %1809 = vmatprep.subr.mxu0 0.0
    %1810 = vmatpush1.msra.mxu0 0.0
    %1811 = vmatprep.subr.mxu0 0.0
    %1812 = vmatpush1.msra.mxu0 %v42
    %1813 = vmatprep.subr.mxu0 0.0
    %1814 = vmatpush1.msra.mxu0 %v41
    %1815 = vmatprep.subr.mxu0 0.0
    %1816 = vmatpush2.msra.mxu0 0.0
    %1817 = vmatprep.subr.mxu0 0.0
    %1818 = vmatpush2.msra.mxu0 0.0
    %1819 = vmatprep.subr.mxu0 0.0
    %1820 = vmatpush2.msra.mxu0 0.0
    %1821 = vmatprep.subr.mxu0 0.0
    %1822 = vmatpush2.msra.mxu0 0.0
    %1823 = vmatprep.subr.mxu0 0.0
    %1824 = vmatpush2.msra.mxu0 0.0
    %1825 = vmatprep.subr.mxu0 0.0
    %1826 = vmatpush2.msra.mxu0 0.0
    %1827 = vmatprep.subr.mxu0 0.0
    %1828 = vmatpush2.msra.mxu0 0.0
    %1829 = vmatprep.subr.mxu0 0.0
    %1830 = vmatpush2.msra.mxu0 0.0
    %1831 = vmatprep.subr.mxu0 0.0
    %1832 = vmatpush2.msra.mxu0 0.0
    %1833 = vmatprep.subr.mxu0 0.0
    %1834 = vmatpush2.msra.mxu0 0.0
    %1835 = vmatprep.subr.mxu0 0.0
    %1836 = vmatpush2.msra.mxu0 0.0
    %1837 = vmatprep.subr.mxu0 0.0
    %1838 = vmatpush2.msra.mxu0 0.0
    %1839 = vmatprep.subr.mxu0 0.0
    %1840 = vmatpush2.msra.mxu0 0.0
    %1841 = vmatprep.subr.mxu0 0.0
    %1842 = vmatpush2.msra.mxu0 0.0
    %1843 = vmatprep.subr.mxu0 0.0
    %1844 = vmatpush2.msra.mxu0 0.0
    %1845 = vmatprep.subr.mxu0 0.0
    %1846 = vmatpush2.msra.mxu0 0.0
    %1847 = vmatprep.mubr.f32.mxu0 0.0
    %1848 = vmatmul.mubr.f32.gmra.mxu0 %v1781
    %v1849 = vpop.f32.mrf.mxu0
    %v1850 = vadd.f32 0.0, %v1849
    %v1851 = vpop.f32.mrf.mxu0
    %1852 = vdwg.mxu0
    %v1853 = vld [vmem:[%s7] sm:$0xff]
    %v1854 = vmul.f32 %v1853, %v1779
    %1856 = vset.pattern.permute.xlu0 4
    %1857 = vperm.xlu0 %1856, %v1854
    %v1858 = vpop.permute.xlu0 %1857
    %vm1860 = vcmp.le.f32.partialorder %v1850, %v1858
    %v1861 = vsel %vm1860, 1, 0
    %v1862 = vsel %vm66, %v1861, 0
    %v1863 = vand.u32 %v1862, 65535
    %v1864 = vshrl.u32 %v1862, 16
    %v1865 = vcvt.s32.f32 %v1863
    %v1866 = vcvt.s32.f32 %v1864
    %1867 = vadd.xlane.f32.xlu0 %v1865
    %v1868 = vpop.xlane.xlu0 %1867
    %1869 = vadd.xlane.f32.xlu0 %v1866
    %v1870 = vpop.xlane.xlu0 %1869
    %v1871 = vcvt.f32.s32 %v1868
    %v1872 = vcvt.f32.s32 %v1870
    %v1873 = vshll.u32 %v1872, 16
    %v1874 = vadd.s32 %v1873, %v1871
    %vm1875 = vcmp.lt.s32.totalorder %v1874, 15
    %v1876 = vsel %vm1875, %v1874, 15
    %v1877 = vsel %vm1521, %v1876, 0
    %vm1878 = vcmp.eq.s32.totalorder %v1877, 0
    %vm1879 = vmand %vm1521, %vm1878
    %v1880 = vsel %vm1879, 5, %v1519
    %vm1881 = vcmp.ne.s32.totalorder %v1877, 0
    %vm1882 = vmand %vm1521, %vm1881
    %vm1883 = vcmask 39968
    %1884 = vst.msk [vmem:[#allocation2] sm:$0xff] %vm1883, %v1877
    %vm1885 = vcmp.eq.s32.totalorder %v33, %v1877
    %v1886 = vsel %vm1885, 1, 0
    %v1887 = vcvt.s32.f32 %v1886
    %v1889 = vsel %vm66, %v1887, 0
    %1891 = vmatprep.subr.mxu0 0.0
    %1892 = vmatpush1.msra.mxu0 0.0
    %1893 = vmatprep.subr.mxu0 0.0
    %1894 = vmatpush1.msra.mxu0 0.0
    %1895 = vmatprep.subr.mxu0 0.0
    %1896 = vmatpush1.msra.mxu0 0.0
    %1897 = vmatprep.subr.mxu0 0.0
    %1898 = vmatpush1.msra.mxu0 0.0
    %1899 = vmatprep.subr.mxu0 0.0
    %1900 = vmatpush1.msra.mxu0 0.0
    %1901 = vmatprep.subr.mxu0 0.0
    %1902 = vmatpush1.msra.mxu0 0.0
    %1903 = vmatprep.subr.mxu0 0.0
    %1904 = vmatpush1.msra.mxu0 0.0
    %1905 = vmatprep.subr.mxu0 0.0
    %1906 = vmatpush1.msra.mxu0 0.0
    %1907 = vmatprep.subr.mxu0 0.0
    %1908 = vmatpush1.msra.mxu0 0.0
    %1909 = vmatprep.subr.mxu0 0.0
    %1910 = vmatpush1.msra.mxu0 0.0
    %1911 = vmatprep.subr.mxu0 0.0
    %1912 = vmatpush1.msra.mxu0 0.0
    %1913 = vmatprep.subr.mxu0 0.0
    %1914 = vmatpush1.msra.mxu0 0.0
    %1915 = vmatprep.subr.mxu0 0.0
    %1916 = vmatpush1.msra.mxu0 0.0
    %1917 = vmatprep.subr.mxu0 0.0
    %1918 = vmatpush1.msra.mxu0 0.0
    %1919 = vmatprep.subr.mxu0 0.0
    %1920 = vmatpush1.msra.mxu0 %v44
    %1921 = vmatprep.subr.mxu0 0.0
    %1922 = vmatpush1.msra.mxu0 %v43
    %1923 = vmatprep.subr.mxu0 0.0
    %1924 = vmatpush2.msra.mxu0 0.0
    %1925 = vmatprep.subr.mxu0 0.0
    %1926 = vmatpush2.msra.mxu0 0.0
    %1927 = vmatprep.subr.mxu0 0.0
    %1928 = vmatpush2.msra.mxu0 0.0
    %1929 = vmatprep.subr.mxu0 0.0
    %1930 = vmatpush2.msra.mxu0 0.0
    %1931 = vmatprep.subr.mxu0 0.0
    %1932 = vmatpush2.msra.mxu0 0.0
    %1933 = vmatprep.subr.mxu0 0.0
    %1934 = vmatpush2.msra.mxu0 0.0
    %1935 = vmatprep.subr.mxu0 0.0
    %1936 = vmatpush2.msra.mxu0 0.0
    %1937 = vmatprep.subr.mxu0 0.0
    %1938 = vmatpush2.msra.mxu0 0.0
    %1939 = vmatprep.subr.mxu0 0.0
    %1940 = vmatpush2.msra.mxu0 0.0
    %1941 = vmatprep.subr.mxu0 0.0
    %1942 = vmatpush2.msra.mxu0 0.0
    %1943 = vmatprep.subr.mxu0 0.0
    %1944 = vmatpush2.msra.mxu0 0.0
    %1945 = vmatprep.subr.mxu0 0.0
    %1946 = vmatpush2.msra.mxu0 0.0
    %1947 = vmatprep.subr.mxu0 0.0
    %1948 = vmatpush2.msra.mxu0 0.0
    %1949 = vmatprep.subr.mxu0 0.0
    %1950 = vmatpush2.msra.mxu0 0.0
    %1951 = vmatprep.subr.mxu0 0.0
    %1952 = vmatpush2.msra.mxu0 0.0
    %1953 = vmatprep.subr.mxu0 0.0
    %1954 = vmatpush2.msra.mxu0 0.0
    %1955 = vmatprep.mubr.f32.mxu0 0.0
    %1956 = vmatmul.mubr.f32.gmra.mxu0 %v1889
    %v1957 = vpop.f32.mrf.mxu0
    %v1958 = vadd.f32 %v64, %v1957
    %v1959 = vpop.f32.mrf.mxu0
    %1960 = vdwg.mxu0
    %1961 = vmatprep.subr.mxu0 0.0
    %1962 = vmatpush1.msra.mxu0 0.0
    %1963 = vmatprep.subr.mxu0 0.0
    %1964 = vmatpush1.msra.mxu0 0.0
    %1965 = vmatprep.subr.mxu0 0.0
    %1966 = vmatpush1.msra.mxu0 0.0
    %1967 = vmatprep.subr.mxu0 0.0
    %1968 = vmatpush1.msra.mxu0 0.0
    %1969 = vmatprep.subr.mxu0 0.0
    %1970 = vmatpush1.msra.mxu0 0.0
    %1971 = vmatprep.subr.mxu0 0.0
    %1972 = vmatpush1.msra.mxu0 0.0
    %1973 = vmatprep.subr.mxu0 0.0
    %1974 = vmatpush1.msra.mxu0 0.0
    %1975 = vmatprep.subr.mxu0 0.0
    %1976 = vmatpush1.msra.mxu0 0.0
    %1977 = vmatprep.subr.mxu0 0.0
    %1978 = vmatpush1.msra.mxu0 0.0
    %1979 = vmatprep.subr.mxu0 0.0
    %1980 = vmatpush1.msra.mxu0 0.0
    %1981 = vmatprep.subr.mxu0 0.0
    %1982 = vmatpush1.msra.mxu0 0.0
    %1983 = vmatprep.subr.mxu0 0.0
    %1984 = vmatpush1.msra.mxu0 0.0
    %1985 = vmatprep.subr.mxu0 0.0
    %1986 = vmatpush1.msra.mxu0 %v48
    %1987 = vmatprep.subr.mxu0 0.0
    %1988 = vmatpush1.msra.mxu0 %v47
    %1989 = vmatprep.subr.mxu0 0.0
    %1990 = vmatpush1.msra.mxu0 %v46
    %1991 = vmatprep.subr.mxu0 0.0
    %1992 = vmatpush1.msra.mxu0 %v45
    %1993 = vmatprep.subr.mxu0 0.0
    %1994 = vmatpush2.msra.mxu0 0.0
    %1995 = vmatprep.subr.mxu0 0.0
    %1996 = vmatpush2.msra.mxu0 0.0
    %1997 = vmatprep.subr.mxu0 0.0
    %1998 = vmatpush2.msra.mxu0 0.0
    %1999 = vmatprep.subr.mxu0 0.0
    %2000 = vmatpush2.msra.mxu0 0.0
    %2001 = vmatprep.subr.mxu0 0.0
    %2002 = vmatpush2.msra.mxu0 0.0
    %2003 = vmatprep.subr.mxu0 0.0
    %2004 = vmatpush2.msra.mxu0 0.0
    %2005 = vmatprep.subr.mxu0 0.0
    %2006 = vmatpush2.msra.mxu0 0.0
    %2007 = vmatprep.subr.mxu0 0.0
    %2008 = vmatpush2.msra.mxu0 0.0
    %2009 = vmatprep.subr.mxu0 0.0
    %2010 = vmatpush2.msra.mxu0 0.0
    %2011 = vmatprep.subr.mxu0 0.0
    %2012 = vmatpush2.msra.mxu0 0.0
    %2013 = vmatprep.subr.mxu0 0.0
    %2014 = vmatpush2.msra.mxu0 0.0
    %2015 = vmatprep.subr.mxu0 0.0
    %2016 = vmatpush2.msra.mxu0 0.0
    %2017 = vmatprep.subr.mxu0 0.0
    %2018 = vmatpush2.msra.mxu0 0.0
    %2019 = vmatprep.subr.mxu0 0.0
    %2020 = vmatpush2.msra.mxu0 0.0
    %2021 = vmatprep.subr.mxu0 0.0
    %2022 = vmatpush2.msra.mxu0 0.0
    %2023 = vmatprep.subr.mxu0 0.0
    %2024 = vmatpush2.msra.mxu0 0.0
    %2025 = vmatprep.mubr.f32.mxu0 0.0
    %2026 = vmatmul.mubr.f32.gmra.mxu0 %v1699
    %v2027 = vpop.f32.mrf.mxu0
    %v2028 = vadd.f32 %v144, %v2027
    %v2029 = vpop.f32.mrf.mxu0
    %2030 = vdwg.mxu0
    %v2031 = vadd.f32 %v1958, %v2028
    %v2032 = vxor.u32 %v2031, 2147483648
    %v2033 = vmul.f32 %v2032, 1.442695
    %v2034 = vpow.pop %v2033
    %v2035 = vadd.f32 %v2034, 1.0
    %v2036 = vrcp.pop %v2035
    %v2037 = vmul.f32 1.0, %v2036
    %2039 = vrot.lane.b32.xlu0 %v2028, 64
    %v2040 = vpop.permute.xlu0 %2039
    %v2042 = vmul.f32 %v2037, %v2040
    %2044 = vrot.lane.b32.xlu0 %v2042, 64
    %v2045 = vpop.permute.xlu0 %2044
    %v2047 = vadd.f32 %v1958, %v2045
    %v2048 = vtanh.pop %v2047
    %v2049 = vsub.f32 1.0, %v2037
    %2051 = vrot.lane.b32.xlu0 %v2048, 96
    %v2052 = vpop.permute.xlu0 %2051
    %v2054 = vmul.f32 %v2049, %v2052
    %v2055 = vmul.f32 %v2037, %v1695
    %v2056 = vadd.f32 %v2054, %v2055
    %2058 = vrot.lane.b32.xlu0 %v2056, 96
    %v2059 = vpop.permute.xlu0 %2058
    %v2060 = vsel %vm146, %v2059, 0
    %2062 = vmatprep.subr.mxu0 0.0
    %2063 = vmatpush1.msra.mxu0 0.0
    %2064 = vmatprep.subr.mxu0 0.0
    %2065 = vmatpush1.msra.mxu0 0.0
    %2066 = vmatprep.subr.mxu0 0.0
    %2067 = vmatpush1.msra.mxu0 0.0
    %2068 = vmatprep.subr.mxu0 0.0
    %2069 = vmatpush1.msra.mxu0 0.0
    %2070 = vmatprep.subr.mxu0 0.0
    %2071 = vmatpush1.msra.mxu0 0.0
    %2072 = vmatprep.subr.mxu0 0.0
    %2073 = vmatpush1.msra.mxu0 0.0
    %2074 = vmatprep.subr.mxu0 0.0
    %2075 = vmatpush1.msra.mxu0 0.0
    %2076 = vmatprep.subr.mxu0 0.0
    %2077 = vmatpush1.msra.mxu0 0.0
    %2078 = vmatprep.subr.mxu0 0.0
    %2079 = vmatpush1.msra.mxu0 0.0
    %2080 = vmatprep.subr.mxu0 0.0
    %2081 = vmatpush1.msra.mxu0 0.0
    %2082 = vmatprep.subr.mxu0 0.0
    %2083 = vmatpush1.msra.mxu0 0.0
    %2084 = vmatprep.subr.mxu0 0.0
    %2085 = vmatpush1.msra.mxu0 0.0
    %2086 = vmatprep.subr.mxu0 0.0
    %2087 = vmatpush1.msra.mxu0 %v54
    %2088 = vmatprep.subr.mxu0 0.0
    %2089 = vmatpush1.msra.mxu0 %v53
    %2090 = vmatprep.subr.mxu0 0.0
    %2091 = vmatpush1.msra.mxu0 %v52
    %2092 = vmatprep.subr.mxu0 0.0
    %2093 = vmatpush1.msra.mxu0 %v51
    %2094 = vmatprep.subr.mxu0 0.0
    %2095 = vmatpush2.msra.mxu0 0.0
    %2096 = vmatprep.subr.mxu0 0.0
    %2097 = vmatpush2.msra.mxu0 0.0
    %2098 = vmatprep.subr.mxu0 0.0
    %2099 = vmatpush2.msra.mxu0 0.0
    %2100 = vmatprep.subr.mxu0 0.0
    %2101 = vmatpush2.msra.mxu0 0.0
    %2102 = vmatprep.subr.mxu0 0.0
    %2103 = vmatpush2.msra.mxu0 0.0
    %2104 = vmatprep.subr.mxu0 0.0
    %2105 = vmatpush2.msra.mxu0 0.0
    %2106 = vmatprep.subr.mxu0 0.0
    %2107 = vmatpush2.msra.mxu0 0.0
    %2108 = vmatprep.subr.mxu0 0.0
    %2109 = vmatpush2.msra.mxu0 0.0
    %2110 = vmatprep.subr.mxu0 0.0
    %2111 = vmatpush2.msra.mxu0 0.0
    %2112 = vmatprep.subr.mxu0 0.0
    %2113 = vmatpush2.msra.mxu0 0.0
    %2114 = vmatprep.subr.mxu0 0.0
    %2115 = vmatpush2.msra.mxu0 0.0
    %2116 = vmatprep.subr.mxu0 0.0
    %2117 = vmatpush2.msra.mxu0 0.0
    %2118 = vmatprep.subr.mxu0 0.0
    %2119 = vmatpush2.msra.mxu0 0.0
    %2120 = vmatprep.subr.mxu0 0.0
    %2121 = vmatpush2.msra.mxu0 0.0
    %2122 = vmatprep.subr.mxu0 0.0
    %2123 = vmatpush2.msra.mxu0 0.0
    %2124 = vmatprep.subr.mxu0 0.0
    %2125 = vmatpush2.msra.mxu0 0.0
    %2126 = vmatprep.mubr.f32.mxu0 0.0
    %2127 = vmatmul.mubr.f32.gmra.mxu0 %v2060
    %v2128 = vpop.f32.mrf.mxu0
    %v2129 = vadd.f32 %v253, %v2128
    %v2130 = vpop.f32.mrf.mxu0
    %2131 = vdwg.mxu0
    %v2132 = vsel %vm66, %v2129, -inf
    %2133 = vmax.xlane.f32.xlu0 %v2132
    %v2134 = vpop.xlane.xlu0 %2133
    %v2135 = vsub.f32 %v2129, %v2134
    %v2136 = vmul.f32 %v2135, 1.442695
    %v2137 = vpow.pop %v2136
    %v2138 = vsel %vm66, %v2137, 0.0
    %2139 = vadd.xlane.f32.xlu0 %v2138
    %v2140 = vpop.xlane.xlu0 %2139
    %v2142 = vsel %vm66, %v2137, 0
    %2144 = vmatprep.subr.mxu0 0.0
    %2145 = vmatpush1.msra.mxu0 0.0
    %2146 = vmatprep.subr.mxu0 0.0
    %2147 = vmatpush1.msra.mxu0 0.0
    %2148 = vmatprep.subr.mxu0 0.0
    %2149 = vmatpush1.msra.mxu0 0.0
    %2150 = vmatprep.subr.mxu0 0.0
    %2151 = vmatpush1.msra.mxu0 0.0
    %2152 = vmatprep.subr.mxu0 0.0
    %2153 = vmatpush1.msra.mxu0 0.0
    %2154 = vmatprep.subr.mxu0 0.0
    %2155 = vmatpush1.msra.mxu0 0.0
    %2156 = vmatprep.subr.mxu0 0.0
    %2157 = vmatpush1.msra.mxu0 0.0
    %2158 = vmatprep.subr.mxu0 0.0
    %2159 = vmatpush1.msra.mxu0 0.0
    %2160 = vmatprep.subr.mxu0 0.0
    %2161 = vmatpush1.msra.mxu0 0.0
    %2162 = vmatprep.subr.mxu0 0.0
    %2163 = vmatpush1.msra.mxu0 0.0
    %2164 = vmatprep.subr.mxu0 0.0
    %2165 = vmatpush1.msra.mxu0 0.0
    %2166 = vmatprep.subr.mxu0 0.0
    %2167 = vmatpush1.msra.mxu0 0.0
    %2168 = vmatprep.subr.mxu0 0.0
    %2169 = vmatpush1.msra.mxu0 0.0
    %2170 = vmatprep.subr.mxu0 0.0
    %2171 = vmatpush1.msra.mxu0 0.0
    %2172 = vmatprep.subr.mxu0 0.0
    %2173 = vmatpush1.msra.mxu0 %v42
    %2174 = vmatprep.subr.mxu0 0.0
    %2175 = vmatpush1.msra.mxu0 %v41
    %2176 = vmatprep.subr.mxu0 0.0
    %2177 = vmatpush2.msra.mxu0 0.0
    %2178 = vmatprep.subr.mxu0 0.0
    %2179 = vmatpush2.msra.mxu0 0.0
    %2180 = vmatprep.subr.mxu0 0.0
    %2181 = vmatpush2.msra.mxu0 0.0
    %2182 = vmatprep.subr.mxu0 0.0
    %2183 = vmatpush2.msra.mxu0 0.0
    %2184 = vmatprep.subr.mxu0 0.0
    %2185 = vmatpush2.msra.mxu0 0.0
    %2186 = vmatprep.subr.mxu0 0.0
    %2187 = vmatpush2.msra.mxu0 0.0
    %2188 = vmatprep.subr.mxu0 0.0
    %2189 = vmatpush2.msra.mxu0 0.0
    %2190 = vmatprep.subr.mxu0 0.0
    %2191 = vmatpush2.msra.mxu0 0.0
    %2192 = vmatprep.subr.mxu0 0.0
    %2193 = vmatpush2.msra.mxu0 0.0
    %2194 = vmatprep.subr.mxu0 0.0
    %2195 = vmatpush2.msra.mxu0 0.0
    %2196 = vmatprep.subr.mxu0 0.0
    %2197 = vmatpush2.msra.mxu0 0.0
    %2198 = vmatprep.subr.mxu0 0.0
    %2199 = vmatpush2.msra.mxu0 0.0
    %2200 = vmatprep.subr.mxu0 0.0
    %2201 = vmatpush2.msra.mxu0 0.0
    %2202 = vmatprep.subr.mxu0 0.0
    %2203 = vmatpush2.msra.mxu0 0.0
    %2204 = vmatprep.subr.mxu0 0.0
    %2205 = vmatpush2.msra.mxu0 0.0
    %2206 = vmatprep.subr.mxu0 0.0
    %2207 = vmatpush2.msra.mxu0 0.0
    %2208 = vmatprep.mubr.f32.mxu0 0.0
    %2209 = vmatmul.mubr.f32.gmra.mxu0 %v2142
    %v2210 = vpop.f32.mrf.mxu0
    %v2211 = vadd.f32 0.0, %v2210
    %v2212 = vpop.f32.mrf.mxu0
    %2213 = vdwg.mxu0
    %v2214 = vld [vmem:[%s7] sm:$0xff]
    %v2215 = vmul.f32 %v2214, %v2140
    %2217 = vset.pattern.permute.xlu0 5
    %2218 = vperm.xlu0 %2217, %v2215
    %v2219 = vpop.permute.xlu0 %2218
    %vm2221 = vcmp.le.f32.partialorder %v2211, %v2219
    %v2222 = vsel %vm2221, 1, 0
    %v2223 = vsel %vm66, %v2222, 0
    %v2224 = vand.u32 %v2223, 65535
    %v2225 = vshrl.u32 %v2223, 16
    %v2226 = vcvt.s32.f32 %v2224
    %v2227 = vcvt.s32.f32 %v2225
    %2228 = vadd.xlane.f32.xlu0 %v2226
    %v2229 = vpop.xlane.xlu0 %2228
    %2230 = vadd.xlane.f32.xlu0 %v2227
    %v2231 = vpop.xlane.xlu0 %2230
    %v2232 = vcvt.f32.s32 %v2229
    %v2233 = vcvt.f32.s32 %v2231
    %v2234 = vshll.u32 %v2233, 16
    %v2235 = vadd.s32 %v2234, %v2232
    %vm2236 = vcmp.lt.s32.totalorder %v2235, 15
    %v2237 = vsel %vm2236, %v2235, 15
    %v2238 = vsel %vm1882, %v2237, 0
    %vm2239 = vcmp.eq.s32.totalorder %v2238, 0
    %vm2240 = vmand %vm1882, %vm2239
    %v2241 = vsel %vm2240, 6, %v1880
    %vm2242 = vcmp.ne.s32.totalorder %v2238, 0
    %vm2243 = vmand %vm1882, %vm2242
    %vm2244 = vcmask 48168
    %2245 = vst.msk [vmem:[#allocation2] sm:$0xff] %vm2244, %v2238
    %vm2246 = vcmp.eq.s32.totalorder %v33, %v2238
    %v2247 = vsel %vm2246, 1, 0
    %v2248 = vcvt.s32.f32 %v2247
    %v2250 = vsel %vm66, %v2248, 0
    %2252 = vmatprep.subr.mxu0 0.0
    %2253 = vmatpush1.msra.mxu0 0.0
    %2254 = vmatprep.subr.mxu0 0.0
    %2255 = vmatpush1.msra.mxu0 0.0
    %2256 = vmatprep.subr.mxu0 0.0
    %2257 = vmatpush1.msra.mxu0 0.0
    %2258 = vmatprep.subr.mxu0 0.0
    %2259 = vmatpush1.msra.mxu0 0.0
    %2260 = vmatprep.subr.mxu0 0.0
    %2261 = vmatpush1.msra.mxu0 0.0
    %2262 = vmatprep.subr.mxu0 0.0
    %2263 = vmatpush1.msra.mxu0 0.0
    %2264 = vmatprep.subr.mxu0 0.0
    %2265 = vmatpush1.msra.mxu0 0.0
    %2266 = vmatprep.subr.mxu0 0.0
    %2267 = vmatpush1.msra.mxu0 0.0
    %2268 = vmatprep.subr.mxu0 0.0
    %2269 = vmatpush1.msra.mxu0 0.0
    %2270 = vmatprep.subr.mxu0 0.0
    %2271 = vmatpush1.msra.mxu0 0.0
    %2272 = vmatprep.subr.mxu0 0.0
    %2273 = vmatpush1.msra.mxu0 0.0
    %2274 = vmatprep.subr.mxu0 0.0
    %2275 = vmatpush1.msra.mxu0 0.0
    %2276 = vmatprep.subr.mxu0 0.0
    %2277 = vmatpush1.msra.mxu0 0.0
    %2278 = vmatprep.subr.mxu0 0.0
    %2279 = vmatpush1.msra.mxu0 0.0
    %2280 = vmatprep.subr.mxu0 0.0
    %2281 = vmatpush1.msra.mxu0 %v44
    %2282 = vmatprep.subr.mxu0 0.0
    %2283 = vmatpush1.msra.mxu0 %v43
    %2284 = vmatprep.subr.mxu0 0.0
    %2285 = vmatpush2.msra.mxu0 0.0
    %2286 = vmatprep.subr.mxu0 0.0
    %2287 = vmatpush2.msra.mxu0 0.0
    %2288 = vmatprep.subr.mxu0 0.0
    %2289 = vmatpush2.msra.mxu0 0.0
    %2290 = vmatprep.subr.mxu0 0.0
    %2291 = vmatpush2.msra.mxu0 0.0
    %2292 = vmatprep.subr.mxu0 0.0
    %2293 = vmatpush2.msra.mxu0 0.0
    %2294 = vmatprep.subr.mxu0 0.0
    %2295 = vmatpush2.msra.mxu0 0.0
    %2296 = vmatprep.subr.mxu0 0.0
    %2297 = vmatpush2.msra.mxu0 0.0
    %2298 = vmatprep.subr.mxu0 0.0
    %2299 = vmatpush2.msra.mxu0 0.0
    %2300 = vmatprep.subr.mxu0 0.0
    %2301 = vmatpush2.msra.mxu0 0.0
    %2302 = vmatprep.subr.mxu0 0.0
    %2303 = vmatpush2.msra.mxu0 0.0
    %2304 = vmatprep.subr.mxu0 0.0
    %2305 = vmatpush2.msra.mxu0 0.0
    %2306 = vmatprep.subr.mxu0 0.0
    %2307 = vmatpush2.msra.mxu0 0.0
    %2308 = vmatprep.subr.mxu0 0.0
    %2309 = vmatpush2.msra.mxu0 0.0
    %2310 = vmatprep.subr.mxu0 0.0
    %2311 = vmatpush2.msra.mxu0 0.0
    %2312 = vmatprep.subr.mxu0 0.0
    %2313 = vmatpush2.msra.mxu0 0.0
    %2314 = vmatprep.subr.mxu0 0.0
    %2315 = vmatpush2.msra.mxu0 0.0
    %2316 = vmatprep.mubr.f32.mxu0 0.0
    %2317 = vmatmul.mubr.f32.gmra.mxu0 %v2250
    %v2318 = vpop.f32.mrf.mxu0
    %v2319 = vadd.f32 %v64, %v2318
    %v2320 = vpop.f32.mrf.mxu0
    %2321 = vdwg.mxu0
    %2322 = vmatprep.subr.mxu0 0.0
    %2323 = vmatpush1.msra.mxu0 0.0
    %2324 = vmatprep.subr.mxu0 0.0
    %2325 = vmatpush1.msra.mxu0 0.0
    %2326 = vmatprep.subr.mxu0 0.0
    %2327 = vmatpush1.msra.mxu0 0.0
    %2328 = vmatprep.subr.mxu0 0.0
    %2329 = vmatpush1.msra.mxu0 0.0
    %2330 = vmatprep.subr.mxu0 0.0
    %2331 = vmatpush1.msra.mxu0 0.0
    %2332 = vmatprep.subr.mxu0 0.0
    %2333 = vmatpush1.msra.mxu0 0.0
    %2334 = vmatprep.subr.mxu0 0.0
    %2335 = vmatpush1.msra.mxu0 0.0
    %2336 = vmatprep.subr.mxu0 0.0
    %2337 = vmatpush1.msra.mxu0 0.0
    %2338 = vmatprep.subr.mxu0 0.0
    %2339 = vmatpush1.msra.mxu0 0.0
    %2340 = vmatprep.subr.mxu0 0.0
    %2341 = vmatpush1.msra.mxu0 0.0
    %2342 = vmatprep.subr.mxu0 0.0
    %2343 = vmatpush1.msra.mxu0 0.0
    %2344 = vmatprep.subr.mxu0 0.0
    %2345 = vmatpush1.msra.mxu0 0.0
    %2346 = vmatprep.subr.mxu0 0.0
    %2347 = vmatpush1.msra.mxu0 %v48
    %2348 = vmatprep.subr.mxu0 0.0
    %2349 = vmatpush1.msra.mxu0 %v47
    %2350 = vmatprep.subr.mxu0 0.0
    %2351 = vmatpush1.msra.mxu0 %v46
    %2352 = vmatprep.subr.mxu0 0.0
    %2353 = vmatpush1.msra.mxu0 %v45
    %2354 = vmatprep.subr.mxu0 0.0
    %2355 = vmatpush2.msra.mxu0 0.0
    %2356 = vmatprep.subr.mxu0 0.0
    %2357 = vmatpush2.msra.mxu0 0.0
    %2358 = vmatprep.subr.mxu0 0.0
    %2359 = vmatpush2.msra.mxu0 0.0
    %2360 = vmatprep.subr.mxu0 0.0
    %2361 = vmatpush2.msra.mxu0 0.0
    %2362 = vmatprep.subr.mxu0 0.0
    %2363 = vmatpush2.msra.mxu0 0.0
    %2364 = vmatprep.subr.mxu0 0.0
    %2365 = vmatpush2.msra.mxu0 0.0
    %2366 = vmatprep.subr.mxu0 0.0
    %2367 = vmatpush2.msra.mxu0 0.0
    %2368 = vmatprep.subr.mxu0 0.0
    %2369 = vmatpush2.msra.mxu0 0.0
    %2370 = vmatprep.subr.mxu0 0.0
    %2371 = vmatpush2.msra.mxu0 0.0
    %2372 = vmatprep.subr.mxu0 0.0
    %2373 = vmatpush2.msra.mxu0 0.0
    %2374 = vmatprep.subr.mxu0 0.0
    %2375 = vmatpush2.msra.mxu0 0.0
    %2376 = vmatprep.subr.mxu0 0.0
    %2377 = vmatpush2.msra.mxu0 0.0
    %2378 = vmatprep.subr.mxu0 0.0
    %2379 = vmatpush2.msra.mxu0 0.0
    %2380 = vmatprep.subr.mxu0 0.0
    %2381 = vmatpush2.msra.mxu0 0.0
    %2382 = vmatprep.subr.mxu0 0.0
    %2383 = vmatpush2.msra.mxu0 0.0
    %2384 = vmatprep.subr.mxu0 0.0
    %2385 = vmatpush2.msra.mxu0 0.0
    %2386 = vmatprep.mubr.f32.mxu0 0.0
    %2387 = vmatmul.mubr.f32.gmra.mxu0 %v2060
    %v2388 = vpop.f32.mrf.mxu0
    %v2389 = vadd.f32 %v144, %v2388
    %v2390 = vpop.f32.mrf.mxu0
    %2391 = vdwg.mxu0
    %v2392 = vadd.f32 %v2319, %v2389
    %v2393 = vxor.u32 %v2392, 2147483648
    %v2394 = vmul.f32 %v2393, 1.442695
    %v2395 = vpow.pop %v2394
    %v2396 = vadd.f32 %v2395, 1.0
    %v2397 = vrcp.pop %v2396
    %v2398 = vmul.f32 1.0, %v2397
    %2400 = vrot.lane.b32.xlu0 %v2389, 64
    %v2401 = vpop.permute.xlu0 %2400
    %v2403 = vmul.f32 %v2398, %v2401
    %2405 = vrot.lane.b32.xlu0 %v2403, 64
    %v2406 = vpop.permute.xlu0 %2405
    %v2408 = vadd.f32 %v2319, %v2406
    %v2409 = vtanh.pop %v2408
    %v2410 = vsub.f32 1.0, %v2398
    %2412 = vrot.lane.b32.xlu0 %v2409, 96
    %v2413 = vpop.permute.xlu0 %2412
    %v2415 = vmul.f32 %v2410, %v2413
    %v2416 = vmul.f32 %v2398, %v2056
    %v2417 = vadd.f32 %v2415, %v2416
    %2419 = vrot.lane.b32.xlu0 %v2417, 96
    %v2420 = vpop.permute.xlu0 %2419
    %v2421 = vsel %vm146, %v2420, 0
    %2423 = vmatprep.subr.mxu0 0.0
    %2424 = vmatpush1.msra.mxu0 0.0
    %2425 = vmatprep.subr.mxu0 0.0
    %2426 = vmatpush1.msra.mxu0 0.0
    %2427 = vmatprep.subr.mxu0 0.0
    %2428 = vmatpush1.msra.mxu0 0.0
    %2429 = vmatprep.subr.mxu0 0.0
    %2430 = vmatpush1.msra.mxu0 0.0
    %2431 = vmatprep.subr.mxu0 0.0
    %2432 = vmatpush1.msra.mxu0 0.0
    %2433 = vmatprep.subr.mxu0 0.0
    %2434 = vmatpush1.msra.mxu0 0.0
    %2435 = vmatprep.subr.mxu0 0.0
    %2436 = vmatpush1.msra.mxu0 0.0
    %2437 = vmatprep.subr.mxu0 0.0
    %2438 = vmatpush1.msra.mxu0 0.0
    %2439 = vmatprep.subr.mxu0 0.0
    %2440 = vmatpush1.msra.mxu0 0.0
    %2441 = vmatprep.subr.mxu0 0.0
    %2442 = vmatpush1.msra.mxu0 0.0
    %2443 = vmatprep.subr.mxu0 0.0
    %2444 = vmatpush1.msra.mxu0 0.0
    %2445 = vmatprep.subr.mxu0 0.0
    %2446 = vmatpush1.msra.mxu0 0.0
    %2447 = vmatprep.subr.mxu0 0.0
    %2448 = vmatpush1.msra.mxu0 %v54
    %2449 = vmatprep.subr.mxu0 0.0
    %2450 = vmatpush1.msra.mxu0 %v53
    %2451 = vmatprep.subr.mxu0 0.0
    %2452 = vmatpush1.msra.mxu0 %v52
    %2453 = vmatprep.subr.mxu0 0.0
    %2454 = vmatpush1.msra.mxu0 %v51
    %2455 = vmatprep.subr.mxu0 0.0
    %2456 = vmatpush2.msra.mxu0 0.0
    %2457 = vmatprep.subr.mxu0 0.0
    %2458 = vmatpush2.msra.mxu0 0.0
    %2459 = vmatprep.subr.mxu0 0.0
    %2460 = vmatpush2.msra.mxu0 0.0
    %2461 = vmatprep.subr.mxu0 0.0
    %2462 = vmatpush2.msra.mxu0 0.0
    %2463 = vmatprep.subr.mxu0 0.0
    %2464 = vmatpush2.msra.mxu0 0.0
    %2465 = vmatprep.subr.mxu0 0.0
    %2466 = vmatpush2.msra.mxu0 0.0
    %2467 = vmatprep.subr.mxu0 0.0
    %2468 = vmatpush2.msra.mxu0 0.0
    %2469 = vmatprep.subr.mxu0 0.0
    %2470 = vmatpush2.msra.mxu0 0.0
    %2471 = vmatprep.subr.mxu0 0.0
    %2472 = vmatpush2.msra.mxu0 0.0
    %2473 = vmatprep.subr.mxu0 0.0
    %2474 = vmatpush2.msra.mxu0 0.0
    %2475 = vmatprep.subr.mxu0 0.0
    %2476 = vmatpush2.msra.mxu0 0.0
    %2477 = vmatprep.subr.mxu0 0.0
    %2478 = vmatpush2.msra.mxu0 0.0
    %2479 = vmatprep.subr.mxu0 0.0
    %2480 = vmatpush2.msra.mxu0 0.0
    %2481 = vmatprep.subr.mxu0 0.0
    %2482 = vmatpush2.msra.mxu0 0.0
    %2483 = vmatprep.subr.mxu0 0.0
    %2484 = vmatpush2.msra.mxu0 0.0
    %2485 = vmatprep.subr.mxu0 0.0
    %2486 = vmatpush2.msra.mxu0 0.0
    %2487 = vmatprep.mubr.f32.mxu0 0.0
    %2488 = vmatmul.mubr.f32.gmra.mxu0 %v2421
    %v2489 = vpop.f32.mrf.mxu0
    %v2490 = vadd.f32 %v253, %v2489
    %v2491 = vpop.f32.mrf.mxu0
    %2492 = vdwg.mxu0
    %v2493 = vsel %vm66, %v2490, -inf
    %2494 = vmax.xlane.f32.xlu0 %v2493
    %v2495 = vpop.xlane.xlu0 %2494
    %v2496 = vsub.f32 %v2490, %v2495
    %v2497 = vmul.f32 %v2496, 1.442695
    %v2498 = vpow.pop %v2497
    %v2499 = vsel %vm66, %v2498, 0.0
    %2500 = vadd.xlane.f32.xlu0 %v2499
    %v2501 = vpop.xlane.xlu0 %2500
    %v2503 = vsel %vm66, %v2498, 0
    %2505 = vmatprep.subr.mxu0 0.0
    %2506 = vmatpush1.msra.mxu0 0.0
    %2507 = vmatprep.subr.mxu0 0.0
    %2508 = vmatpush1.msra.mxu0 0.0
    %2509 = vmatprep.subr.mxu0 0.0
    %2510 = vmatpush1.msra.mxu0 0.0
    %2511 = vmatprep.subr.mxu0 0.0
    %2512 = vmatpush1.msra.mxu0 0.0
    %2513 = vmatprep.subr.mxu0 0.0
    %2514 = vmatpush1.msra.mxu0 0.0
    %2515 = vmatprep.subr.mxu0 0.0
    %2516 = vmatpush1.msra.mxu0 0.0
    %2517 = vmatprep.subr.mxu0 0.0
    %2518 = vmatpush1.msra.mxu0 0.0
    %2519 = vmatprep.subr.mxu0 0.0
    %2520 = vmatpush1.msra.mxu0 0.0
    %2521 = vmatprep.subr.mxu0 0.0
    %2522 = vmatpush1.msra.mxu0 0.0
    %2523 = vmatprep.subr.mxu0 0.0
    %2524 = vmatpush1.msra.mxu0 0.0
    %2525 = vmatprep.subr.mxu0 0.0
    %2526 = vmatpush1.msra.mxu0 0.0
    %2527 = vmatprep.subr.mxu0 0.0
    %2528 = vmatpush1.msra.mxu0 0.0
    %2529 = vmatprep.subr.mxu0 0.0
    %2530 = vmatpush1.msra.mxu0 0.0
    %2531 = vmatprep.subr.mxu0 0.0
    %2532 = vmatpush1.msra.mxu0 0.0
    %2533 = vmatprep.subr.mxu0 0.0
    %2534 = vmatpush1.msra.mxu0 %v42
    %2535 = vmatprep.subr.mxu0 0.0
    %2536 = vmatpush1.msra.mxu0 %v41
    %2537 = vmatprep.subr.mxu0 0.0
    %2538 = vmatpush2.msra.mxu0 0.0
    %2539 = vmatprep.subr.mxu0 0.0
    %2540 = vmatpush2.msra.mxu0 0.0
    %2541 = vmatprep.subr.mxu0 0.0
    %2542 = vmatpush2.msra.mxu0 0.0
    %2543 = vmatprep.subr.mxu0 0.0
    %2544 = vmatpush2.msra.mxu0 0.0
    %2545 = vmatprep.subr.mxu0 0.0
    %2546 = vmatpush2.msra.mxu0 0.0
    %2547 = vmatprep.subr.mxu0 0.0
    %2548 = vmatpush2.msra.mxu0 0.0
    %2549 = vmatprep.subr.mxu0 0.0
    %2550 = vmatpush2.msra.mxu0 0.0
    %2551 = vmatprep.subr.mxu0 0.0
    %2552 = vmatpush2.msra.mxu0 0.0
    %2553 = vmatprep.subr.mxu0 0.0
    %2554 = vmatpush2.msra.mxu0 0.0
    %2555 = vmatprep.subr.mxu0 0.0
    %2556 = vmatpush2.msra.mxu0 0.0
    %2557 = vmatprep.subr.mxu0 0.0
    %2558 = vmatpush2.msra.mxu0 0.0
    %2559 = vmatprep.subr.mxu0 0.0
    %2560 = vmatpush2.msra.mxu0 0.0
    %2561 = vmatprep.subr.mxu0 0.0
    %2562 = vmatpush2.msra.mxu0 0.0
    %2563 = vmatprep.subr.mxu0 0.0
    %2564 = vmatpush2.msra.mxu0 0.0
    %2565 = vmatprep.subr.mxu0 0.0
    %2566 = vmatpush2.msra.mxu0 0.0
    %2567 = vmatprep.subr.mxu0 0.0
    %2568 = vmatpush2.msra.mxu0 0.0
    %2569 = vmatprep.mubr.f32.mxu0 0.0
    %2570 = vmatmul.mubr.f32.gmra.mxu0 %v2503
    %v2571 = vpop.f32.mrf.mxu0
    %v2572 = vadd.f32 0.0, %v2571
    %v2573 = vpop.f32.mrf.mxu0
    %2574 = vdwg.mxu0
    %v2575 = vld [vmem:[%s7] sm:$0xff]
    %v2576 = vmul.f32 %v2575, %v2501
    %2578 = vset.pattern.permute.xlu0 6
    %2579 = vperm.xlu0 %2578, %v2576
    %v2580 = vpop.permute.xlu0 %2579
    %vm2582 = vcmp.le.f32.partialorder %v2572, %v2580
    %v2583 = vsel %vm2582, 1, 0
    %v2584 = vsel %vm66, %v2583, 0
    %v2585 = vand.u32 %v2584, 65535
    %v2586 = vshrl.u32 %v2584, 16
    %v2587 = vcvt.s32.f32 %v2585
    %v2588 = vcvt.s32.f32 %v2586
    %2589 = vadd.xlane.f32.xlu0 %v2587
    %v2590 = vpop.xlane.xlu0 %2589
    %2591 = vadd.xlane.f32.xlu0 %v2588
    %v2592 = vpop.xlane.xlu0 %2591
    %v2593 = vcvt.f32.s32 %v2590
    %v2594 = vcvt.f32.s32 %v2592
    %v2595 = vshll.u32 %v2594, 16
    %v2596 = vadd.s32 %v2595, %v2593
    %vm2597 = vcmp.lt.s32.totalorder %v2596, 15
    %v2598 = vsel %vm2597, %v2596, 15
    %v2599 = vsel %vm2243, %v2598, 0
    %vm2600 = vcmp.eq.s32.totalorder %v2599, 0
    %vm2601 = vmand %vm2243, %vm2600
    %v2602 = vsel %vm2601, 7, %v2241
    %vm2603 = vcmp.ne.s32.totalorder %v2599, 0
    %vm2604 = vmand %vm2243, %vm2603
    %vm2605 = vcmask 56368
    %2606 = vst.msk [vmem:[#allocation2] sm:$0xff] %vm2605, %v2599
    %vm2607 = vcmp.eq.s32.totalorder %v33, %v2599
    %v2608 = vsel %vm2607, 1, 0
    %v2609 = vcvt.s32.f32 %v2608
    %v2611 = vsel %vm66, %v2609, 0
    %2613 = vmatprep.subr.mxu0 0.0
    %2614 = vmatpush1.msra.mxu0 0.0
    %2615 = vmatprep.subr.mxu0 0.0
    %2616 = vmatpush1.msra.mxu0 0.0
    %2617 = vmatprep.subr.mxu0 0.0
    %2618 = vmatpush1.msra.mxu0 0.0
    %2619 = vmatprep.subr.mxu0 0.0
    %2620 = vmatpush1.msra.mxu0 0.0
    %2621 = vmatprep.subr.mxu0 0.0
    %2622 = vmatpush1.msra.mxu0 0.0
    %2623 = vmatprep.subr.mxu0 0.0
    %2624 = vmatpush1.msra.mxu0 0.0
    %2625 = vmatprep.subr.mxu0 0.0
    %2626 = vmatpush1.msra.mxu0 0.0
    %2627 = vmatprep.subr.mxu0 0.0
    %2628 = vmatpush1.msra.mxu0 0.0
    %2629 = vmatprep.subr.mxu0 0.0
    %2630 = vmatpush1.msra.mxu0 0.0
    %2631 = vmatprep.subr.mxu0 0.0
    %2632 = vmatpush1.msra.mxu0 0.0
    %2633 = vmatprep.subr.mxu0 0.0
    %2634 = vmatpush1.msra.mxu0 0.0
    %2635 = vmatprep.subr.mxu0 0.0
    %2636 = vmatpush1.msra.mxu0 0.0
    %2637 = vmatprep.subr.mxu0 0.0
    %2638 = vmatpush1.msra.mxu0 0.0
    %2639 = vmatprep.subr.mxu0 0.0
    %2640 = vmatpush1.msra.mxu0 0.0
    %2641 = vmatprep.subr.mxu0 0.0
    %2642 = vmatpush1.msra.mxu0 %v44
    %2643 = vmatprep.subr.mxu0 0.0
    %2644 = vmatpush1.msra.mxu0 %v43
    %2645 = vmatprep.subr.mxu0 0.0
    %2646 = vmatpush2.msra.mxu0 0.0
    %2647 = vmatprep.subr.mxu0 0.0
    %2648 = vmatpush2.msra.mxu0 0.0
    %2649 = vmatprep.subr.mxu0 0.0
    %2650 = vmatpush2.msra.mxu0 0.0
    %2651 = vmatprep.subr.mxu0 0.0
    %2652 = vmatpush2.msra.mxu0 0.0
    %2653 = vmatprep.subr.mxu0 0.0
    %2654 = vmatpush2.msra.mxu0 0.0
    %2655 = vmatprep.subr.mxu0 0.0
    %2656 = vmatpush2.msra.mxu0 0.0
    %2657 = vmatprep.subr.mxu0 0.0
    %2658 = vmatpush2.msra.mxu0 0.0
    %2659 = vmatprep.subr.mxu0 0.0
    %2660 = vmatpush2.msra.mxu0 0.0
    %2661 = vmatprep.subr.mxu0 0.0
    %2662 = vmatpush2.msra.mxu0 0.0
    %2663 = vmatprep.subr.mxu0 0.0
    %2664 = vmatpush2.msra.mxu0 0.0
    %2665 = vmatprep.subr.mxu0 0.0
    %2666 = vmatpush2.msra.mxu0 0.0
    %2667 = vmatprep.subr.mxu0 0.0
    %2668 = vmatpush2.msra.mxu0 0.0
    %2669 = vmatprep.subr.mxu0 0.0
    %2670 = vmatpush2.msra.mxu0 0.0
    %2671 = vmatprep.subr.mxu0 0.0
    %2672 = vmatpush2.msra.mxu0 0.0
    %2673 = vmatprep.subr.mxu0 0.0
    %2674 = vmatpush2.msra.mxu0 0.0
    %2675 = vmatprep.subr.mxu0 0.0
    %2676 = vmatpush2.msra.mxu0 0.0
    %2677 = vmatprep.mubr.f32.mxu0 0.0
    %2678 = vmatmul.mubr.f32.gmra.mxu0 %v2611
    %v2679 = vpop.f32.mrf.mxu0
    %v2680 = vadd.f32 %v64, %v2679
    %v2681 = vpop.f32.mrf.mxu0
    %2682 = vdwg.mxu0
    %2683 = vmatprep.subr.mxu0 0.0
    %2684 = vmatpush1.msra.mxu0 0.0
    %2685 = vmatprep.subr.mxu0 0.0
    %2686 = vmatpush1.msra.mxu0 0.0
    %2687 = vmatprep.subr.mxu0 0.0
    %2688 = vmatpush1.msra.mxu0 0.0
    %2689 = vmatprep.subr.mxu0 0.0
    %2690 = vmatpush1.msra.mxu0 0.0
    %2691 = vmatprep.subr.mxu0 0.0
    %2692 = vmatpush1.msra.mxu0 0.0
    %2693 = vmatprep.subr.mxu0 0.0
    %2694 = vmatpush1.msra.mxu0 0.0
    %2695 = vmatprep.subr.mxu0 0.0
    %2696 = vmatpush1.msra.mxu0 0.0
    %2697 = vmatprep.subr.mxu0 0.0
    %2698 = vmatpush1.msra.mxu0 0.0
    %2699 = vmatprep.subr.mxu0 0.0
    %2700 = vmatpush1.msra.mxu0 0.0
    %2701 = vmatprep.subr.mxu0 0.0
    %2702 = vmatpush1.msra.mxu0 0.0
    %2703 = vmatprep.subr.mxu0 0.0
    %2704 = vmatpush1.msra.mxu0 0.0
    %2705 = vmatprep.subr.mxu0 0.0
    %2706 = vmatpush1.msra.mxu0 0.0
    %2707 = vmatprep.subr.mxu0 0.0
    %2708 = vmatpush1.msra.mxu0 %v48
    %2709 = vmatprep.subr.mxu0 0.0
    %2710 = vmatpush1.msra.mxu0 %v47
    %2711 = vmatprep.subr.mxu0 0.0
    %2712 = vmatpush1.msra.mxu0 %v46
    %2713 = vmatprep.subr.mxu0 0.0
    %2714 = vmatpush1.msra.mxu0 %v45
    %2715 = vmatprep.subr.mxu0 0.0
    %2716 = vmatpush2.msra.mxu0 0.0
    %2717 = vmatprep.subr.mxu0 0.0
    %2718 = vmatpush2.msra.mxu0 0.0
    %2719 = vmatprep.subr.mxu0 0.0
    %2720 = vmatpush2.msra.mxu0 0.0
    %2721 = vmatprep.subr.mxu0 0.0
    %2722 = vmatpush2.msra.mxu0 0.0
    %2723 = vmatprep.subr.mxu0 0.0
    %2724 = vmatpush2.msra.mxu0 0.0
    %2725 = vmatprep.subr.mxu0 0.0
    %2726 = vmatpush2.msra.mxu0 0.0
    %2727 = vmatprep.subr.mxu0 0.0
    %2728 = vmatpush2.msra.mxu0 0.0
    %2729 = vmatprep.subr.mxu0 0.0
    %2730 = vmatpush2.msra.mxu0 0.0
    %2731 = vmatprep.subr.mxu0 0.0
    %2732 = vmatpush2.msra.mxu0 0.0
    %2733 = vmatprep.subr.mxu0 0.0
    %2734 = vmatpush2.msra.mxu0 0.0
    %2735 = vmatprep.subr.mxu0 0.0
    %2736 = vmatpush2.msra.mxu0 0.0
    %2737 = vmatprep.subr.mxu0 0.0
    %2738 = vmatpush2.msra.mxu0 0.0
    %2739 = vmatprep.subr.mxu0 0.0
    %2740 = vmatpush2.msra.mxu0 0.0
    %2741 = vmatprep.subr.mxu0 0.0
    %2742 = vmatpush2.msra.mxu0 0.0
    %2743 = vmatprep.subr.mxu0 0.0
    %2744 = vmatpush2.msra.mxu0 0.0
    %2745 = vmatprep.subr.mxu0 0.0
    %2746 = vmatpush2.msra.mxu0 0.0
    %2747 = vmatprep.mubr.f32.mxu0 0.0
    %2748 = vmatmul.mubr.f32.gmra.mxu0 %v2421
    %v2749 = vpop.f32.mrf.mxu0
    %v2750 = vadd.f32 %v144, %v2749
    %v2751 = vpop.f32.mrf.mxu0
    %2752 = vdwg.mxu0
    %v2753 = vadd.f32 %v2680, %v2750
    %v2754 = vxor.u32 %v2753, 2147483648
    %v2755 = vmul.f32 %v2754, 1.442695
    %v2756 = vpow.pop %v2755
    %v2757 = vadd.f32 %v2756, 1.0
    %v2758 = vrcp.pop %v2757
    %v2759 = vmul.f32 1.0, %v2758
    %2761 = vrot.lane.b32.xlu0 %v2750, 64
    %v2762 = vpop.permute.xlu0 %2761
    %v2764 = vmul.f32 %v2759, %v2762
    %2766 = vrot.lane.b32.xlu0 %v2764, 64
    %v2767 = vpop.permute.xlu0 %2766
    %v2769 = vadd.f32 %v2680, %v2767
    %v2770 = vtanh.pop %v2769
    %v2771 = vsub.f32 1.0, %v2759
    %2773 = vrot.lane.b32.xlu0 %v2770, 96
    %v2774 = vpop.permute.xlu0 %2773
    %v2776 = vmul.f32 %v2771, %v2774
    %v2777 = vmul.f32 %v2759, %v2417
    %v2778 = vadd.f32 %v2776, %v2777
    %2780 = vrot.lane.b32.xlu0 %v2778, 96
    %v2781 = vpop.permute.xlu0 %2780
    %v2782 = vsel %vm146, %v2781, 0
    %2784 = vmatprep.subr.mxu0 0.0
    %2785 = vmatpush1.msra.mxu0 0.0
    %2786 = vmatprep.subr.mxu0 0.0
    %2787 = vmatpush1.msra.mxu0 0.0
    %2788 = vmatprep.subr.mxu0 0.0
    %2789 = vmatpush1.msra.mxu0 0.0
    %2790 = vmatprep.subr.mxu0 0.0
    %2791 = vmatpush1.msra.mxu0 0.0
    %2792 = vmatprep.subr.mxu0 0.0
    %2793 = vmatpush1.msra.mxu0 0.0
    %2794 = vmatprep.subr.mxu0 0.0
    %2795 = vmatpush1.msra.mxu0 0.0
    %2796 = vmatprep.subr.mxu0 0.0
    %2797 = vmatpush1.msra.mxu0 0.0
    %2798 = vmatprep.subr.mxu0 0.0
    %2799 = vmatpush1.msra.mxu0 0.0
    %2800 = vmatprep.subr.mxu0 0.0
    %2801 = vmatpush1.msra.mxu0 0.0
    %2802 = vmatprep.subr.mxu0 0.0
    %2803 = vmatpush1.msra.mxu0 0.0
    %2804 = vmatprep.subr.mxu0 0.0
    %2805 = vmatpush1.msra.mxu0 0.0
    %2806 = vmatprep.subr.mxu0 0.0
    %2807 = vmatpush1.msra.mxu0 0.0
    %2808 = vmatprep.subr.mxu0 0.0
    %2809 = vmatpush1.msra.mxu0 %v54
    %2810 = vmatprep.subr.mxu0 0.0
    %2811 = vmatpush1.msra.mxu0 %v53
    %2812 = vmatprep.subr.mxu0 0.0
    %2813 = vmatpush1.msra.mxu0 %v52
    %2814 = vmatprep.subr.mxu0 0.0
    %2815 = vmatpush1.msra.mxu0 %v51
    %2816 = vmatprep.subr.mxu0 0.0
    %2817 = vmatpush2.msra.mxu0 0.0
    %2818 = vmatprep.subr.mxu0 0.0
    %2819 = vmatpush2.msra.mxu0 0.0
    %2820 = vmatprep.subr.mxu0 0.0
    %2821 = vmatpush2.msra.mxu0 0.0
    %2822 = vmatprep.subr.mxu0 0.0
    %2823 = vmatpush2.msra.mxu0 0.0
    %2824 = vmatprep.subr.mxu0 0.0
    %2825 = vmatpush2.msra.mxu0 0.0
    %2826 = vmatprep.subr.mxu0 0.0
    %2827 = vmatpush2.msra.mxu0 0.0
    %2828 = vmatprep.subr.mxu0 0.0
    %2829 = vmatpush2.msra.mxu0 0.0
    %2830 = vmatprep.subr.mxu0 0.0
    %2831 = vmatpush2.msra.mxu0 0.0
    %2832 = vmatprep.subr.mxu0 0.0
    %2833 = vmatpush2.msra.mxu0 0.0
    %2834 = vmatprep.subr.mxu0 0.0
    %2835 = vmatpush2.msra.mxu0 0.0
    %2836 = vmatprep.subr.mxu0 0.0
    %2837 = vmatpush2.msra.mxu0 0.0
    %2838 = vmatprep.subr.mxu0 0.0
    %2839 = vmatpush2.msra.mxu0 0.0
    %2840 = vmatprep.subr.mxu0 0.0
    %2841 = vmatpush2.msra.mxu0 0.0
    %2842 = vmatprep.subr.mxu0 0.0
    %2843 = vmatpush2.msra.mxu0 0.0
    %2844 = vmatprep.subr.mxu0 0.0
    %2845 = vmatpush2.msra.mxu0 0.0
    %2846 = vmatprep.subr.mxu0 0.0
    %2847 = vmatpush2.msra.mxu0 0.0
    %2848 = vmatprep.mubr.f32.mxu0 0.0
    %2849 = vmatmul.mubr.f32.gmra.mxu0 %v2782
    %v2850 = vpop.f32.mrf.mxu0
    %v2851 = vadd.f32 %v253, %v2850
    %v2852 = vpop.f32.mrf.mxu0
    %2853 = vdwg.mxu0
    %v2854 = vsel %vm66, %v2851, -inf
    %2855 = vmax.xlane.f32.xlu0 %v2854
    %v2856 = vpop.xlane.xlu0 %2855
    %v2857 = vsub.f32 %v2851, %v2856
    %v2858 = vmul.f32 %v2857, 1.442695
    %v2859 = vpow.pop %v2858
    %v2860 = vsel %vm66, %v2859, 0.0
    %2861 = vadd.xlane.f32.xlu0 %v2860
    %v2862 = vpop.xlane.xlu0 %2861
    %v2864 = vsel %vm66, %v2859, 0
    %2866 = vmatprep.subr.mxu0 0.0
    %2867 = vmatpush1.msra.mxu0 0.0
    %2868 = vmatprep.subr.mxu0 0.0
    %2869 = vmatpush1.msra.mxu0 0.0
    %2870 = vmatprep.subr.mxu0 0.0
    %2871 = vmatpush1.msra.mxu0 0.0
    %2872 = vmatprep.subr.mxu0 0.0
    %2873 = vmatpush1.msra.mxu0 0.0
    %2874 = vmatprep.subr.mxu0 0.0
    %2875 = vmatpush1.msra.mxu0 0.0
    %2876 = vmatprep.subr.mxu0 0.0
    %2877 = vmatpush1.msra.mxu0 0.0
    %2878 = vmatprep.subr.mxu0 0.0
    %2879 = vmatpush1.msra.mxu0 0.0
    %2880 = vmatprep.subr.mxu0 0.0
    %2881 = vmatpush1.msra.mxu0 0.0
    %2882 = vmatprep.subr.mxu0 0.0
    %2883 = vmatpush1.msra.mxu0 0.0
    %2884 = vmatprep.subr.mxu0 0.0
    %2885 = vmatpush1.msra.mxu0 0.0
    %2886 = vmatprep.subr.mxu0 0.0
    %2887 = vmatpush1.msra.mxu0 0.0
    %2888 = vmatprep.subr.mxu0 0.0
    %2889 = vmatpush1.msra.mxu0 0.0
    %2890 = vmatprep.subr.mxu0 0.0
    %2891 = vmatpush1.msra.mxu0 0.0
    %2892 = vmatprep.subr.mxu0 0.0
    %2893 = vmatpush1.msra.mxu0 0.0
    %2894 = vmatprep.subr.mxu0 0.0
    %2895 = vmatpush1.msra.mxu0 %v42
    %2896 = vmatprep.subr.mxu0 0.0
    %2897 = vmatpush1.msra.mxu0 %v41
    %2898 = vmatprep.subr.mxu0 0.0
    %2899 = vmatpush2.msra.mxu0 0.0
    %2900 = vmatprep.subr.mxu0 0.0
    %2901 = vmatpush2.msra.mxu0 0.0
    %2902 = vmatprep.subr.mxu0 0.0
    %2903 = vmatpush2.msra.mxu0 0.0
    %2904 = vmatprep.subr.mxu0 0.0
    %2905 = vmatpush2.msra.mxu0 0.0
    %2906 = vmatprep.subr.mxu0 0.0
    %2907 = vmatpush2.msra.mxu0 0.0
    %2908 = vmatprep.subr.mxu0 0.0
    %2909 = vmatpush2.msra.mxu0 0.0
    %2910 = vmatprep.subr.mxu0 0.0
    %2911 = vmatpush2.msra.mxu0 0.0
    %2912 = vmatprep.subr.mxu0 0.0
    %2913 = vmatpush2.msra.mxu0 0.0
    %2914 = vmatprep.subr.mxu0 0.0
    %2915 = vmatpush2.msra.mxu0 0.0
    %2916 = vmatprep.subr.mxu0 0.0
    %2917 = vmatpush2.msra.mxu0 0.0
    %2918 = vmatprep.subr.mxu0 0.0
    %2919 = vmatpush2.msra.mxu0 0.0
    %2920 = vmatprep.subr.mxu0 0.0
    %2921 = vmatpush2.msra.mxu0 0.0
    %2922 = vmatprep.subr.mxu0 0.0
    %2923 = vmatpush2.msra.mxu0 0.0
    %2924 = vmatprep.subr.mxu0 0.0
    %2925 = vmatpush2.msra.mxu0 0.0
    %2926 = vmatprep.subr.mxu0 0.0
    %2927 = vmatpush2.msra.mxu0 0.0
    %2928 = vmatprep.subr.mxu0 0.0
    %2929 = vmatpush2.msra.mxu0 0.0
    %2930 = vmatprep.mubr.f32.mxu0 0.0
    %2931 = vmatmul.mubr.f32.gmra.mxu0 %v2864
    %v2932 = vpop.f32.mrf.mxu0
    %v2933 = vadd.f32 0.0, %v2932
    %v2934 = vpop.f32.mrf.mxu0
    %2935 = vdwg.mxu0
    %v2936 = vld [vmem:[%s7] sm:$0xff]
    %v2937 = vmul.f32 %v2936, %v2862
    %2939 = vset.pattern.permute.xlu0 7
    %2940 = vperm.xlu0 %2939, %v2937
    %v2941 = vpop.permute.xlu0 %2940
    %vm2943 = vcmp.le.f32.partialorder %v2933, %v2941
    %v2944 = vsel %vm2943, 1, 0
    %v2945 = vsel %vm66, %v2944, 0
    %v2946 = vand.u32 %v2945, 65535
    %v2947 = vshrl.u32 %v2945, 16
    %v2948 = vcvt.s32.f32 %v2946
    %v2949 = vcvt.s32.f32 %v2947
    %2950 = vadd.xlane.f32.xlu0 %v2948
    %v2951 = vpop.xlane.xlu0 %2950
    %2952 = vadd.xlane.f32.xlu0 %v2949
    %v2953 = vpop.xlane.xlu0 %2952
    %v2954 = vcvt.f32.s32 %v2951
    %v2955 = vcvt.f32.s32 %v2953
    %v2956 = vshll.u32 %v2955, 16
    %v2957 = vadd.s32 %v2956, %v2954
    %vm2958 = vcmp.lt.s32.totalorder %v2957, 15
    %v2959 = vsel %vm2958, %v2957, 15
    %v2960 = vsel %vm2604, %v2959, 0
    %vm2961 = vcmp.eq.s32.totalorder %v2960, 0
    %vm2962 = vmand %vm2604, %vm2961
    %v2963 = vsel %vm2962, 8, %v2602
    %vm2964 = vcmask 64568
    %2965 = vst.msk [vmem:[#allocation2] sm:$0xff] %vm2964, %v2960
    %2966 = vst.msk [vmem:[%s9] sm:$0xff] %vm439, %v2963
    // Predicated region
    $region34: #{speaker_forward.1} parent=1 // pred_check
      _
    $region35: #{speaker_forward.1} parent=1 // pred_check_branch
      %2968 = sbr.rel (0) target = $region37
    $region36: #{speaker_forward.1} parent=1 // pred_region
      %s2970 = ssub.s32 128, 128
      %2971 = vsyncadd [#allocation3], %s2970
      %s2973 = sshll.u32 [#allocation2], 4
      %s2974 = int_to_ptr.vmem [resolvable:$true] %s2973
      %2976 = dma.vmem_to_hbm [thread:$0]  %s2974, 128, %s8, [#allocation3]
    $region37: #{speaker_forward.1} parent=1 // pred_fallthru
      _
    // Predicated region
    $region38: #{speaker_forward.1} parent=1 // pred_check
      _
    $region39: #{speaker_forward.1} parent=1 // pred_check_branch
      %2978 = sbr.rel (0) target = $region41
    $region40: #{speaker_forward.1} parent=1 // pred_region
      _
    $region41: #{speaker_forward.1} parent=1 // pred_fallthru
      _
    // Predicated region
    $region42: #{speaker_forward.1} parent=1 // pred_check
      _
    $region43: #{speaker_forward.1} parent=1 // pred_check_branch
      %2980 = sbr.rel (0) target = $region45
    $region44: #{speaker_forward.1} parent=1 // pred_region
      %2981 = dma.done [#allocation3], 128
    $region45: #{speaker_forward.1} parent=1 // pred_fallthru
      _
    // Predicated region
    $region46: #{speaker_forward.1} parent=1 // pred_check
      _
    $region47: #{speaker_forward.1} parent=1 // pred_check_branch
      %2983 = sbr.rel (0) target = $region49
    $region48: #{speaker_forward.1} parent=1 // pred_region
      _
    $region49: #{speaker_forward.1} parent=1 // pred_fallthru
      _
    %2984 = vsyncpa [#allocation3], 1

</llo_original>
